<compile_context>
chip_gen: v5e
topology: v5e:2x2
jax: 0.10.0
libtpu: 0.0.40
codegen_flags: <defaults>
</compile_context>

<pallas_src>
import functools

import jax
import jax.numpy as jnp
import numpy as np
from jax.experimental import pallas as pl
from jax.experimental.pallas import tpu as pltpu


# ---------------------------------------------------------------------------
# fp32 contract precision probe (numerically verified, falls back to DEFAULT)
# ---------------------------------------------------------------------------
def _probe_fp32_dot():
    def k(a_ref, b_ref, o_ref):
        o_ref[...] = jnp.dot(a_ref[...], b_ref[...],
                             precision=jax.lax.Precision.HIGHEST,
                             preferred_element_type=jnp.float32)

    try:
        rng = np.random.RandomState(0)
        a = (1.0 + 1e-3 * rng.rand(8, 128)).astype(np.float32)
        b = (1.0 + 1e-3 * rng.rand(128, 128)).astype(np.float32)
        out = pl.pallas_call(
            k, out_shape=jax.ShapeDtypeStruct((8, 128), jnp.float32)
        )(jnp.asarray(a), jnp.asarray(b))
        out = np.asarray(jax.block_until_ready(out))
        ref = a.astype(np.float64) @ b.astype(np.float64)
        return bool(np.max(np.abs(out - ref) / np.abs(ref)) < 1e-4)
    except Exception:  # older Mosaic builds: fall back to the MXU's default precision
        return False


_FP32_DOT = _probe_fp32_dot()
_DOT_PREC = jax.lax.Precision.HIGHEST if _FP32_DOT else jax.lax.Precision.DEFAULT


# ---------------------------------------------------------------------------
# host-side constant builders (hoisted out of the kernel, passed as inputs)
# ---------------------------------------------------------------------------
def _tap_mask_slab(h, w, cp, block_n):
    """(9*cp, block_n*h*w) 0/1 mask for the stacked-tap slab.

    Row t*cp + c is the border mask of tap t=(dy,dx); a zero marks positions whose
    (dy,dx) neighbour falls outside its own image — this also kills cross-image
    contamination from rolling the lane-concatenated batch slab."""
    i = np.arange(h)[:, None]
    j = np.arange(w)[None, :]
    rows = []
    for dy in range(3):
        for dx in range(3):
            ok = ((i + dy - 1 >= 0) & (i + dy - 1 < h) &
                  (j + dx - 1 >= 0) & (j + dx - 1 < w)).reshape(1, h * w)
            rows.append(np.broadcast_to(ok, (cp, h * w)))
    m = np.concatenate(rows, axis=0).astype(np.float32)   # (9*cp, h*w)
    return np.tile(m, (1, block_n))                        # tiled per image along lanes


def _subsample_matrix(h, w, s, block_n):
    """Block-diagonal (block_n*h*w, block_n*(h//s)*(w//s)) 0/1 matrix selecting the
    top-left sample of each s x s window of every image in the lane-concat slab."""
    hc, wc = h // s, w // s
    m = np.zeros((h * w, hc * wc), np.float32)
    for ii in range(hc):
        for jj in range(wc):
            m[(ii * s) * w + (jj * s), ii * wc + jj] = 1.0
    return np.kron(np.eye(block_n, dtype=np.float32), m)


def _avgpool_matrix(h, w, s, block_n):
    """Block-diagonal matrix implementing AvgPool2d(s, s) on the lane-concat slab."""
    hc, wc = h // s, w // s
    m = np.zeros((h * w, hc * wc), np.float32)
    inv = 1.0 / (s * s)
    for ii in range(hc):
        for jj in range(wc):
            for di in range(s):
                for dj in range(s):
                    m[(ii * s + di) * w + (jj * s + dj), ii * wc + jj] = inv
    return np.kron(np.eye(block_n, dtype=np.float32), m)


# ---------------------------------------------------------------------------
# kernel
# ---------------------------------------------------------------------------
def _basic_block_kernel(x_ref, w1_ref, w2_ref, s1_ref, b1_ref, s2_ref, b2_ref,
                        m1_ref, m2_ref, ds_ref, pool_ref, o_ref, *,
                        width_in, width_out, apply_ds, need_pool, identity_shortcut,
                        activate_before_residual, dot_precision):
    f32 = jnp.float32

    # ---- hoisted constant loads: each VMEM-resident constant is read exactly once ----
    w1 = w1_ref[...]                       # (cp, 9*cp) conv1 weights, tap-major columns
    w2 = w2_ref[...]                       # (cp, 9*cp) conv2 weights
    m1 = m1_ref[...]                       # (9*cp, l_in)  stacked-tap border masks
    m2 = m2_ref[...]                       # (9*cp, l_out)
    s1 = s1_ref[...]                       # (cp, 1) folded bn1 scale (zero on pad rows)
    b1 = b1_ref[...]
    s2 = s2_ref[...]                       # (cp, 1) folded bn2 scale
    b2 = b2_ref[...]
    ds = ds_ref[...] if apply_ds else None
    pool = pool_ref[...] if need_pool else None

    def leaky(v):                          # LeakyReLU(negative_slope=0.1)
        return jnp.maximum(v, 0.1 * v)

    def conv3x3(act, w_mat, mask_slab, width):
        # act: (cp, L) lane-concatenated batch slab.  Build the 9 taps with lane rolls
        # (XLU), stack them along sublanes, apply all border masks with ONE elementwise
        # multiply, then contract taps+channels with a single MXU matmul.
        length = act.shape[-1]
        taps = []
        for dy in range(3):
            for dx in range(3):
                off = (dy - 1) * width + (dx - 1)
                taps.append(act if off == 0
                            else pltpu.roll(act, (-off) % length, axis=1))
        slab = jnp.concatenate(taps, axis=0) * mask_slab        # (9*cp, L)
        return jnp.dot(w_mat, slab, precision=dot_precision,
                       preferred_element_type=f32)              # (cp, L)

    xi = x_ref[0].astype(f32)              # (cp, l_in); real channels at the pad offset

    if activate_before_residual:           # out = bn1(leaky(x)); shortcut sees it
        pre = leaky(xi) * s1 + b1
        sc_in = pre
    else:                                  # out = leaky(bn1(x)); shortcut sees raw x
        pre = leaky(xi * s1 + b1)
        sc_in = xi

    # conv1 (stride handled by one block-diagonal 0/1 selection matmul on the cp-row result)
    h1 = conv3x3(pre, w1, m1, width_in)                          # (cp, l_in)
    if apply_ds:
        h1 = jnp.dot(h1, ds, precision=dot_precision,
                     preferred_element_type=f32)                 # (cp, l_out)
    h1 = leaky(h1 * s2 + b2)                                     # leaky(bn2(.))

    h2 = conv3x3(h1, w2, m2, width_out)                          # (cp, l_out)

    # residual / option-A shortcut.  The input channels were placed at the zero-pad
    # offset host-side, so no in-kernel channel shuffling is needed and the residual
    # add + store is a single unmasked full-slab store.
    if identity_shortcut:
        res = sc_in
    elif need_pool:
        res = jnp.dot(sc_in, pool, precision=dot_precision,
                      preferred_element_type=f32)                # AvgPool2d(s, s)
    else:
        res = sc_in                                              # AvgPool2d(1,1) == identity

    o_ref[0] = (h2 + res).astype(o_ref.dtype)


# ---------------------------------------------------------------------------
# VMEM accounting + block picker
# ---------------------------------------------------------------------------
def _vmem_bytes_estimate(block_n, cp, s_full, s_out, stride, need_pool):
    f = 4
    l_in, l_out = block_n * s_full, block_n * s_out
    io = cp * (l_in + l_out) * f                               # x block + out block
    consts = 2 * (cp * 9 * cp) * f                             # w1, w2
    consts += 9 * cp * (l_in + l_out) * f                      # mask slabs
    consts += 4 * cp * f                                       # folded bn scale/bias
    if stride != 1:
        consts += l_in * l_out * f                             # block-diag subsample
    if need_pool:
        consts += l_in * l_out * f                             # block-diag avg-pool
    pipelined = 2 * (io + consts)                              # BlockSpec double-buffering
    temps = (2 * 9 * cp * l_in + 6 * cp * l_in) * f            # tap slabs + pre/h1/h2/res
    return pipelined + temps


def _pick_block_n(n, cp, s_full, s_out, stride, need_pool, *,
                  budget_bytes, min_grid_steps):
    """Largest divisor of n that keeps >= min_grid_steps grid steps (v7x: 2 TCs/chip;
    set min_grid_steps=1 on single-TC v5e/v6e) and fits the honest VMEM estimate."""
    best = 1
    for cand in range(1, n + 1):
        if n % cand:
            continue
        if n >= min_grid_steps and n // cand < min_grid_steps:
            continue
        if _vmem_bytes_estimate(cand, cp, s_full, s_out, stride, need_pool) > budget_bytes:
            continue
        best = cand
    return best


# ---------------------------------------------------------------------------
# wrapper
# ---------------------------------------------------------------------------
def basic_block_forward(x, conv1_w, conv2_w, bn1_params, bn2_params, *,
                        stride=1, activate_before_residual=False, eps=1e-5,
                        block_n=None, min_grid_steps=2, vmem_budget_bytes=20 << 20):
    """Fused Pallas TPU forward of BasicBlock (inference-mode BatchNorm).

    bn*_params = (gamma, beta, running_mean, running_var).
    """
    n, cin, hh, ww = x.shape
    cout = conv1_w.shape[0]
    assert conv1_w.shape == (cout, cin, 3, 3)
    assert conv2_w.shape == (cout, cout, 3, 3)
    assert stride in (1, 2), "only stride 1 / 2 supported"
    if stride != 1:
        assert hh % stride == 0 and ww % stride == 0, "stride-2 path needs even H, W"
    if cin == cout:
        assert stride == 1, "identity shortcut requires stride == 1"
        pad_ch = 0
    else:
        assert cout > cin and (cout - cin) % 2 == 0
        pad_ch = (cout - cin) // 2

    hc, wc = hh // stride, ww // stride
    s_full, s_out = hh * ww, hc * wc
    identity_shortcut = (cin == cout)
    need_pool = (not identity_shortcut) and stride != 1
    cp = -(-cout // 8) * 8                 # channel/sublane dim rounded up to a multiple of 8

    if block_n is None:
        block_n = _pick_block_n(n, cp, s_full, s_out, stride, need_pool,
                                budget_bytes=vmem_budget_bytes,
                                min_grid_steps=min_grid_steps)
    assert n % block_n == 0  # TODO(synk): ragged last block for non-divisible batch sizes
    g = n // block_n
    l_in, l_out = block_n * s_full, block_n * s_out

    f32 = jnp.float32

    def fold_bn(params, c, row_off):
        gamma, beta, mean, var = (jnp.asarray(p, f32) for p in params)
        scale = gamma / jnp.sqrt(var + eps)
        shift = beta - mean * scale
        s = jnp.zeros((cp,), f32).at[row_off:row_off + c].set(scale)
        b = jnp.zeros((cp,), f32).at[row_off:row_off + c].set(shift)
        return s.reshape(cp, 1), b.reshape(cp, 1)

    # folded (eval-mode) BatchNorm; real input channels live at rows [pad_ch, pad_ch+cin)
    s1, b1 = fold_bn(bn1_params, cin, pad_ch)
    s2, b2 = fold_bn(bn2_params, cout, 0)

    # conv weights reshaped host-side to (cp, 9*cp); column (dy*3+dx)*cp + c
    w1_p = jnp.zeros((cp, cp, 3, 3), f32).at[:cout, pad_ch:pad_ch + cin].set(
        jnp.asarray(conv1_w, f32))
    w2_p = jnp.zeros((cp, cp, 3, 3), f32).at[:cout, :cout].set(jnp.asarray(conv2_w, f32))
    w1_r = w1_p.transpose(0, 2, 3, 1).reshape(cp, 9 * cp)
    w2_r = w2_p.transpose(0, 2, 3, 1).reshape(cp, 9 * cp)

    # border masks for the stacked-tap slabs (2-D, no size-1 sublane dim)
    m1 = jnp.asarray(_tap_mask_slab(hh, ww, cp, block_n))
    m2 = jnp.asarray(_tap_mask_slab(hc, wc, cp, block_n))
    # block-diagonal stride-2 selection / AvgPool2d matrices (lane side)
    ds = (jnp.asarray(_subsample_matrix(hh, ww, stride, block_n)) if stride != 1
          else jnp.zeros((1, 1), f32))
    pool = (jnp.asarray(_avgpool_matrix(hh, ww, stride, block_n)) if need_pool
            else jnp.zeros((1, 1), f32))

    # lane-dense layout plumbing (XLA side): channels padded to cp with the real channels
    # already at the option-A zero-pad offset; block_n images concatenated along lanes.
    x_p = jnp.pad(x, ((0, 0), (pad_ch, cp - pad_ch - cin), (0, 0), (0, 0)))
    x2 = (x_p.reshape(g, block_n, cp, s_full)
             .transpose(0, 2, 1, 3)
             .reshape(g, cp, l_in))

    kernel = functools.partial(
        _basic_block_kernel,
        width_in=ww, width_out=wc, apply_ds=(stride != 1), need_pool=need_pool,
        identity_shortcut=identity_shortcut,
        activate_before_residual=activate_before_residual,
        dot_precision=_DOT_PREC)

    vmem_est = _vmem_bytes_estimate(block_n, cp, s_full, s_out, stride, need_pool)
    vmem_limit = int(min(48 << 20, max(16 << 20, 2 * vmem_est)))

    c2 = lambda i: (0, 0)
    # NOTE: the constant operands have constant index_maps; on VMEM-tight parts (v7x 64 MiB)
    # they could be single-buffered (pipeline_mode=pl.Buffered(1)) to halve their footprint —
    # unnecessary at these sizes, so kept default for maximum compatibility.
    out = pl.pallas_call(
        kernel,
        out_shape=jax.ShapeDtypeStruct((g, cp, l_out), x.dtype),
        grid=(g,),
        in_specs=[
            pl.BlockSpec((1, cp, l_in), lambda i: (i, 0, 0)),
            pl.BlockSpec(w1_r.shape, c2),
            pl.BlockSpec(w2_r.shape, c2),
            pl.BlockSpec(s1.shape, c2),
            pl.BlockSpec(b1.shape, c2),
            pl.BlockSpec(s2.shape, c2),
            pl.BlockSpec(b2.shape, c2),
            pl.BlockSpec(m1.shape, c2),
            pl.BlockSpec(m2.shape, c2),
            pl.BlockSpec(ds.shape, c2),
            pl.BlockSpec(pool.shape, c2),
        ],
        out_specs=pl.BlockSpec((1, cp, l_out), lambda i: (i, 0, 0)),
        compiler_params=pltpu.CompilerParams(
            dimension_semantics=("parallel",),
            vmem_limit_bytes=vmem_limit),
    )(x2, w1_r, w2_r, s1, b1, s2, b2, m1, m2, ds, pool)

    out = (out.reshape(g, cp, block_n, s_out)
              .transpose(0, 2, 1, 3)
              .reshape(n, cp, hc, wc))
    return out[:, :cout]


# ---------------------------------------------------------------------------
# pure-JAX reference (eval-mode BN, exact fp32 convs)
# ---------------------------------------------------------------------------
def _basic_block_ref(x, conv1_w, conv2_w, bn1_params, bn2_params, *,
                     stride, activate_before_residual, eps=1e-5):
    def fold(params):
        gamma, beta, mean, var = (jnp.asarray(p, jnp.float32) for p in params)
        s = gamma / jnp.sqrt(var + eps)
        return s, beta - mean * s

    def bn(t, sc, sh):
        return t * sc[None, :, None, None] + sh[None, :, None, None]

    leaky = lambda t: jnp.where(t >= 0, t, 0.1 * t)
    s1, c1 = fold(bn1_params)
    s2, c2 = fold(bn2_params)

    if activate_before_residual:
        out = bn(leaky(x), s1, c1)
        xs = out
    else:
        out = leaky(bn(x, s1, c1))
        xs = x

    dn = ('NCHW', 'OIHW', 'NCHW')
    out = jax.lax.conv_general_dilated(out, conv1_w, (stride, stride), ((1, 1), (1, 1)),
                                       dimension_numbers=dn,
                                       precision=jax.lax.Precision.HIGHEST)
    out = leaky(bn(out, s2, c2))
    out = jax.lax.conv_general_dilated(out, conv2_w, (1, 1), ((1, 1), (1, 1)),
                                       dimension_numbers=dn,
                                       precision=jax.lax.Precision.HIGHEST)

    cin, cout = x.shape[1], conv1_w.shape[0]
    if cin == cout:
        sc = xs
    else:
        if stride > 1:
            nb, cc, hh, ww = xs.shape
            sc = xs.reshape(nb, cc, hh // stride, stride,
                            ww // stride, stride).mean(axis=(3, 5))
        else:
            sc = xs
        p = (cout - cin) // 2
        sc = jnp.pad(sc, ((0, 0), (p, p), (0, 0), (0, 0)))
    return out + sc


if __name__ == "__main__":
    key = jax.random.PRNGKey(0)
    keys = jax.random.split(key, 9)

    def make_bn(k, c):
        k1, k2, k3, k4 = jax.random.split(k, 4)
        gamma = jax.random.uniform(k1, (c,), jnp.float32, 0.8, 1.2)
        beta = 0.1 * jax.random.normal(k2, (c,), jnp.float32)
        mean = 0.1 * jax.random.normal(k3, (c,), jnp.float32)
        var = jax.random.uniform(k4, (c,), jnp.float32, 0.8, 1.2)
        return gamma, beta, mean, var

    # Tolerances: tight when fp32 contract precision is available on the MXU, otherwise
    # sized for the MXU's default bf16 operand rounding in the conv/selection matmuls.
    tol_tight = dict(rtol=1e-3, atol=1e-3)
    tol_a = tol_tight if _FP32_DOT else dict(rtol=3e-2, atol=5e-2)
    tol_b = tol_tight if _FP32_DOT else dict(rtol=2e-2, atol=3e-2)

    # --- config A: downsampling block (in=4 -> out=8, stride 2, avgpool + zero-pad shortcut)
    n, cin, cout, hh, ww = 8, 4, 8, 16, 16
    x = jax.random.normal(keys[0], (n, cin, hh, ww), jnp.float32)
    w1 = 0.15 * jax.random.normal(keys[1], (cout, cin, 3, 3), jnp.float32)
    w2 = 0.15 * jax.random.normal(keys[2], (cout, cout, 3, 3), jnp.float32)
    bn1 = make_bn(keys[3], cin)
    bn2 = make_bn(keys[4], cout)

    y = jax.block_until_ready(
        basic_block_forward(x, w1, w2, bn1, bn2, stride=2,
                            activate_before_residual=False))
    y_ref = _basic_block_ref(x, w1, w2, bn1, bn2, stride=2,
                             activate_before_residual=False)
    assert y.shape == y_ref.shape == (n, cout, hh // 2, ww // 2)
    np.testing.assert_allclose(np.asarray(y), np.asarray(y_ref), **tol_a)

    # --- config B: identity block (in=out=4, stride 1, pre-activation variant)
    w1b = 0.15 * jax.random.normal(keys[5], (cin, cin, 3, 3), jnp.float32)
    w2b = 0.15 * jax.random.normal(keys[6], (cin, cin, 3, 3), jnp.float32)
    bn1b = make_bn(keys[7], cin)
    bn2b = make_bn(keys[8], cin)

    yb = jax.block_until_ready(
        basic_block_forward(x, w1b, w2b, bn1b, bn2b, stride=1,
                            activate_before_residual=True))
    yb_ref = _basic_block_ref(x, w1b, w2b, bn1b, bn2b, stride=1,
                              activate_before_residual=True)
    assert yb.shape == yb_ref.shape == (n, cin, hh, ww)
    np.testing.assert_allclose(np.asarray(yb), np.asarray(yb_ref), **tol_b)

    print("KERNEL_OK")
</pallas_src>

<mosaic_0001>
module attributes {stable_mosaic.version = 11 : i64} {
  func.func @k(%arg0: memref<8x128xf32, #tpu.memory_space<vmem>>, %arg1: memref<128x128xf32, #tpu.memory_space<vmem>>, %arg2: memref<8x128xf32, #tpu.memory_space<vmem>>) attributes {dimension_semantics = [], scalar_prefetch = 0 : i64, scratch_operands = 0 : i64, tpu.core_type = #tpu.core_type<tc>} {
    %c0 = arith.constant 0 : index
    %c0_0 = arith.constant 0 : index
    %0 = vector.load %arg0[%c0, %c0_0] : memref<8x128xf32, #tpu.memory_space<vmem>>, vector<8x128xf32>
    %c0_1 = arith.constant 0 : index
    %c0_2 = arith.constant 0 : index
    %1 = vector.load %arg1[%c0_1, %c0_2] : memref<128x128xf32, #tpu.memory_space<vmem>>, vector<128x128xf32>
    %cst = arith.constant dense<0.000000e+00> : vector<8x128xf32>
    %2 = tpu.matmul %0, %1, %cst {dimension_numbers = #tpu.dot_dimension_numbers<[1], [0], [0], [1], [0, 0, 1, 1], [], []>, precision = #tpu.contract_precision<fp32>} : vector<8x128xf32>, vector<128x128xf32>, vector<8x128xf32> -> vector<8x128xf32>
    %c0_3 = arith.constant 0 : index
    %c0_4 = arith.constant 0 : index
    %3 = vector.load %arg2[%c0_3, %c0_4] : memref<8x128xf32, #tpu.memory_space<vmem>>, vector<8x128xf32>
    tpu.vector_store %arg2[%c0_3, %c0_4], %2 {strides = array<i32>} : memref<8x128xf32, #tpu.memory_space<vmem>>, vector<8x128xf32>,
    return
  }
}

module attributes {stable_mosaic.version = 11 : i64} {
  func.func @_basic_block_kernel(%arg0: i32, %arg1: memref<1x8x1024xf32, #tpu.memory_space<vmem>>, %arg2: memref<8x72xf32, #tpu.memory_space<vmem>>, %arg3: memref<8x72xf32, #tpu.memory_space<vmem>>, %arg4: memref<8x1xf32, #tpu.memory_space<vmem>>, %arg5: memref<8x1xf32, #tpu.memory_space<vmem>>, %arg6: memref<8x1xf32, #tpu.memory_space<vmem>>, %arg7: memref<8x1xf32, #tpu.memory_space<vmem>>, %arg8: memref<72x1024xf32, #tpu.memory_space<vmem>>, %arg9: memref<72x256xf32, #tpu.memory_space<vmem>>, %arg10: memref<1024x256xf32, #tpu.memory_space<vmem>>, %arg11: memref<1024x256xf32, #tpu.memory_space<vmem>>, %arg12: memref<1x8x256xf32, #tpu.memory_space<vmem>>) attributes {dimension_semantics = [#tpu.dimension_semantics<parallel>], iteration_bounds = array<i64: 2>, scalar_prefetch = 0 : i64, scratch_operands = 0 : i64, tpu.core_type = #tpu.core_type<tc>, window_params = [{transform_indices = @transform_0, window_bounds = array<i64: 1, 8, 1024>}, {pipeline_mode = #tpu.pipeline_mode<synchronous>, transform_indices = @transform_1, window_bounds = array<i64: 8, 72>}, {pipeline_mode = #tpu.pipeline_mode<synchronous>, transform_indices = @transform_2, window_bounds = array<i64: 8, 72>}, {pipeline_mode = #tpu.pipeline_mode<synchronous>, transform_indices = @transform_3, window_bounds = array<i64: 8, 1>}, {pipeline_mode = #tpu.pipeline_mode<synchronous>, transform_indices = @transform_4, window_bounds = array<i64: 8, 1>}, {pipeline_mode = #tpu.pipeline_mode<synchronous>, transform_indices = @transform_5, window_bounds = array<i64: 8, 1>}, {pipeline_mode = #tpu.pipeline_mode<synchronous>, transform_indices = @transform_6, window_bounds = array<i64: 8, 1>}, {pipeline_mode = #tpu.pipeline_mode<synchronous>, transform_indices = @transform_7, window_bounds = array<i64: 72, 1024>}, {pipeline_mode = #tpu.pipeline_mode<synchronous>, transform_indices = @transform_8, window_bounds = array<i64: 72, 256>}, {pipeline_mode = #tpu.pipeline_mode<synchronous>, transform_indices = @transform_9, window_bounds = array<i64: 1024, 256>}, {pipeline_mode = #tpu.pipeline_mode<synchronous>, transform_indices = @transform_10, window_bounds = array<i64: 1024, 256>}, {transform_indices = @transform_11, window_bounds = array<i64: 1, 8, 256>}]} {
    %c0 = arith.constant 0 : index
    %c0_0 = arith.constant 0 : index
    %0 = vector.load %arg2[%c0, %c0_0] : memref<8x72xf32, #tpu.memory_space<vmem>>, vector<8x72xf32>
    %c0_1 = arith.constant 0 : index
    %c0_2 = arith.constant 0 : index
    %1 = vector.load %arg3[%c0_1, %c0_2] : memref<8x72xf32, #tpu.memory_space<vmem>>, vector<8x72xf32>
    %c0_3 = arith.constant 0 : index
    %c0_4 = arith.constant 0 : index
    %2 = vector.load %arg8[%c0_3, %c0_4] : memref<72x1024xf32, #tpu.memory_space<vmem>>, vector<72x1024xf32>
    %c0_5 = arith.constant 0 : index
    %c0_6 = arith.constant 0 : index
    %3 = vector.load %arg9[%c0_5, %c0_6] : memref<72x256xf32, #tpu.memory_space<vmem>>, vector<72x256xf32>
    %c0_7 = arith.constant 0 : index
    %c0_8 = arith.constant 0 : index
    %4 = vector.load %arg4[%c0_7, %c0_8] : memref<8x1xf32, #tpu.memory_space<vmem>>, vector<8x1xf32>
    %c0_9 = arith.constant 0 : index
    %c0_10 = arith.constant 0 : index
    %5 = vector.load %arg5[%c0_9, %c0_10] : memref<8x1xf32, #tpu.memory_space<vmem>>, vector<8x1xf32>
    %c0_11 = arith.constant 0 : index
    %c0_12 = arith.constant 0 : index
    %6 = vector.load %arg6[%c0_11, %c0_12] : memref<8x1xf32, #tpu.memory_space<vmem>>, vector<8x1xf32>
    %c0_13 = arith.constant 0 : index
    %c0_14 = arith.constant 0 : index
    %7 = vector.load %arg7[%c0_13, %c0_14] : memref<8x1xf32, #tpu.memory_space<vmem>>, vector<8x1xf32>
    %c0_15 = arith.constant 0 : index
    %c0_16 = arith.constant 0 : index
    %8 = vector.load %arg10[%c0_15, %c0_16] : memref<1024x256xf32, #tpu.memory_space<vmem>>, vector<1024x256xf32>
    %c0_17 = arith.constant 0 : index
    %c0_18 = arith.constant 0 : index
    %9 = vector.load %arg11[%c0_17, %c0_18] : memref<1024x256xf32, #tpu.memory_space<vmem>>, vector<1024x256xf32>
    %c0_19 = arith.constant 0 : index
    %c0_20 = arith.constant 0 : index
    %c0_21 = arith.constant 0 : index
    %10 = vector.load %arg1[%c0_19, %c0_20, %c0_21] : memref<1x8x1024xf32, #tpu.memory_space<vmem>>, vector<1x8x1024xf32>
    %11 = vector.shape_cast %10 : vector<1x8x1024xf32> to vector<8x1024xf32>
    %12 = vector.broadcast %4 : vector<8x1xf32> to vector<8x1024xf32>
    %13 = arith.mulf %11, %12 : vector<8x1024xf32>
    %14 = vector.broadcast %5 : vector<8x1xf32> to vector<8x1024xf32>
    %15 = arith.addf %13, %14 : vector<8x1024xf32>
    %cst = arith.constant 1.000000e-01 : f32
    %16 = vector.broadcast %cst : f32 to vector<8x1024xf32>
    %17 = arith.mulf %16, %15 : vector<8x1024xf32>
    %18 = arith.maximumf %15, %17 : vector<8x1024xf32>
    %c17_i32 = arith.constant 17 : i32
    %19 = tpu.dynamic_rotate %18 by %c17_i32 dim 1 : vector<8x1024xf32>, i32 -> vector<8x1024xf32>
    %c16_i32 = arith.constant 16 : i32
    %20 = tpu.dynamic_rotate %18 by %c16_i32 dim 1 : vector<8x1024xf32>, i32 -> vector<8x1024xf32>
    %c15_i32 = arith.constant 15 : i32
    %21 = tpu.dynamic_rotate %18 by %c15_i32 dim 1 : vector<8x1024xf32>, i32 -> vector<8x1024xf32>
    %c1_i32 = arith.constant 1 : i32
    %22 = tpu.dynamic_rotate %18 by %c1_i32 dim 1 : vector<8x1024xf32>, i32 -> vector<8x1024xf32>
    %c1023_i32 = arith.constant 1023 : i32
    %23 = tpu.dynamic_rotate %18 by %c1023_i32 dim 1 : vector<8x1024xf32>, i32 -> vector<8x1024xf32>
    %c1009_i32 = arith.constant 1009 : i32
    %24 = tpu.dynamic_rotate %18 by %c1009_i32 dim 1 : vector<8x1024xf32>, i32 -> vector<8x1024xf32>
    %c1008_i32 = arith.constant 1008 : i32
    %25 = tpu.dynamic_rotate %18 by %c1008_i32 dim 1 : vector<8x1024xf32>, i32 -> vector<8x1024xf32>
    %c1007_i32 = arith.constant 1007 : i32
    %26 = tpu.dynamic_rotate %18 by %c1007_i32 dim 1 : vector<8x1024xf32>, i32 -> vector<8x1024xf32>
    %27 = tpu.concatenate %19, %20, %21, %22, %18, %23, %24, %25, %26 in 0 : vector<8x1024xf32>, vector<8x1024xf32>, vector<8x1024xf32>, vector<8x1024xf32>, vector<8x1024xf32>, vector<8x1024xf32>, vector<8x1024xf32>, vector<8x1024xf32>, vector<8x1024xf32> -> vector<72x1024xf32>
    %28 = arith.mulf %27, %2 : vector<72x1024xf32>
    %cst_22 = arith.constant dense<0.000000e+00> : vector<8x1024xf32>
    %29 = tpu.matmul %0, %28, %cst_22 {dimension_numbers = #tpu.dot_dimension_numbers<[1], [0], [0], [1], [0, 0, 1, 1], [], []>} : vector<8x72xf32>, vector<72x1024xf32>, vector<8x1024xf32> -> vector<8x1024xf32>
    %cst_23 = arith.constant dense<0.000000e+00> : vector<8x256xf32>
    %30 = tpu.matmul %29, %8, %cst_23 {dimension_numbers = #tpu.dot_dimension_numbers<[1], [0], [0], [1], [0, 0, 1, 1], [], []>} : vector<8x1024xf32>, vector<1024x256xf32>, vector<8x256xf32> -> vector<8x256xf32>
    %31 = vector.broadcast %6 : vector<8x1xf32> to vector<8x256xf32>
    %32 = arith.mulf %30, %31 : vector<8x256xf32>
    %33 = vector.broadcast %7 : vector<8x1xf32> to vector<8x256xf32>
    %34 = arith.addf %32, %33 : vector<8x256xf32>
    %cst_24 = arith.constant 1.000000e-01 : f32
    %35 = vector.broadcast %cst_24 : f32 to vector<8x256xf32>
    %36 = arith.mulf %35, %34 : vector<8x256xf32>
    %37 = arith.maximumf %34, %36 : vector<8x256xf32>
    %c9_i32 = arith.constant 9 : i32
    %38 = tpu.dynamic_rotate %37 by %c9_i32 dim 1 : vector<8x256xf32>, i32 -> vector<8x256xf32>
    %c8_i32 = arith.constant 8 : i32
    %39 = tpu.dynamic_rotate %37 by %c8_i32 dim 1 : vector<8x256xf32>, i32 -> vector<8x256xf32>
    %c7_i32 = arith.constant 7 : i32
    %40 = tpu.dynamic_rotate %37 by %c7_i32 dim 1 : vector<8x256xf32>, i32 -> vector<8x256xf32>
    %c1_i32_25 = arith.constant 1 : i32
    %41 = tpu.dynamic_rotate %37 by %c1_i32_25 dim 1 : vector<8x256xf32>, i32 -> vector<8x256xf32>
    %c255_i32 = arith.constant 255 : i32
    %42 = tpu.dynamic_rotate %37 by %c255_i32 dim 1 : vector<8x256xf32>, i32 -> vector<8x256xf32>
    %c249_i32 = arith.constant 249 : i32
    %43 = tpu.dynamic_rotate %37 by %c249_i32 dim 1 : vector<8x256xf32>, i32 -> vector<8x256xf32>
    %c248_i32 = arith.constant 248 : i32
    %44 = tpu.dynamic_rotate %37 by %c248_i32 dim 1 : vector<8x256xf32>, i32 -> vector<8x256xf32>
    %c247_i32 = arith.constant 247 : i32
    %45 = tpu.dynamic_rotate %37 by %c247_i32 dim 1 : vector<8x256xf32>, i32 -> vector<8x256xf32>
    %46 = tpu.concatenate %38, %39, %40, %41, %37, %42, %43, %44, %45 in 0 : vector<8x256xf32>, vector<8x256xf32>, vector<8x256xf32>, vector<8x256xf32>, vector<8x256xf32>, vector<8x256xf32>, vector<8x256xf32>, vector<8x256xf32>, vector<8x256xf32> -> vector<72x256xf32>
    %47 = arith.mulf %46, %3 : vector<72x256xf32>
    %cst_26 = arith.constant dense<0.000000e+00> : vector<8x256xf32>
    %48 = tpu.matmul %1, %47, %cst_26 {dimension_numbers = #tpu.dot_dimension_numbers<[1], [0], [0], [1], [0, 0, 1, 1], [], []>} : vector<8x72xf32>, vector<72x256xf32>, vector<8x256xf32> -> vector<8x256xf32>
    %cst_27 = arith.constant dense<0.000000e+00> : vector<8x256xf32>
    %49 = tpu.matmul %11, %9, %cst_27 {dimension_numbers = #tpu.dot_dimension_numbers<[1], [0], [0], [1], [0, 0, 1, 1], [], []>} : vector<8x1024xf32>, vector<1024x256xf32>, vector<8x256xf32> -> vector<8x256xf32>
    %50 = arith.addf %48, %49 : vector<8x256xf32>
    %c0_28 = arith.constant 0 : index
    %c0_29 = arith.constant 0 : index
    %c0_30 = arith.constant 0 : index
    %51 = vector.load %arg12[%c0_28, %c0_29, %c0_30] : memref<1x8x256xf32, #tpu.memory_space<vmem>>, vector<1x8x256xf32>
    %52 = vector.shape_cast %51 : vector<1x8x256xf32> to vector<8x256xf32>
    %53 = vector.shape_cast %50 : vector<8x256xf32> to vector<1x8x256xf32>
    tpu.vector_store %arg12[%c0_28, %c0_29, %c0_30], %53 {strides = array<i32>} : memref<1x8x256xf32, #tpu.memory_space<vmem>>, vector<1x8x256xf32>,
    return
  }
  func.func @transform_0(%arg0: i32) -> (i32, i32, i32) {
    %c0_i32 = arith.constant 0 : i32
    %c0_i32_0 = arith.constant 0 : i32
    %c0_i32_1 = arith.constant 0 : i32
    return %arg0, %c0_i32, %c0_i32_0 : i32, i32, i32
  }
  func.func @transform_1(%arg0: i32) -> (i32, i32) {
    %c0_i32 = arith.constant 0 : i32
    %c0_i32_0 = arith.constant 0 : i32
    %c0_i32_1 = arith.constant 0 : i32
    return %c0_i32, %c0_i32_0 : i32, i32
  }
  func.func @transform_2(%arg0: i32) -> (i32, i32) {
    %c0_i32 = arith.constant 0 : i32
    %c0_i32_0 = arith.constant 0 : i32
    %c0_i32_1 = arith.constant 0 : i32
    return %c0_i32, %c0_i32_0 : i32, i32
  }
  func.func @transform_3(%arg0: i32) -> (i32, i32) {
    %c0_i32 = arith.constant 0 : i32
    %c0_i32_0 = arith.constant 0 : i32
    %c0_i32_1 = arith.constant 0 : i32
    return %c0_i32, %c0_i32_0 : i32, i32
  }
  func.func @transform_4(%arg0: i32) -> (i32, i32) {
    %c0_i32 = arith.constant 0 : i32
    %c0_i32_0 = arith.constant 0 : i32
    %c0_i32_1 = arith.constant 0 : i32
    return %c0_i32, %c0_i32_0 : i32, i32
  }
  func.func @transform_5(%arg0: i32) -> (i32, i32) {
    %c0_i32 = arith.constant 0 : i32
    %c0_i32_0 = arith.constant 0 : i32
    %c0_i32_1 = arith.constant 0 : i32
    return %c0_i32, %c0_i32_0 : i32, i32
  }
  func.func @transform_6(%arg0: i32) -> (i32, i32) {
    %c0_i32 = arith.constant 0 : i32
    %c0_i32_0 = arith.constant 0 : i32
    %c0_i32_1 = arith.constant 0 : i32
    return %c0_i32, %c0_i32_0 : i32, i32
  }
  func.func @transform_7(%arg0: i32) -> (i32, i32) {
    %c0_i32 = arith.constant 0 : i32
    %c0_i32_0 = arith.constant 0 : i32
    %c0_i32_1 = arith.constant 0 : i32
    return %c0_i32, %c0_i32_0 : i32, i32
  }
  func.func @transform_8(%arg0: i32) -> (i32, i32) {
    %c0_i32 = arith.constant 0 : i32
    %c0_i32_0 = arith.constant 0 : i32
    %c0_i32_1 = arith.constant 0 : i32
    return %c0_i32, %c0_i32_0 : i32, i32
  }
  func.func @transform_9(%arg0: i32) -> (i32, i32) {
    %c0_i32 = arith.constant 0 : i32
    %c0_i32_0 = arith.constant 0 : i32
    %c0_i32_1 = arith.constant 0 : i32
    return %c0_i32, %c0_i32_0 : i32, i32
  }
  func.func @transform_10(%arg0: i32) -> (i32, i32) {
    %c0_i32 = arith.constant 0 : i32
    %c0_i32_0 = arith.constant 0 : i32
    %c0_i32_1 = arith.constant 0 : i32
    return %c0_i32, %c0_i32_0 : i32, i32
  }
  func.func @transform_11(%arg0: i32) -> (i32, i32, i32) {
    %c0_i32 = arith.constant 0 : i32
    %c0_i32_0 = arith.constant 0 : i32
    %c0_i32_1 = arith.constant 0 : i32
    return %arg0, %c0_i32, %c0_i32_0 : i32, i32, i32
  }
}

</mosaic_0001>

<llo_original>
// kernel: tpu_custom_call.1
$region0: #{tpu_custom_call.1}
  #allocation0 [shape = 'u32[]', space=smem, size = 0x4, offset = 0x4, fixed_abs, tag = 'smem constant byte address 0x4 - core index']
  #allocation1 [shape = 'u32[72,128]{1,0:T(1,128)}', space=vmem, size = 0x9000, scoped, tag = 'internal scratch']
  %s0 = inlined_call_operand.hbm [shape: f32[8,128], index: 0, kind: input, shape index: {}]
  %s1 = inlined_call_operand.hbm [shape: f32[128,128], index: 1, kind: input, shape index: {}]
  %s2 = inlined_call_operand.hbm [shape: f32[8,128], index: 2, kind: output, shape index: {}]
  %s3 = sld [smem:[#allocation0]]
  $region26: #{tpu_custom_call.1} parent=0
    _
  %s5 = ssub.s32 1, %s3
  %s6 = scalar_select 0, %s5, %s3
  $region1: #{tpu_custom_call.1} parent=0
    #allocation2 [shape = 'u8[4096]{0}', space=vmem, size = 0x1000, scoped, tag = 'input window, operand 0, single buffered']
    #allocation3 [shape = 's32[1]{0}', space=sflag, size = 0x4, scoped, tag = 'scoped memory for tpu_custom_call.1']
    #allocation4 [shape = 's32[1]{0}', space=sflag, size = 0x4, scoped, tag = 'scoped memory for tpu_custom_call.1']
    #allocation5 [shape = 'u8[65536]{0}', space=vmem, size = 0x10000, scoped, tag = 'input window, operand 1, single buffered']
    #allocation6 [shape = 's32[1]{0}', space=sflag, size = 0x4, scoped, tag = 'scoped memory for tpu_custom_call.1']
    #allocation7 [shape = 'u8[4096]{0}', space=vmem, size = 0x1000, scoped, tag = 'output window, operand 0, single buffered']
    %7 = vsyncpa [#allocation3], 0
    %8 = vsyncpa [#allocation6], 0
    %9 = vsyncpa [#allocation4], 0
    // Predicated region
    $region2: #{tpu_custom_call.1} parent=1 // pred_check
      _
    $region3: #{tpu_custom_call.1} parent=1 // pred_check_branch
      %11 = sbr.rel (0) target = $region5
    $region4: #{tpu_custom_call.1} parent=1 // pred_region
      %13 = vsyncadd [#allocation3], 0
      %s15 = sshll.u32 %s0, 4
      %s16 = int_to_ptr.hbm [resolvable:$true] %s15
      %s17 = sshll.u32 [#allocation2], 4
      %s18 = int_to_ptr.vmem [resolvable:$true] %s17
      %20 = dma.hbm_to_vmem [thread:$0]  %s16, 128, %s18, [#allocation3]
    $region5: #{tpu_custom_call.1} parent=1 // pred_fallthru
      _
    // Predicated region
    $region6: #{tpu_custom_call.1} parent=1 // pred_check
      _
    $region7: #{tpu_custom_call.1} parent=1 // pred_check_branch
      %22 = sbr.rel (0) target = $region9
    $region8: #{tpu_custom_call.1} parent=1 // pred_region
      %24 = vsyncadd [#allocation6], 0
      %s25 = sshll.u32 %s1, 4
      %s26 = int_to_ptr.hbm [resolvable:$true] %s25
      %s27 = sshll.u32 [#allocation5], 4
      %s28 = int_to_ptr.vmem [resolvable:$true] %s27
      %33 = dma.hbm_to_vmem [thread:$0]  %s26, 2048, %s28, [#allocation6], 128, 128, 8
    $region9: #{tpu_custom_call.1} parent=1 // pred_fallthru
      _
    // Predicated region
    $region10: #{tpu_custom_call.1} parent=1 // pred_check
      _
    $region11: #{tpu_custom_call.1} parent=1 // pred_check_branch
      %35 = sbr.rel (0) target = $region13
    $region12: #{tpu_custom_call.1} parent=1 // pred_region
      %37 = dma.done [#allocation3], 128
    $region13: #{tpu_custom_call.1} parent=1 // pred_fallthru
      _
    // Predicated region
    $region14: #{tpu_custom_call.1} parent=1 // pred_check
      _
    $region15: #{tpu_custom_call.1} parent=1 // pred_check_branch
      %39 = sbr.rel (0) target = $region17
    $region16: #{tpu_custom_call.1} parent=1 // pred_region
      %41 = dma.done [#allocation6], 2048
    $region17: #{tpu_custom_call.1} parent=1 // pred_fallthru
      _
    %v42 = vld [vmem:[#allocation2] sm:$0xff]
    %v43 = vld [vmem:[#allocation5] sm:$0xff]
    %v44 = vld [vmem:[#allocation5 + $0x8] sm:$0xff]
    %v45 = vld [vmem:[#allocation5 + $0x10] sm:$0xff]
    %v46 = vld [vmem:[#allocation5 + $0x18] sm:$0xff]
    %v47 = vld [vmem:[#allocation5 + $0x20] sm:$0xff]
    %v48 = vld [vmem:[#allocation5 + $0x28] sm:$0xff]
    %v49 = vld [vmem:[#allocation5 + $0x30] sm:$0xff]
    %v50 = vld [vmem:[#allocation5 + $0x38] sm:$0xff]
    %v51 = vld [vmem:[#allocation5 + $0x40] sm:$0xff]
    %v52 = vld [vmem:[#allocation5 + $0x48] sm:$0xff]
    %v53 = vld [vmem:[#allocation5 + $0x50] sm:$0xff]
    %v54 = vld [vmem:[#allocation5 + $0x58] sm:$0xff]
    %v55 = vld [vmem:[#allocation5 + $0x60] sm:$0xff]
    %v56 = vld [vmem:[#allocation5 + $0x68] sm:$0xff]
    %v57 = vld [vmem:[#allocation5 + $0x70] sm:$0xff]
    %v58 = vld [vmem:[#allocation5 + $0x78] sm:$0xff]
    %v59 = vand.u32 %v58, 4294901760
    %60 = vmatpush.msra.mxu0 %v59
    %v61 = vand.u32 %v57, 4294901760
    %62 = vmatpush.msra.mxu0 %v61
    %v63 = vand.u32 %v56, 4294901760
    %64 = vmatpush.msra.mxu0 %v63
    %v65 = vand.u32 %v55, 4294901760
    %66 = vmatpush.msra.mxu0 %v65
    %v67 = vand.u32 %v54, 4294901760
    %68 = vmatpush.msra.mxu0 %v67
    %v69 = vand.u32 %v53, 4294901760
    %70 = vmatpush.msra.mxu0 %v69
    %v71 = vand.u32 %v52, 4294901760
    %72 = vmatpush.msra.mxu0 %v71
    %v73 = vand.u32 %v51, 4294901760
    %74 = vmatpush.msra.mxu0 %v73
    %v75 = vand.u32 %v50, 4294901760
    %76 = vmatpush.msra.mxu0 %v75
    %v77 = vand.u32 %v49, 4294901760
    %78 = vmatpush.msra.mxu0 %v77
    %v79 = vand.u32 %v48, 4294901760
    %80 = vmatpush.msra.mxu0 %v79
    %v81 = vand.u32 %v47, 4294901760
    %82 = vmatpush.msra.mxu0 %v81
    %v83 = vand.u32 %v46, 4294901760
    %84 = vmatpush.msra.mxu0 %v83
    %v85 = vand.u32 %v45, 4294901760
    %86 = vmatpush.msra.mxu0 %v85
    %v87 = vand.u32 %v44, 4294901760
    %88 = vmatpush.msra.mxu0 %v87
    %v89 = vand.u32 %v43, 4294901760
    %90 = vmatpush.msra.mxu0 %v89
    %v91 = vand.u32 %v42, 4294901760
    %v92 = vsub.f32 %v42, %v91
    %v93 = vand.u32 %v92, 4294901760
    %v94 = vsub.f32 %v92, %v93
    %v95 = vand.u32 %v94, 4294901760
    %96 = vmatmul.f32.gmra.mxu0 %v95
    %v97 = vpop.f32.mrf.mxu0
    %v98 = vadd.f32 0.0, %v97
    %99 = vdwg.mxu0
    %v100 = vand.u32 %v58, 4294901760
    %v101 = vsub.f32 %v58, %v100
    %v102 = vand.u32 %v101, 4294901760
    %v103 = vsub.f32 %v101, %v102
    %v104 = vand.u32 %v103, 4294901760
    %105 = vmatpush.msra.mxu0 %v104
    %v106 = vand.u32 %v57, 4294901760
    %v107 = vsub.f32 %v57, %v106
    %v108 = vand.u32 %v107, 4294901760
    %v109 = vsub.f32 %v107, %v108
    %v110 = vand.u32 %v109, 4294901760
    %111 = vmatpush.msra.mxu0 %v110
    %v112 = vand.u32 %v56, 4294901760
    %v113 = vsub.f32 %v56, %v112
    %v114 = vand.u32 %v113, 4294901760
    %v115 = vsub.f32 %v113, %v114
    %v116 = vand.u32 %v115, 4294901760
    %117 = vmatpush.msra.mxu0 %v116
    %v118 = vand.u32 %v55, 4294901760
    %v119 = vsub.f32 %v55, %v118
    %v120 = vand.u32 %v119, 4294901760
    %v121 = vsub.f32 %v119, %v120
    %v122 = vand.u32 %v121, 4294901760
    %123 = vmatpush.msra.mxu0 %v122
    %v124 = vand.u32 %v54, 4294901760
    %v125 = vsub.f32 %v54, %v124
    %v126 = vand.u32 %v125, 4294901760
    %v127 = vsub.f32 %v125, %v126
    %v128 = vand.u32 %v127, 4294901760
    %129 = vmatpush.msra.mxu0 %v128
    %v130 = vand.u32 %v53, 4294901760
    %v131 = vsub.f32 %v53, %v130
    %v132 = vand.u32 %v131, 4294901760
    %v133 = vsub.f32 %v131, %v132
    %v134 = vand.u32 %v133, 4294901760
    %135 = vmatpush.msra.mxu0 %v134
    %v136 = vand.u32 %v52, 4294901760
    %v137 = vsub.f32 %v52, %v136
    %v138 = vand.u32 %v137, 4294901760
    %v139 = vsub.f32 %v137, %v138
    %v140 = vand.u32 %v139, 4294901760
    %141 = vmatpush.msra.mxu0 %v140
    %v142 = vand.u32 %v51, 4294901760
    %v143 = vsub.f32 %v51, %v142
    %v144 = vand.u32 %v143, 4294901760
    %v145 = vsub.f32 %v143, %v144
    %v146 = vand.u32 %v145, 4294901760
    %147 = vmatpush.msra.mxu0 %v146
    %v148 = vand.u32 %v50, 4294901760
    %v149 = vsub.f32 %v50, %v148
    %v150 = vand.u32 %v149, 4294901760
    %v151 = vsub.f32 %v149, %v150
    %v152 = vand.u32 %v151, 4294901760
    %153 = vmatpush.msra.mxu0 %v152
    %v154 = vand.u32 %v49, 4294901760
    %v155 = vsub.f32 %v49, %v154
    %v156 = vand.u32 %v155, 4294901760
    %v157 = vsub.f32 %v155, %v156
    %v158 = vand.u32 %v157, 4294901760
    %159 = vmatpush.msra.mxu0 %v158
    %v160 = vand.u32 %v48, 4294901760
    %v161 = vsub.f32 %v48, %v160
    %v162 = vand.u32 %v161, 4294901760
    %v163 = vsub.f32 %v161, %v162
    %v164 = vand.u32 %v163, 4294901760
    %165 = vmatpush.msra.mxu0 %v164
    %v166 = vand.u32 %v47, 4294901760
    %v167 = vsub.f32 %v47, %v166
    %v168 = vand.u32 %v167, 4294901760
    %v169 = vsub.f32 %v167, %v168
    %v170 = vand.u32 %v169, 4294901760
    %171 = vmatpush.msra.mxu0 %v170
    %v172 = vand.u32 %v46, 4294901760
    %v173 = vsub.f32 %v46, %v172
    %v174 = vand.u32 %v173, 4294901760
    %v175 = vsub.f32 %v173, %v174
    %v176 = vand.u32 %v175, 4294901760
    %177 = vmatpush.msra.mxu0 %v176
    %v178 = vand.u32 %v45, 4294901760
    %v179 = vsub.f32 %v45, %v178
    %v180 = vand.u32 %v179, 4294901760
    %v181 = vsub.f32 %v179, %v180
    %v182 = vand.u32 %v181, 4294901760
    %183 = vmatpush.msra.mxu0 %v182
    %v184 = vand.u32 %v44, 4294901760
    %v185 = vsub.f32 %v44, %v184
    %v186 = vand.u32 %v185, 4294901760
    %v187 = vsub.f32 %v185, %v186
    %v188 = vand.u32 %v187, 4294901760
    %189 = vmatpush.msra.mxu0 %v188
    %v190 = vand.u32 %v43, 4294901760
    %v191 = vsub.f32 %v43, %v190
    %v192 = vand.u32 %v191, 4294901760
    %v193 = vsub.f32 %v191, %v192
    %v194 = vand.u32 %v193, 4294901760
    %195 = vmatpush.msra.mxu0 %v194
    %v196 = vand.u32 %v42, 4294901760
    %197 = vmatmul.f32.gmra.mxu0 %v196
    %v198 = vpop.f32.mrf.mxu0
    %v199 = vadd.f32 %v98, %v198
    %200 = vdwg.mxu0
    %v201 = vand.u32 %v58, 4294901760
    %v202 = vsub.f32 %v58, %v201
    %203 = vmatpush.msra.mxu0 %v202
    %v204 = vand.u32 %v57, 4294901760
    %v205 = vsub.f32 %v57, %v204
    %206 = vmatpush.msra.mxu0 %v205
    %v207 = vand.u32 %v56, 4294901760
    %v208 = vsub.f32 %v56, %v207
    %209 = vmatpush.msra.mxu0 %v208
    %v210 = vand.u32 %v55, 4294901760
    %v211 = vsub.f32 %v55, %v210
    %212 = vmatpush.msra.mxu0 %v211
    %v213 = vand.u32 %v54, 4294901760
    %v214 = vsub.f32 %v54, %v213
    %215 = vmatpush.msra.mxu0 %v214
    %v216 = vand.u32 %v53, 4294901760
    %v217 = vsub.f32 %v53, %v216
    %218 = vmatpush.msra.mxu0 %v217
    %v219 = vand.u32 %v52, 4294901760
    %v220 = vsub.f32 %v52, %v219
    %221 = vmatpush.msra.mxu0 %v220
    %v222 = vand.u32 %v51, 4294901760
    %v223 = vsub.f32 %v51, %v222
    %224 = vmatpush.msra.mxu0 %v223
    %v225 = vand.u32 %v50, 4294901760
    %v226 = vsub.f32 %v50, %v225
    %227 = vmatpush.msra.mxu0 %v226
    %v228 = vand.u32 %v49, 4294901760
    %v229 = vsub.f32 %v49, %v228
    %230 = vmatpush.msra.mxu0 %v229
    %v231 = vand.u32 %v48, 4294901760
    %v232 = vsub.f32 %v48, %v231
    %233 = vmatpush.msra.mxu0 %v232
    %v234 = vand.u32 %v47, 4294901760
    %v235 = vsub.f32 %v47, %v234
    %236 = vmatpush.msra.mxu0 %v235
    %v237 = vand.u32 %v46, 4294901760
    %v238 = vsub.f32 %v46, %v237
    %239 = vmatpush.msra.mxu0 %v238
    %v240 = vand.u32 %v45, 4294901760
    %v241 = vsub.f32 %v45, %v240
    %242 = vmatpush.msra.mxu0 %v241
    %v243 = vand.u32 %v44, 4294901760
    %v244 = vsub.f32 %v44, %v243
    %245 = vmatpush.msra.mxu0 %v244
    %v246 = vand.u32 %v43, 4294901760
    %v247 = vsub.f32 %v43, %v246
    %248 = vmatpush.msra.mxu0 %v247
    %v249 = vand.u32 %v42, 4294901760
    %v250 = vsub.f32 %v42, %v249
    %251 = vmatmul.f32.gmra.mxu0 %v250
    %v252 = vpop.f32.mrf.mxu0
    %v253 = vadd.f32 %v199, %v252
    %254 = vdwg.mxu0
    %v255 = vand.u32 %v58, 4294901760
    %256 = vmatpush.msra.mxu0 %v255
    %v257 = vand.u32 %v57, 4294901760
    %258 = vmatpush.msra.mxu0 %v257
    %v259 = vand.u32 %v56, 4294901760
    %260 = vmatpush.msra.mxu0 %v259
    %v261 = vand.u32 %v55, 4294901760
    %262 = vmatpush.msra.mxu0 %v261
    %v263 = vand.u32 %v54, 4294901760
    %264 = vmatpush.msra.mxu0 %v263
    %v265 = vand.u32 %v53, 4294901760
    %266 = vmatpush.msra.mxu0 %v265
    %v267 = vand.u32 %v52, 4294901760
    %268 = vmatpush.msra.mxu0 %v267
    %v269 = vand.u32 %v51, 4294901760
    %270 = vmatpush.msra.mxu0 %v269
    %v271 = vand.u32 %v50, 4294901760
    %272 = vmatpush.msra.mxu0 %v271
    %v273 = vand.u32 %v49, 4294901760
    %274 = vmatpush.msra.mxu0 %v273
    %v275 = vand.u32 %v48, 4294901760
    %276 = vmatpush.msra.mxu0 %v275
    %v277 = vand.u32 %v47, 4294901760
    %278 = vmatpush.msra.mxu0 %v277
    %v279 = vand.u32 %v46, 4294901760
    %280 = vmatpush.msra.mxu0 %v279
    %v281 = vand.u32 %v45, 4294901760
    %282 = vmatpush.msra.mxu0 %v281
    %v283 = vand.u32 %v44, 4294901760
    %284 = vmatpush.msra.mxu0 %v283
    %v285 = vand.u32 %v43, 4294901760
    %286 = vmatpush.msra.mxu0 %v285
    %v287 = vand.u32 %v42, 4294901760
    %v288 = vsub.f32 %v42, %v287
    %v289 = vand.u32 %v288, 4294901760
    %290 = vmatmul.f32.gmra.mxu0 %v289
    %v291 = vpop.f32.mrf.mxu0
    %v292 = vadd.f32 %v253, %v291
    %293 = vdwg.mxu0
    %v294 = vand.u32 %v58, 4294901760
    %v295 = vsub.f32 %v58, %v294
    %v296 = vand.u32 %v295, 4294901760
    %297 = vmatpush.msra.mxu0 %v296
    %v298 = vand.u32 %v57, 4294901760
    %v299 = vsub.f32 %v57, %v298
    %v300 = vand.u32 %v299, 4294901760
    %301 = vmatpush.msra.mxu0 %v300
    %v302 = vand.u32 %v56, 4294901760
    %v303 = vsub.f32 %v56, %v302
    %v304 = vand.u32 %v303, 4294901760
    %305 = vmatpush.msra.mxu0 %v304
    %v306 = vand.u32 %v55, 4294901760
    %v307 = vsub.f32 %v55, %v306
    %v308 = vand.u32 %v307, 4294901760
    %309 = vmatpush.msra.mxu0 %v308
    %v310 = vand.u32 %v54, 4294901760
    %v311 = vsub.f32 %v54, %v310
    %v312 = vand.u32 %v311, 4294901760
    %313 = vmatpush.msra.mxu0 %v312
    %v314 = vand.u32 %v53, 4294901760
    %v315 = vsub.f32 %v53, %v314
    %v316 = vand.u32 %v315, 4294901760
    %317 = vmatpush.msra.mxu0 %v316
    %v318 = vand.u32 %v52, 4294901760
    %v319 = vsub.f32 %v52, %v318
    %v320 = vand.u32 %v319, 4294901760
    %321 = vmatpush.msra.mxu0 %v320
    %v322 = vand.u32 %v51, 4294901760
    %v323 = vsub.f32 %v51, %v322
    %v324 = vand.u32 %v323, 4294901760
    %325 = vmatpush.msra.mxu0 %v324
    %v326 = vand.u32 %v50, 4294901760
    %v327 = vsub.f32 %v50, %v326
    %v328 = vand.u32 %v327, 4294901760
    %329 = vmatpush.msra.mxu0 %v328
    %v330 = vand.u32 %v49, 4294901760
    %v331 = vsub.f32 %v49, %v330
    %v332 = vand.u32 %v331, 4294901760
    %333 = vmatpush.msra.mxu0 %v332
    %v334 = vand.u32 %v48, 4294901760
    %v335 = vsub.f32 %v48, %v334
    %v336 = vand.u32 %v335, 4294901760
    %337 = vmatpush.msra.mxu0 %v336
    %v338 = vand.u32 %v47, 4294901760
    %v339 = vsub.f32 %v47, %v338
    %v340 = vand.u32 %v339, 4294901760
    %341 = vmatpush.msra.mxu0 %v340
    %v342 = vand.u32 %v46, 4294901760
    %v343 = vsub.f32 %v46, %v342
    %v344 = vand.u32 %v343, 4294901760
    %345 = vmatpush.msra.mxu0 %v344
    %v346 = vand.u32 %v45, 4294901760
    %v347 = vsub.f32 %v45, %v346
    %v348 = vand.u32 %v347, 4294901760
    %349 = vmatpush.msra.mxu0 %v348
    %v350 = vand.u32 %v44, 4294901760
    %v351 = vsub.f32 %v44, %v350
    %v352 = vand.u32 %v351, 4294901760
    %353 = vmatpush.msra.mxu0 %v352
    %v354 = vand.u32 %v43, 4294901760
    %v355 = vsub.f32 %v43, %v354
    %v356 = vand.u32 %v355, 4294901760
    %357 = vmatpush.msra.mxu0 %v356
    %v358 = vand.u32 %v42, 4294901760
    %359 = vmatmul.f32.gmra.mxu0 %v358
    %v360 = vpop.f32.mrf.mxu0
    %v361 = vadd.f32 %v292, %v360
    %362 = vdwg.mxu0
    %v363 = vand.u32 %v58, 4294901760
    %364 = vmatpush.msra.mxu0 %v363
    %v365 = vand.u32 %v57, 4294901760
    %366 = vmatpush.msra.mxu0 %v365
    %v367 = vand.u32 %v56, 4294901760
    %368 = vmatpush.msra.mxu0 %v367
    %v369 = vand.u32 %v55, 4294901760
    %370 = vmatpush.msra.mxu0 %v369
    %v371 = vand.u32 %v54, 4294901760
    %372 = vmatpush.msra.mxu0 %v371
    %v373 = vand.u32 %v53, 4294901760
    %374 = vmatpush.msra.mxu0 %v373
    %v375 = vand.u32 %v52, 4294901760
    %376 = vmatpush.msra.mxu0 %v375
    %v377 = vand.u32 %v51, 4294901760
    %378 = vmatpush.msra.mxu0 %v377
    %v379 = vand.u32 %v50, 4294901760
    %380 = vmatpush.msra.mxu0 %v379
    %v381 = vand.u32 %v49, 4294901760
    %382 = vmatpush.msra.mxu0 %v381
    %v383 = vand.u32 %v48, 4294901760
    %384 = vmatpush.msra.mxu0 %v383
    %v385 = vand.u32 %v47, 4294901760
    %386 = vmatpush.msra.mxu0 %v385
    %v387 = vand.u32 %v46, 4294901760
    %388 = vmatpush.msra.mxu0 %v387
    %v389 = vand.u32 %v45, 4294901760
    %390 = vmatpush.msra.mxu0 %v389
    %v391 = vand.u32 %v44, 4294901760
    %392 = vmatpush.msra.mxu0 %v391
    %v393 = vand.u32 %v43, 4294901760
    %394 = vmatpush.msra.mxu0 %v393
    %v395 = vand.u32 %v42, 4294901760
    %396 = vmatmul.f32.gmra.mxu0 %v395
    %v397 = vpop.f32.mrf.mxu0
    %v398 = vadd.f32 %v361, %v397
    %399 = vdwg.mxu0
    %400 = vst [vmem:[#allocation7] sm:$0xff] %v398
    // Predicated region
    $region18: #{tpu_custom_call.1} parent=1 // pred_check
      _
    $region19: #{tpu_custom_call.1} parent=1 // pred_check_branch
      %402 = sbr.rel (0) target = $region21
    $region20: #{tpu_custom_call.1} parent=1 // pred_region
      %404 = vsyncadd [#allocation4], 0
      %s406 = sshll.u32 [#allocation7], 4
      %s407 = int_to_ptr.vmem [resolvable:$true] %s406
      %s408 = sshll.u32 %s2, 4
      %s409 = int_to_ptr.hbm [resolvable:$true] %s408
      %411 = dma.vmem_to_hbm [thread:$0]  %s407, 128, %s409, [#allocation4]
    $region21: #{tpu_custom_call.1} parent=1 // pred_fallthru
      _
    // Predicated region
    $region22: #{tpu_custom_call.1} parent=1 // pred_check
      _
    $region23: #{tpu_custom_call.1} parent=1 // pred_check_branch
      %413 = sbr.rel (0) target = $region25
    $region24: #{tpu_custom_call.1} parent=1 // pred_region
      %415 = dma.done [#allocation4], 128
    $region25: #{tpu_custom_call.1} parent=1 // pred_fallthru
      _
    %416 = vsyncpa [#allocation3], 1
    %417 = vsyncpa [#allocation6], 1
    %418 = vsyncpa [#allocation4], 1

// kernel: tpu_custom_call.1
$region0: #{tpu_custom_call.1}
  #allocation0 [shape = 'u32[]', space=smem, size = 0x4, offset = 0x4, fixed_abs, tag = 'smem constant byte address 0x4 - core index']
  #allocation1 [shape = 'u32[72,128]{1,0:T(1,128)}', space=vmem, size = 0x9000, scoped, tag = 'internal scratch']
  %s0 = inlined_call_operand.hbm [shape: f32[2,8,1024], index: 0, kind: input, shape index: {}]
  %s1 = inlined_call_operand.vmem [shape: f32[8,72], index: 1, kind: input, shape index: {}]
  %s2 = inlined_call_operand.vmem [shape: f32[8,72], index: 2, kind: input, shape index: {}]
  %s3 = inlined_call_operand.vmem [shape: f32[8,1], index: 3, kind: input, shape index: {}]
  %s4 = inlined_call_operand.vmem [shape: f32[8,1], index: 4, kind: input, shape index: {}]
  %s5 = inlined_call_operand.vmem [shape: f32[8,1], index: 5, kind: input, shape index: {}]
  %s6 = inlined_call_operand.vmem [shape: f32[8,1], index: 6, kind: input, shape index: {}]
  %s7 = inlined_call_operand.hbm [shape: f32[72,1024], index: 7, kind: input, shape index: {}]
  %s8 = inlined_call_operand.hbm [shape: f32[72,256], index: 8, kind: input, shape index: {}]
  %s9 = inlined_call_operand.hbm [shape: f32[1024,256], index: 9, kind: input, shape index: {}]
  %s10 = inlined_call_operand.hbm [shape: f32[1024,256], index: 10, kind: input, shape index: {}]
  %s11 = inlined_call_operand.hbm [shape: f32[2,8,256], index: 11, kind: output, shape index: {}]
  %s12 = sld [smem:[#allocation0]]
  $region97: #{tpu_custom_call.1} parent=0
    _
  %s14 = ssub.s32 1, %s12
  %s15 = scalar_select 0, %s14, %s12
  $region1: #{tpu_custom_call.1} parent=0
    #allocation2 [shape = 'u8[65536]{0}', space=vmem, size = 0x10000, scoped, tag = 'input window, operand 0']
    #allocation3 [shape = 's32[2]{0}', space=sflag, size = 0x8, scoped, tag = 'scoped memory for tpu_custom_call.1']
    #allocation4 [shape = 's32[2]{0}', space=sflag, size = 0x8, scoped, tag = 'scoped memory for tpu_custom_call.1']
    #allocation5 [shape = 'u8[294912]{0}', space=vmem, size = 0x48000, scoped, tag = 'input window, operand 7, single buffered']
    #allocation6 [shape = 's32[1]{0}', space=sflag, size = 0x4, scoped, tag = 'scoped memory for tpu_custom_call.1']
    #allocation7 [shape = 'u8[73728]{0}', space=vmem, size = 0x12000, scoped, tag = 'input window, operand 8, single buffered']
    #allocation8 [shape = 'u8[1048576]{0}', space=vmem, size = 0x100000, scoped, tag = 'input window, operand 9, single buffered']
    #allocation9 [shape = 's32[1]{0}', space=sflag, size = 0x4, scoped, tag = 'scoped memory for tpu_custom_call.1']
    #allocation10 [shape = 'u8[1048576]{0}', space=vmem, size = 0x100000, scoped, tag = 'input window, operand 10, single buffered']
    #allocation11 [shape = 'u8[16384]{0}', space=vmem, size = 0x4000, scoped, tag = 'output window, operand 0']
    %16 = vsyncpa [#allocation3], 0
    %s17 = scalar_lea.sflag [#allocation3], 1
    %18 = vsyncpa %s17, 0
    %19 = vsyncpa [#allocation6], 0
    %20 = vsyncpa [#allocation9], 0
    %21 = vsyncpa [#allocation4], 0
    %s22 = scalar_lea.sflag [#allocation4], 1
    %23 = vsyncpa %s22, 0
    loop: start=0, step=1, limit=4
    $region2: #{tpu_custom_call.1} parent=1 // loop_pre_header
      _
    $region3: #{tpu_custom_call.1} parent=1 // loop_header
      %s25 = sphi 0, %s29
      %p26 = scmp.ge.s32.totalorder %s25, 4
      %s35 = sphi 0, %s37
      %s38 = sphi 0, %s35
      %s39 = sphi 0, %s38
      %s55 = sphi 0, %s39
      %s59 = sphi 0, %s59
      %s61 = sphi 0, %s59
      %s62 = sphi 0, %s61
      %s76 = sphi 0, %s62
      %s80 = sphi 0, %s80
      %s82 = sphi 0, %s80
      %s83 = sphi 0, %s82
      %s97 = sphi 0, %s83
      %s101 = sphi 0, %s101
      %s103 = sphi 0, %s101
      %s104 = sphi 0, %s103
      %s118 = sphi 0, %s104
      %s122 = sphi 0, %s122
      %s124 = sphi 0, %s122
      %s125 = sphi 0, %s124
      %s139 = sphi 0, %s125
      %s143 = sphi 0, %s143
      %s145 = sphi 0, %s143
      %s146 = sphi 0, %s145
      %s160 = sphi 0, %s146
      %s164 = sphi 0, %s164
      %s166 = sphi 0, %s164
      %s167 = sphi 0, %s166
      %s181 = sphi 0, %s167
      %s185 = sphi 0, %s185
      %s187 = sphi 0, %s185
      %s188 = sphi 0, %s187
      %s202 = sphi 0, %s188
      %s206 = sphi 0, %s206
      %s208 = sphi 0, %s206
      %s209 = sphi 0, %s208
      %s223 = sphi 0, %s209
      %s227 = sphi 0, %s227
      %s229 = sphi 0, %s227
      %s230 = sphi 0, %s229
      %s244 = sphi 0, %s230
      %s248 = sphi 0, %s248
      %s250 = sphi 0, %s248
      %s251 = sphi 0, %s250
      %s265 = sphi 0, %s251
      %s271 = sphi 0, %s273
      %s274 = sphi 0, %s271
      %s275 = sphi 0, %s274
      %s291 = sphi 0, %s275
    $region4: #{tpu_custom_call.1} parent=1 // loop_header_branch
      %28 = sbr.rel (%p26) target = $region8
    $region5: #{tpu_custom_call.1} parent=1 // loop_body
      %s30 = ssub.s32 %s25, 1
      %s31 = ssub.s32 %s25, 2
      %s32 = sadd.s32 %s25, 1
      %s33 = ssub.s32 %s25, %s32
      %p34 = scmp.eq.s32.totalorder %s33, 0
      %s36 = sadd.s32 %s35, 1
      %s37 = scalar_select %p34, %s35, %s36
      %p40 = pneg %p34
      %p41 = scmp.eq.s32.totalorder %s25, 1
      %p42 = por %p40, %p41
      %p43 = scmp.ne.s32.totalorder %s35, %s38
      %p44 = scmp.eq.s32.totalorder %s25, 0
      %p45 = por %p43, %p44
      %p46 = scmp.ne.s32.totalorder %s35, %s38
      %p47 = scmp.eq.s32.totalorder %s30, 1
      %p48 = por %p46, %p47
      %p49 = scmp.ne.s32.totalorder %s38, %s39
      %p50 = scmp.eq.s32.totalorder %s30, 0
      %p51 = por %p49, %p50
      %p52 = scmp.ne.s32.totalorder %s38, %s39
      %p53 = scmp.eq.s32.totalorder %s31, 1
      %p54 = por %p52, %p53
      %p56 = scmp.ne.s32.totalorder %s39, %s55
      %p57 = scmp.eq.s32.totalorder %s31, 0
      %p58 = por %p56, %p57
      %s60 = sadd.s32 %s59, 1
      %p63 = scmp.eq.s32.totalorder %s25, 1
      %p64 = scmp.ne.s32.totalorder %s59, %s61
      %p65 = scmp.eq.s32.totalorder %s25, 0
      %p66 = por %p64, %p65
      %p67 = scmp.ne.s32.totalorder %s59, %s61
      %p68 = scmp.eq.s32.totalorder %s30, 1
      %p69 = por %p67, %p68
      %p70 = scmp.ne.s32.totalorder %s61, %s62
      %p71 = scmp.eq.s32.totalorder %s30, 0
      %p72 = por %p70, %p71
      %p73 = scmp.ne.s32.totalorder %s61, %s62
      %p74 = scmp.eq.s32.totalorder %s31, 1
      %p75 = por %p73, %p74
      %p77 = scmp.ne.s32.totalorder %s62, %s76
      %p78 = scmp.eq.s32.totalorder %s31, 0
      %p79 = por %p77, %p78
      %s81 = sadd.s32 %s80, 1
      %p84 = scmp.eq.s32.totalorder %s25, 1
      %p85 = scmp.ne.s32.totalorder %s80, %s82
      %p86 = scmp.eq.s32.totalorder %s25, 0
      %p87 = por %p85, %p86
      %p88 = scmp.ne.s32.totalorder %s80, %s82
      %p89 = scmp.eq.s32.totalorder %s30, 1
      %p90 = por %p88, %p89
      %p91 = scmp.ne.s32.totalorder %s82, %s83
      %p92 = scmp.eq.s32.totalorder %s30, 0
      %p93 = por %p91, %p92
      %p94 = scmp.ne.s32.totalorder %s82, %s83
      %p95 = scmp.eq.s32.totalorder %s31, 1
      %p96 = por %p94, %p95
      %p98 = scmp.ne.s32.totalorder %s83, %s97
      %p99 = scmp.eq.s32.totalorder %s31, 0
      %p100 = por %p98, %p99
      %s102 = sadd.s32 %s101, 1
      %p105 = scmp.eq.s32.totalorder %s25, 1
      %p106 = scmp.ne.s32.totalorder %s101, %s103
      %p107 = scmp.eq.s32.totalorder %s25, 0
      %p108 = por %p106, %p107
      %p109 = scmp.ne.s32.totalorder %s101, %s103
      %p110 = scmp.eq.s32.totalorder %s30, 1
      %p111 = por %p109, %p110
      %p112 = scmp.ne.s32.totalorder %s103, %s104
      %p113 = scmp.eq.s32.totalorder %s30, 0
      %p114 = por %p112, %p113
      %p115 = scmp.ne.s32.totalorder %s103, %s104
      %p116 = scmp.eq.s32.totalorder %s31, 1
      %p117 = por %p115, %p116
      %p119 = scmp.ne.s32.totalorder %s104, %s118
      %p120 = scmp.eq.s32.totalorder %s31, 0
      %p121 = por %p119, %p120
      %s123 = sadd.s32 %s122, 1
      %p126 = scmp.eq.s32.totalorder %s25, 1
      %p127 = scmp.ne.s32.totalorder %s122, %s124
      %p128 = scmp.eq.s32.totalorder %s25, 0
      %p129 = por %p127, %p128
      %p130 = scmp.ne.s32.totalorder %s122, %s124
      %p131 = scmp.eq.s32.totalorder %s30, 1
      %p132 = por %p130, %p131
      %p133 = scmp.ne.s32.totalorder %s124, %s125
      %p134 = scmp.eq.s32.totalorder %s30, 0
      %p135 = por %p133, %p134
      %p136 = scmp.ne.s32.totalorder %s124, %s125
      %p137 = scmp.eq.s32.totalorder %s31, 1
      %p138 = por %p136, %p137
      %p140 = scmp.ne.s32.totalorder %s125, %s139
      %p141 = scmp.eq.s32.totalorder %s31, 0
      %p142 = por %p140, %p141
      %s144 = sadd.s32 %s143, 1
      %p147 = scmp.eq.s32.totalorder %s25, 1
      %p148 = scmp.ne.s32.totalorder %s143, %s145
      %p149 = scmp.eq.s32.totalorder %s25, 0
      %p150 = por %p148, %p149
      %p151 = scmp.ne.s32.totalorder %s143, %s145
      %p152 = scmp.eq.s32.totalorder %s30, 1
      %p153 = por %p151, %p152
      %p154 = scmp.ne.s32.totalorder %s145, %s146
      %p155 = scmp.eq.s32.totalorder %s30, 0
      %p156 = por %p154, %p155
      %p157 = scmp.ne.s32.totalorder %s145, %s146
      %p158 = scmp.eq.s32.totalorder %s31, 1
      %p159 = por %p157, %p158
      %p161 = scmp.ne.s32.totalorder %s146, %s160
      %p162 = scmp.eq.s32.totalorder %s31, 0
      %p163 = por %p161, %p162
      %s165 = sadd.s32 %s164, 1
      %p168 = scmp.eq.s32.totalorder %s25, 1
      %p169 = scmp.ne.s32.totalorder %s164, %s166
      %p170 = scmp.eq.s32.totalorder %s25, 0
      %p171 = por %p169, %p170
      %p172 = scmp.ne.s32.totalorder %s164, %s166
      %p173 = scmp.eq.s32.totalorder %s30, 1
      %p174 = por %p172, %p173
      %p175 = scmp.ne.s32.totalorder %s166, %s167
      %p176 = scmp.eq.s32.totalorder %s30, 0
      %p177 = por %p175, %p176
      %p178 = scmp.ne.s32.totalorder %s166, %s167
      %p179 = scmp.eq.s32.totalorder %s31, 1
      %p180 = por %p178, %p179
      %p182 = scmp.ne.s32.totalorder %s167, %s181
      %p183 = scmp.eq.s32.totalorder %s31, 0
      %p184 = por %p182, %p183
      %s186 = sadd.s32 %s185, 1
      %p189 = scmp.eq.s32.totalorder %s25, 1
      %p190 = scmp.ne.s32.totalorder %s185, %s187
      %p191 = scmp.eq.s32.totalorder %s25, 0
      %p192 = por %p190, %p191
      %p193 = scmp.ne.s32.totalorder %s185, %s187
      %p194 = scmp.eq.s32.totalorder %s30, 1
      %p195 = por %p193, %p194
      %p196 = scmp.ne.s32.totalorder %s187, %s188
      %p197 = scmp.eq.s32.totalorder %s30, 0
      %p198 = por %p196, %p197
      %p199 = scmp.ne.s32.totalorder %s187, %s188
      %p200 = scmp.eq.s32.totalorder %s31, 1
      %p201 = por %p199, %p200
      %p203 = scmp.ne.s32.totalorder %s188, %s202
      %p204 = scmp.eq.s32.totalorder %s31, 0
      %p205 = por %p203, %p204
      %s207 = sadd.s32 %s206, 1
      %p210 = scmp.eq.s32.totalorder %s25, 1
      %p211 = scmp.ne.s32.totalorder %s206, %s208
      %p212 = scmp.eq.s32.totalorder %s25, 0
      %p213 = por %p211, %p212
      %p214 = scmp.ne.s32.totalorder %s206, %s208
      %p215 = scmp.eq.s32.totalorder %s30, 1
      %p216 = por %p214, %p215
      %p217 = scmp.ne.s32.totalorder %s208, %s209
      %p218 = scmp.eq.s32.totalorder %s30, 0
      %p219 = por %p217, %p218
      %p220 = scmp.ne.s32.totalorder %s208, %s209
      %p221 = scmp.eq.s32.totalorder %s31, 1
      %p222 = por %p220, %p221
      %p224 = scmp.ne.s32.totalorder %s209, %s223
      %p225 = scmp.eq.s32.totalorder %s31, 0
      %p226 = por %p224, %p225
      %s228 = sadd.s32 %s227, 1
      %p231 = scmp.eq.s32.totalorder %s25, 1
      %p232 = scmp.ne.s32.totalorder %s227, %s229
      %p233 = scmp.eq.s32.totalorder %s25, 0
      %p234 = por %p232, %p233
      %p235 = scmp.ne.s32.totalorder %s227, %s229
      %p236 = scmp.eq.s32.totalorder %s30, 1
      %p237 = por %p235, %p236
      %p238 = scmp.ne.s32.totalorder %s229, %s230
      %p239 = scmp.eq.s32.totalorder %s30, 0
      %p240 = por %p238, %p239
      %p241 = scmp.ne.s32.totalorder %s229, %s230
      %p242 = scmp.eq.s32.totalorder %s31, 1
      %p243 = por %p241, %p242
      %p245 = scmp.ne.s32.totalorder %s230, %s244
      %p246 = scmp.eq.s32.totalorder %s31, 0
      %p247 = por %p245, %p246
      %s249 = sadd.s32 %s248, 1
      %p252 = scmp.eq.s32.totalorder %s25, 1
      %p253 = scmp.ne.s32.totalorder %s248, %s250
      %p254 = scmp.eq.s32.totalorder %s25, 0
      %p255 = por %p253, %p254
      %p256 = scmp.ne.s32.totalorder %s248, %s250
      %p257 = scmp.eq.s32.totalorder %s30, 1
      %p258 = por %p256, %p257
      %p259 = scmp.ne.s32.totalorder %s250, %s251
      %p260 = scmp.eq.s32.totalorder %s30, 0
      %p261 = por %p259, %p260
      %p262 = scmp.ne.s32.totalorder %s250, %s251
      %p263 = scmp.eq.s32.totalorder %s31, 1
      %p264 = por %p262, %p263
      %p266 = scmp.ne.s32.totalorder %s251, %s265
      %p267 = scmp.eq.s32.totalorder %s31, 0
      %p268 = por %p266, %p267
      %s269 = ssub.s32 %s25, %s32
      %p270 = scmp.eq.s32.totalorder %s269, 0
      %s272 = sadd.s32 %s271, 1
      %s273 = scalar_select %p270, %s271, %s272
      %p276 = pneg %p270
      %p277 = scmp.eq.s32.totalorder %s25, 1
      %p278 = por %p276, %p277
      %p279 = scmp.ne.s32.totalorder %s271, %s274
      %p280 = scmp.eq.s32.totalorder %s25, 0
      %p281 = por %p279, %p280
      %p282 = scmp.ne.s32.totalorder %s271, %s274
      %p283 = scmp.eq.s32.totalorder %s30, 1
      %p284 = por %p282, %p283
      %p285 = scmp.ne.s32.totalorder %s274, %s275
      %p286 = scmp.eq.s32.totalorder %s30, 0
      %p287 = por %p285, %p286
      %p288 = scmp.ne.s32.totalorder %s274, %s275
      %p289 = scmp.eq.s32.totalorder %s31, 1
      %p290 = por %p288, %p289
      %p292 = scmp.ne.s32.totalorder %s275, %s291
      %p293 = scmp.eq.s32.totalorder %s31, 0
      %p294 = por %p292, %p293
      %p295 = scmp.le.s32.totalorder 1, %s25
      %p296 = scmp.lt.s32.totalorder %s25, 3
      %p297 = pnand %p295, %p296
      %p298 = pneg %p297
      // Predicated region
      $region9: #{tpu_custom_call.1} parent=5 // pred_check
        _
      $region10: #{tpu_custom_call.1} parent=5 // pred_check_branch
        %300 = sbr.rel (%p297) target = $region12
      $region11: #{tpu_custom_call.1} parent=5 // pred_region
        %s301 = ssub.s32 %s25, 1
        // Predicated region
        $region13: #{tpu_custom_call.1} parent=11 // pred_check
          %p302 = pneg %p72
        $region14: #{tpu_custom_call.1} parent=11 // pred_check_branch
          %304 = sbr.rel (%p302) target = $region16
        $region15: #{tpu_custom_call.1} parent=11 // pred_region
          _
        $region16: #{tpu_custom_call.1} parent=11 // pred_fallthru
          _
        // Predicated region
        $region17: #{tpu_custom_call.1} parent=11 // pred_check
          %p305 = pneg %p93
        $region18: #{tpu_custom_call.1} parent=11 // pred_check_branch
          %307 = sbr.rel (%p305) target = $region20
        $region19: #{tpu_custom_call.1} parent=11 // pred_region
          _
        $region20: #{tpu_custom_call.1} parent=11 // pred_fallthru
          _
        // Predicated region
        $region21: #{tpu_custom_call.1} parent=11 // pred_check
          %p308 = pneg %p114
        $region22: #{tpu_custom_call.1} parent=11 // pred_check_branch
          %310 = sbr.rel (%p308) target = $region24
        $region23: #{tpu_custom_call.1} parent=11 // pred_region
          _
        $region24: #{tpu_custom_call.1} parent=11 // pred_fallthru
          _
        // Predicated region
        $region25: #{tpu_custom_call.1} parent=11 // pred_check
          %p311 = pneg %p135
        $region26: #{tpu_custom_call.1} parent=11 // pred_check_branch
          %313 = sbr.rel (%p311) target = $region28
        $region27: #{tpu_custom_call.1} parent=11 // pred_region
          _
        $region28: #{tpu_custom_call.1} parent=11 // pred_fallthru
          _
        // Predicated region
        $region29: #{tpu_custom_call.1} parent=11 // pred_check
          %p314 = pneg %p156
        $region30: #{tpu_custom_call.1} parent=11 // pred_check_branch
          %316 = sbr.rel (%p314) target = $region32
        $region31: #{tpu_custom_call.1} parent=11 // pred_region
          _
        $region32: #{tpu_custom_call.1} parent=11 // pred_fallthru
          _
        // Predicated region
        $region33: #{tpu_custom_call.1} parent=11 // pred_check
          %p317 = pneg %p177
        $region34: #{tpu_custom_call.1} parent=11 // pred_check_branch
          %319 = sbr.rel (%p317) target = $region36
        $region35: #{tpu_custom_call.1} parent=11 // pred_region
          _
        $region36: #{tpu_custom_call.1} parent=11 // pred_fallthru
          _
        // Predicated region
        $region37: #{tpu_custom_call.1} parent=11 // pred_check
          %p320 = pneg %p198
        $region38: #{tpu_custom_call.1} parent=11 // pred_check_branch
          %322 = sbr.rel (%p320) target = $region40
        $region39: #{tpu_custom_call.1} parent=11 // pred_region
          %324 = vsyncadd [#allocation6], 0
          %s325 = sshll.u32 %s7, 4
          %s326 = int_to_ptr.hbm [resolvable:$true] %s325
          %s327 = sshll.u32 [#allocation5], 4
          %s328 = int_to_ptr.vmem [resolvable:$true] %s327
          %333 = dma.hbm_to_vmem [thread:$0]  %s326, 9216, %s328, [#allocation6], 1024, 1024, 64
        $region40: #{tpu_custom_call.1} parent=11 // pred_fallthru
          _
        // Predicated region
        $region41: #{tpu_custom_call.1} parent=11 // pred_check
          %p334 = pneg %p219
        $region42: #{tpu_custom_call.1} parent=11 // pred_check_branch
          %336 = sbr.rel (%p334) target = $region44
        $region43: #{tpu_custom_call.1} parent=11 // pred_region
          %338 = vsyncadd [#allocation6], 0
          %s339 = sshll.u32 %s8, 4
          %s340 = int_to_ptr.hbm [resolvable:$true] %s339
          %s341 = sshll.u32 [#allocation7], 4
          %s342 = int_to_ptr.vmem [resolvable:$true] %s341
          %347 = dma.hbm_to_vmem [thread:$0]  %s340, 2304, %s342, [#allocation6], 256, 256, 16
        $region44: #{tpu_custom_call.1} parent=11 // pred_fallthru
          _
        // Predicated region
        $region45: #{tpu_custom_call.1} parent=11 // pred_check
          %p348 = pneg %p240
        $region46: #{tpu_custom_call.1} parent=11 // pred_check_branch
          %350 = sbr.rel (%p348) target = $region48
        $region47: #{tpu_custom_call.1} parent=11 // pred_region
          %352 = vsyncadd [#allocation9], 0
          %s353 = sshll.u32 %s9, 4
          %s354 = int_to_ptr.hbm [resolvable:$true] %s353
          %s355 = sshll.u32 [#allocation8], 4
          %s356 = int_to_ptr.vmem [resolvable:$true] %s355
          %361 = dma.hbm_to_vmem [thread:$0]  %s354, 32768, %s356, [#allocation9], 256, 256, 16
        $region48: #{tpu_custom_call.1} parent=11 // pred_fallthru
          _
        // Predicated region
        $region49: #{tpu_custom_call.1} parent=11 // pred_check
          %p362 = pneg %p261
        $region50: #{tpu_custom_call.1} parent=11 // pred_check_branch
          %364 = sbr.rel (%p362) target = $region52
        $region51: #{tpu_custom_call.1} parent=11 // pred_region
          %366 = vsyncadd [#allocation9], 0
          %s367 = sshll.u32 %s10, 4
          %s368 = int_to_ptr.hbm [resolvable:$true] %s367
          %s369 = sshll.u32 [#allocation10], 4
          %s370 = int_to_ptr.vmem [resolvable:$true] %s369
          %375 = dma.hbm_to_vmem [thread:$0]  %s368, 32768, %s370, [#allocation9], 256, 256, 16
        $region52: #{tpu_custom_call.1} parent=11 // pred_fallthru
          _
      $region12: #{tpu_custom_call.1} parent=5 // pred_fallthru
        _
      %p376 = scmp.lt.s32.totalorder %s25, 2
      // Predicated region
      $region53: #{tpu_custom_call.1} parent=5 // pred_check
        %p377 = pneg %p376
      $region54: #{tpu_custom_call.1} parent=5 // pred_check_branch
        %379 = sbr.rel (%p377) target = $region56
      $region55: #{tpu_custom_call.1} parent=5 // pred_region
        // Predicated region
        $region57: #{tpu_custom_call.1} parent=55 // pred_check
          %p380 = pneg %p45
        $region58: #{tpu_custom_call.1} parent=55 // pred_check_branch
          %382 = sbr.rel (%p380) target = $region60
        $region59: #{tpu_custom_call.1} parent=55 // pred_region
          %s383 = sand.u32 %s35, 1
          %s384 = scalar_lea.sflag [#allocation3], %s383
          %s385 = sand.u32 %s35, 1
          %s386 = smul.addr %s385, 64
          %s387 = scalar_lea.vmem [#allocation2], %s386
          %389 = vsyncadd %s384, 0
          %s390 = smul.addr %s25, 8
          %s391 = smul.addr %s390, 8
          %s392 = scalar_lea.hbm %s0, %s391
          %s394 = sshll.u32 %s392, 4
          %s395 = int_to_ptr.hbm [resolvable:$true] %s394
          %s396 = sshll.u32 %s387, 4
          %s397 = int_to_ptr.vmem [resolvable:$true] %s396
          %399 = dma.hbm_to_vmem [thread:$0]  %s395, 1024, %s397, %s384
        $region60: #{tpu_custom_call.1} parent=55 // pred_fallthru
          _
      $region56: #{tpu_custom_call.1} parent=5 // pred_fallthru
        _
      %p400 = scmp.le.s32.totalorder 1, %s25
      %p401 = scmp.lt.s32.totalorder %s25, 3
      %p402 = pnand %p400, %p401
      %p403 = pneg %p402
      // Predicated region
      $region61: #{tpu_custom_call.1} parent=5 // pred_check
        _
      $region62: #{tpu_custom_call.1} parent=5 // pred_check_branch
        %405 = sbr.rel (%p402) target = $region64
      $region63: #{tpu_custom_call.1} parent=5 // pred_region
        %s406 = ssub.s32 %s25, 1
        %s407 = sand.u32 %s38, 1
        %s408 = scalar_lea.sflag [#allocation3], %s407
        %s409 = sand.u32 %s38, 1
        %s410 = smul.addr %s409, 64
        %s411 = scalar_lea.vmem [#allocation2], %s410
        // Predicated region
        $region65: #{tpu_custom_call.1} parent=63 // pred_check
          %p412 = pneg %p51
        $region66: #{tpu_custom_call.1} parent=63 // pred_check_branch
          %414 = sbr.rel (%p412) target = $region68
        $region67: #{tpu_custom_call.1} parent=63 // pred_region
          %416 = dma.done %s408, 1024
        $region68: #{tpu_custom_call.1} parent=63 // pred_fallthru
          _
        // Predicated region
        $region69: #{tpu_custom_call.1} parent=63 // pred_check
          %p417 = pneg %p198
        $region70: #{tpu_custom_call.1} parent=63 // pred_check_branch
          %419 = sbr.rel (%p417) target = $region72
        $region71: #{tpu_custom_call.1} parent=63 // pred_region
          %421 = dma.done [#allocation6], 9216
        $region72: #{tpu_custom_call.1} parent=63 // pred_fallthru
          _
        // Predicated region
        $region73: #{tpu_custom_call.1} parent=63 // pred_check
          %p422 = pneg %p219
        $region74: #{tpu_custom_call.1} parent=63 // pred_check_branch
          %424 = sbr.rel (%p422) target = $region76
        $region75: #{tpu_custom_call.1} parent=63 // pred_region
          %426 = dma.done [#allocation6], 2304
        $region76: #{tpu_custom_call.1} parent=63 // pred_fallthru
          _
        // Predicated region
        $region77: #{tpu_custom_call.1} parent=63 // pred_check
          %p427 = pneg %p240
        $region78: #{tpu_custom_call.1} parent=63 // pred_check_branch
          %429 = sbr.rel (%p427) target = $region80
        $region79: #{tpu_custom_call.1} parent=63 // pred_region
          %431 = dma.done [#allocation9], 32768
        $region80: #{tpu_custom_call.1} parent=63 // pred_fallthru
          _
        // Predicated region
        $region81: #{tpu_custom_call.1} parent=63 // pred_check
          %p432 = pneg %p261
        $region82: #{tpu_custom_call.1} parent=63 // pred_check_branch
          %434 = sbr.rel (%p432) target = $region84
        $region83: #{tpu_custom_call.1} parent=63 // pred_region
          %436 = dma.done [#allocation9], 32768
        $region84: #{tpu_custom_call.1} parent=63 // pred_fallthru
          _
        %s437 = sand.u32 %s38, 1
        %s438 = scalar_lea.sflag [#allocation3], %s437
        %s439 = sand.u32 %s38, 1
        %s440 = smul.addr %s439, 64
        %s441 = scalar_lea.vmem [#allocation2], %s440
        %p442 = pneg %p51
        %p443 = pneg %p48
        %p444 = pneg %p72
        %p445 = pneg %p69
        %p446 = pneg %p93
        %p447 = pneg %p90
        %p448 = pneg %p114
        %p449 = pneg %p111
        %p450 = pneg %p135
        %p451 = pneg %p132
        %p452 = pneg %p156
        %p453 = pneg %p153
        %p454 = pneg %p177
        %p455 = pneg %p174
        %p456 = pneg %p198
        %p457 = pneg %p195
        %p458 = pneg %p219
        %p459 = pneg %p216
        %p460 = pneg %p240
        %p461 = pneg %p237
        %p462 = pneg %p261
        %p463 = pneg %p258
        %p464 = pneg %p287
        %p465 = pneg %p284
        %s466 = sand.u32 %s274, 1
        %s467 = scalar_lea.sflag [#allocation4], %s466
        %s468 = sand.u32 %s274, 1
        %s469 = smul.addr %s468, 16
        %s470 = scalar_lea.vmem [#allocation11], %s469
        %v471 = vld [vmem:[%s1] sm:$0xff]
        %v472 = vld [vmem:[%s2] sm:$0xff]
        %v473 = vld [vmem:[#allocation5] sm:$0xff]
        %v474 = vld [vmem:[#allocation5 + $0x8] sm:$0xff]
        %v475 = vld [vmem:[#allocation5 + $0x10] sm:$0xff]
        %v476 = vld [vmem:[#allocation5 + $0x18] sm:$0xff]
        %v477 = vld [vmem:[#allocation5 + $0x20] sm:$0xff]
        %v478 = vld [vmem:[#allocation5 + $0x28] sm:$0xff]
        %v479 = vld [vmem:[#allocation5 + $0x30] sm:$0xff]
        %v480 = vld [vmem:[#allocation5 + $0x38] sm:$0xff]
        %v481 = vld [vmem:[#allocation5 + $0x40] sm:$0xff]
        %v482 = vld [vmem:[#allocation5 + $0x48] sm:$0xff]
        %v483 = vld [vmem:[#allocation5 + $0x50] sm:$0xff]
        %v484 = vld [vmem:[#allocation5 + $0x58] sm:$0xff]
        %v485 = vld [vmem:[#allocation5 + $0x60] sm:$0xff]
        %v486 = vld [vmem:[#allocation5 + $0x68] sm:$0xff]
        %v487 = vld [vmem:[#allocation5 + $0x70] sm:$0xff]
        %v488 = vld [vmem:[#allocation5 + $0x78] sm:$0xff]
        %v489 = vld [vmem:[#allocation5 + $0x80] sm:$0xff]
        %v490 = vld [vmem:[#allocation5 + $0x88] sm:$0xff]
        %v491 = vld [vmem:[#allocation5 + $0x90] sm:$0xff]
        %v492 = vld [vmem:[#allocation5 + $0x98] sm:$0xff]
        %v493 = vld [vmem:[#allocation5 + $0xa0] sm:$0xff]
        %v494 = vld [vmem:[#allocation5 + $0xa8] sm:$0xff]
        %v495 = vld [vmem:[#allocation5 + $0xb0] sm:$0xff]
        %v496 = vld [vmem:[#allocation5 + $0xb8] sm:$0xff]
        %v497 = vld [vmem:[#allocation5 + $0xc0] sm:$0xff]
        %v498 = vld [vmem:[#allocation5 + $0xc8] sm:$0xff]
        %v499 = vld [vmem:[#allocation5 + $0xd0] sm:$0xff]
        %v500 = vld [vmem:[#allocation5 + $0xd8] sm:$0xff]
        %v501 = vld [vmem:[#allocation5 + $0xe0] sm:$0xff]
        %v502 = vld [vmem:[#allocation5 + $0xe8] sm:$0xff]
        %v503 = vld [vmem:[#allocation5 + $0xf0] sm:$0xff]
        %v504 = vld [vmem:[#allocation5 + $0xf8] sm:$0xff]
        %v505 = vld [vmem:[#allocation5 + $0x100] sm:$0xff]
        %v506 = vld [vmem:[#allocation5 + $0x108] sm:$0xff]
        %v507 = vld [vmem:[#allocation5 + $0x110] sm:$0xff]
        %v508 = vld [vmem:[#allocation5 + $0x118] sm:$0xff]
        %v509 = vld [vmem:[#allocation5 + $0x120] sm:$0xff]
        %v510 = vld [vmem:[#allocation5 + $0x128] sm:$0xff]
        %v511 = vld [vmem:[#allocation5 + $0x130] sm:$0xff]
        %v512 = vld [vmem:[#allocation5 + $0x138] sm:$0xff]
        %v513 = vld [vmem:[#allocation5 + $0x140] sm:$0xff]
        %v514 = vld [vmem:[#allocation5 + $0x148] sm:$0xff]
        %v515 = vld [vmem:[#allocation5 + $0x150] sm:$0xff]
        %v516 = vld [vmem:[#allocation5 + $0x158] sm:$0xff]
        %v517 = vld [vmem:[#allocation5 + $0x160] sm:$0xff]
        %v518 = vld [vmem:[#allocation5 + $0x168] sm:$0xff]
        %v519 = vld [vmem:[#allocation5 + $0x170] sm:$0xff]
        %v520 = vld [vmem:[#allocation5 + $0x178] sm:$0xff]
        %v521 = vld [vmem:[#allocation5 + $0x180] sm:$0xff]
        %v522 = vld [vmem:[#allocation5 + $0x188] sm:$0xff]
        %v523 = vld [vmem:[#allocation5 + $0x190] sm:$0xff]
        %v524 = vld [vmem:[#allocation5 + $0x198] sm:$0xff]
        %v525 = vld [vmem:[#allocation5 + $0x1a0] sm:$0xff]
        %v526 = vld [vmem:[#allocation5 + $0x1a8] sm:$0xff]
        %v527 = vld [vmem:[#allocation5 + $0x1b0] sm:$0xff]
        %v528 = vld [vmem:[#allocation5 + $0x1b8] sm:$0xff]
        %v529 = vld [vmem:[#allocation5 + $0x1c0] sm:$0xff]
        %v530 = vld [vmem:[#allocation5 + $0x1c8] sm:$0xff]
        %v531 = vld [vmem:[#allocation5 + $0x1d0] sm:$0xff]
        %v532 = vld [vmem:[#allocation5 + $0x1d8] sm:$0xff]
        %v533 = vld [vmem:[#allocation5 + $0x1e0] sm:$0xff]
        %v534 = vld [vmem:[#allocation5 + $0x1e8] sm:$0xff]
        %v535 = vld [vmem:[#allocation5 + $0x1f0] sm:$0xff]
        %v536 = vld [vmem:[#allocation5 + $0x1f8] sm:$0xff]
        %v537 = vld [vmem:[#allocation5 + $0x200] sm:$0xff]
        %v538 = vld [vmem:[#allocation5 + $0x208] sm:$0xff]
        %v539 = vld [vmem:[#allocation5 + $0x210] sm:$0xff]
        %v540 = vld [vmem:[#allocation5 + $0x218] sm:$0xff]
        %v541 = vld [vmem:[#allocation5 + $0x220] sm:$0xff]
        %v542 = vld [vmem:[#allocation5 + $0x228] sm:$0xff]
        %v543 = vld [vmem:[#allocation5 + $0x230] sm:$0xff]
        %v544 = vld [vmem:[#allocation5 + $0x238] sm:$0xff]
        %v545 = vld [vmem:[#allocation7] sm:$0xff]
        %v546 = vld [vmem:[#allocation7 + $0x8] sm:$0xff]
        %v547 = vld [vmem:[#allocation7 + $0x10] sm:$0xff]
        %v548 = vld [vmem:[#allocation7 + $0x18] sm:$0xff]
        %v549 = vld [vmem:[#allocation7 + $0x20] sm:$0xff]
        %v550 = vld [vmem:[#allocation7 + $0x28] sm:$0xff]
        %v551 = vld [vmem:[#allocation7 + $0x30] sm:$0xff]
        %v552 = vld [vmem:[#allocation7 + $0x38] sm:$0xff]
        %v553 = vld [vmem:[#allocation7 + $0x40] sm:$0xff]
        %v554 = vld [vmem:[#allocation7 + $0x48] sm:$0xff]
        %v555 = vld [vmem:[#allocation7 + $0x50] sm:$0xff]
        %v556 = vld [vmem:[#allocation7 + $0x58] sm:$0xff]
        %v557 = vld [vmem:[#allocation7 + $0x60] sm:$0xff]
        %v558 = vld [vmem:[#allocation7 + $0x68] sm:$0xff]
        %v559 = vld [vmem:[#allocation7 + $0x70] sm:$0xff]
        %v560 = vld [vmem:[#allocation7 + $0x78] sm:$0xff]
        %v561 = vld [vmem:[#allocation7 + $0x80] sm:$0xff]
        %v562 = vld [vmem:[#allocation7 + $0x88] sm:$0xff]
        %v563 = vld [vmem:[%s3] sm:$0xff]
        %v564 = vld [vmem:[%s4] sm:$0xff]
        %v565 = vld [vmem:[%s5] sm:$0xff]
        %v566 = vld [vmem:[%s6] sm:$0xff]
        %v567 = vld [vmem:[#allocation8] sm:$0xff]
        %v568 = vld [vmem:[#allocation8 + $0x8] sm:$0xff]
        %v569 = vld [vmem:[#allocation8 + $0x10] sm:$0xff]
        %v570 = vld [vmem:[#allocation8 + $0x18] sm:$0xff]
        %v571 = vld [vmem:[#allocation8 + $0x20] sm:$0xff]
        %v572 = vld [vmem:[#allocation8 + $0x28] sm:$0xff]
        %v573 = vld [vmem:[#allocation8 + $0x30] sm:$0xff]
        %v574 = vld [vmem:[#allocation8 + $0x38] sm:$0xff]
        %v575 = vld [vmem:[#allocation8 + $0x40] sm:$0xff]
        %v576 = vld [vmem:[#allocation8 + $0x48] sm:$0xff]
        %v577 = vld [vmem:[#allocation8 + $0x50] sm:$0xff]
        %v578 = vld [vmem:[#allocation8 + $0x58] sm:$0xff]
        %v579 = vld [vmem:[#allocation8 + $0x60] sm:$0xff]
        %v580 = vld [vmem:[#allocation8 + $0x68] sm:$0xff]
        %v581 = vld [vmem:[#allocation8 + $0x70] sm:$0xff]
        %v582 = vld [vmem:[#allocation8 + $0x78] sm:$0xff]
        %v583 = vld [vmem:[#allocation8 + $0x80] sm:$0xff]
        %v584 = vld [vmem:[#allocation8 + $0x88] sm:$0xff]
        %v585 = vld [vmem:[#allocation8 + $0x90] sm:$0xff]
        %v586 = vld [vmem:[#allocation8 + $0x98] sm:$0xff]
        %v587 = vld [vmem:[#allocation8 + $0xa0] sm:$0xff]
        %v588 = vld [vmem:[#allocation8 + $0xa8] sm:$0xff]
        %v589 = vld [vmem:[#allocation8 + $0xb0] sm:$0xff]
        %v590 = vld [vmem:[#allocation8 + $0xb8] sm:$0xff]
        %v591 = vld [vmem:[#allocation8 + $0xc0] sm:$0xff]
        %v592 = vld [vmem:[#allocation8 + $0xc8] sm:$0xff]
        %v593 = vld [vmem:[#allocation8 + $0xd0] sm:$0xff]
        %v594 = vld [vmem:[#allocation8 + $0xd8] sm:$0xff]
        %v595 = vld [vmem:[#allocation8 + $0xe0] sm:$0xff]
        %v596 = vld [vmem:[#allocation8 + $0xe8] sm:$0xff]
        %v597 = vld [vmem:[#allocation8 + $0xf0] sm:$0xff]
        %v598 = vld [vmem:[#allocation8 + $0xf8] sm:$0xff]
        %v599 = vld [vmem:[#allocation8 + $0x100] sm:$0xff]
        %v600 = vld [vmem:[#allocation8 + $0x108] sm:$0xff]
        %v601 = vld [vmem:[#allocation8 + $0x110] sm:$0xff]
        %v602 = vld [vmem:[#allocation8 + $0x118] sm:$0xff]
        %v603 = vld [vmem:[#allocation8 + $0x120] sm:$0xff]
        %v604 = vld [vmem:[#allocation8 + $0x128] sm:$0xff]
        %v605 = vld [vmem:[#allocation8 + $0x130] sm:$0xff]
        %v606 = vld [vmem:[#allocation8 + $0x138] sm:$0xff]
        %v607 = vld [vmem:[#allocation8 + $0x140] sm:$0xff]
        %v608 = vld [vmem:[#allocation8 + $0x148] sm:$0xff]
        %v609 = vld [vmem:[#allocation8 + $0x150] sm:$0xff]
        %v610 = vld [vmem:[#allocation8 + $0x158] sm:$0xff]
        %v611 = vld [vmem:[#allocation8 + $0x160] sm:$0xff]
        %v612 = vld [vmem:[#allocation8 + $0x168] sm:$0xff]
        %v613 = vld [vmem:[#allocation8 + $0x170] sm:$0xff]
        %v614 = vld [vmem:[#allocation8 + $0x178] sm:$0xff]
        %v615 = vld [vmem:[#allocation8 + $0x180] sm:$0xff]
        %v616 = vld [vmem:[#allocation8 + $0x188] sm:$0xff]
        %v617 = vld [vmem:[#allocation8 + $0x190] sm:$0xff]
        %v618 = vld [vmem:[#allocation8 + $0x198] sm:$0xff]
        %v619 = vld [vmem:[#allocation8 + $0x1a0] sm:$0xff]
        %v620 = vld [vmem:[#allocation8 + $0x1a8] sm:$0xff]
        %v621 = vld [vmem:[#allocation8 + $0x1b0] sm:$0xff]
        %v622 = vld [vmem:[#allocation8 + $0x1b8] sm:$0xff]
        %v623 = vld [vmem:[#allocation8 + $0x1c0] sm:$0xff]
        %v624 = vld [vmem:[#allocation8 + $0x1c8] sm:$0xff]
        %v625 = vld [vmem:[#allocation8 + $0x1d0] sm:$0xff]
        %v626 = vld [vmem:[#allocation8 + $0x1d8] sm:$0xff]
        %v627 = vld [vmem:[#allocation8 + $0x1e0] sm:$0xff]
        %v628 = vld [vmem:[#allocation8 + $0x1e8] sm:$0xff]
        %v629 = vld [vmem:[#allocation8 + $0x1f0] sm:$0xff]
        %v630 = vld [vmem:[#allocation8 + $0x1f8] sm:$0xff]
        %v631 = vld [vmem:[#allocation8 + $0x200] sm:$0xff]
        %v632 = vld [vmem:[#allocation8 + $0x208] sm:$0xff]
        %v633 = vld [vmem:[#allocation8 + $0x210] sm:$0xff]
        %v634 = vld [vmem:[#allocation8 + $0x218] sm:$0xff]
        %v635 = vld [vmem:[#allocation8 + $0x220] sm:$0xff]
        %v636 = vld [vmem:[#allocation8 + $0x228] sm:$0xff]
        %v637 = vld [vmem:[#allocation8 + $0x230] sm:$0xff]
        %v638 = vld [vmem:[#allocation8 + $0x238] sm:$0xff]
        %v639 = vld [vmem:[#allocation8 + $0x240] sm:$0xff]
        %v640 = vld [vmem:[#allocation8 + $0x248] sm:$0xff]
        %v641 = vld [vmem:[#allocation8 + $0x250] sm:$0xff]
        %v642 = vld [vmem:[#allocation8 + $0x258] sm:$0xff]
        %v643 = vld [vmem:[#allocation8 + $0x260] sm:$0xff]
        %v644 = vld [vmem:[#allocation8 + $0x268] sm:$0xff]
        %v645 = vld [vmem:[#allocation8 + $0x270] sm:$0xff]
        %v646 = vld [vmem:[#allocation8 + $0x278] sm:$0xff]
        %v647 = vld [vmem:[#allocation8 + $0x280] sm:$0xff]
        %v648 = vld [vmem:[#allocation8 + $0x288] sm:$0xff]
        %v649 = vld [vmem:[#allocation8 + $0x290] sm:$0xff]
        %v650 = vld [vmem:[#allocation8 + $0x298] sm:$0xff]
        %v651 = vld [vmem:[#allocation8 + $0x2a0] sm:$0xff]
        %v652 = vld [vmem:[#allocation8 + $0x2a8] sm:$0xff]
        %v653 = vld [vmem:[#allocation8 + $0x2b0] sm:$0xff]
        %v654 = vld [vmem:[#allocation8 + $0x2b8] sm:$0xff]
        %v655 = vld [vmem:[#allocation8 + $0x2c0] sm:$0xff]
        %v656 = vld [vmem:[#allocation8 + $0x2c8] sm:$0xff]
        %v657 = vld [vmem:[#allocation8 + $0x2d0] sm:$0xff]
        %v658 = vld [vmem:[#allocation8 + $0x2d8] sm:$0xff]
        %v659 = vld [vmem:[#allocation8 + $0x2e0] sm:$0xff]
        %v660 = vld [vmem:[#allocation8 + $0x2e8] sm:$0xff]
        %v661 = vld [vmem:[#allocation8 + $0x2f0] sm:$0xff]
        %v662 = vld [vmem:[#allocation8 + $0x2f8] sm:$0xff]
        %v663 = vld [vmem:[#allocation8 + $0x300] sm:$0xff]
        %v664 = vld [vmem:[#allocation8 + $0x308] sm:$0xff]
        %v665 = vld [vmem:[#allocation8 + $0x310] sm:$0xff]
        %v666 = vld [vmem:[#allocation8 + $0x318] sm:$0xff]
        %v667 = vld [vmem:[#allocation8 + $0x320] sm:$0xff]
        %v668 = vld [vmem:[#allocation8 + $0x328] sm:$0xff]
        %v669 = vld [vmem:[#allocation8 + $0x330] sm:$0xff]
        %v670 = vld [vmem:[#allocation8 + $0x338] sm:$0xff]
        %v671 = vld [vmem:[#allocation8 + $0x340] sm:$0xff]
        %v672 = vld [vmem:[#allocation8 + $0x348] sm:$0xff]
        %v673 = vld [vmem:[#allocation8 + $0x350] sm:$0xff]
        %v674 = vld [vmem:[#allocation8 + $0x358] sm:$0xff]
        %v675 = vld [vmem:[#allocation8 + $0x360] sm:$0xff]
        %v676 = vld [vmem:[#allocation8 + $0x368] sm:$0xff]
        %v677 = vld [vmem:[#allocation8 + $0x370] sm:$0xff]
        %v678 = vld [vmem:[#allocation8 + $0x378] sm:$0xff]
        %v679 = vld [vmem:[#allocation8 + $0x380] sm:$0xff]
        %v680 = vld [vmem:[#allocation8 + $0x388] sm:$0xff]
        %v681 = vld [vmem:[#allocation8 + $0x390] sm:$0xff]
        %v682 = vld [vmem:[#allocation8 + $0x398] sm:$0xff]
        %v683 = vld [vmem:[#allocation8 + $0x3a0] sm:$0xff]
        %v684 = vld [vmem:[#allocation8 + $0x3a8] sm:$0xff]
        %v685 = vld [vmem:[#allocation8 + $0x3b0] sm:$0xff]
        %v686 = vld [vmem:[#allocation8 + $0x3b8] sm:$0xff]
        %v687 = vld [vmem:[#allocation8 + $0x3c0] sm:$0xff]
        %v688 = vld [vmem:[#allocation8 + $0x3c8] sm:$0xff]
        %v689 = vld [vmem:[#allocation8 + $0x3d0] sm:$0xff]
        %v690 = vld [vmem:[#allocation8 + $0x3d8] sm:$0xff]
        %v691 = vld [vmem:[#allocation8 + $0x3e0] sm:$0xff]
        %v692 = vld [vmem:[#allocation8 + $0x3e8] sm:$0xff]
        %v693 = vld [vmem:[#allocation8 + $0x3f0] sm:$0xff]
        %v694 = vld [vmem:[#allocation8 + $0x3f8] sm:$0xff]
        %v695 = vld [vmem:[#allocation8 + $0x400] sm:$0xff]
        %v696 = vld [vmem:[#allocation8 + $0x408] sm:$0xff]
        %v697 = vld [vmem:[#allocation8 + $0x410] sm:$0xff]
        %v698 = vld [vmem:[#allocation8 + $0x418] sm:$0xff]
        %v699 = vld [vmem:[#allocation8 + $0x420] sm:$0xff]
        %v700 = vld [vmem:[#allocation8 + $0x428] sm:$0xff]
        %v701 = vld [vmem:[#allocation8 + $0x430] sm:$0xff]
        %v702 = vld [vmem:[#allocation8 + $0x438] sm:$0xff]
        %v703 = vld [vmem:[#allocation8 + $0x440] sm:$0xff]
        %v704 = vld [vmem:[#allocation8 + $0x448] sm:$0xff]
        %v705 = vld [vmem:[#allocation8 + $0x450] sm:$0xff]
        %v706 = vld [vmem:[#allocation8 + $0x458] sm:$0xff]
        %v707 = vld [vmem:[#allocation8 + $0x460] sm:$0xff]
        %v708 = vld [vmem:[#allocation8 + $0x468] sm:$0xff]
        %v709 = vld [vmem:[#allocation8 + $0x470] sm:$0xff]
        %v710 = vld [vmem:[#allocation8 + $0x478] sm:$0xff]
        %v711 = vld [vmem:[#allocation8 + $0x480] sm:$0xff]
        %v712 = vld [vmem:[#allocation8 + $0x488] sm:$0xff]
        %v713 = vld [vmem:[#allocation8 + $0x490] sm:$0xff]
        %v714 = vld [vmem:[#allocation8 + $0x498] sm:$0xff]
        %v715 = vld [vmem:[#allocation8 + $0x4a0] sm:$0xff]
        %v716 = vld [vmem:[#allocation8 + $0x4a8] sm:$0xff]
        %v717 = vld [vmem:[#allocation8 + $0x4b0] sm:$0xff]
        %v718 = vld [vmem:[#allocation8 + $0x4b8] sm:$0xff]
        %v719 = vld [vmem:[#allocation8 + $0x4c0] sm:$0xff]
        %v720 = vld [vmem:[#allocation8 + $0x4c8] sm:$0xff]
        %v721 = vld [vmem:[#allocation8 + $0x4d0] sm:$0xff]
        %v722 = vld [vmem:[#allocation8 + $0x4d8] sm:$0xff]
        %v723 = vld [vmem:[#allocation8 + $0x4e0] sm:$0xff]
        %v724 = vld [vmem:[#allocation8 + $0x4e8] sm:$0xff]
        %v725 = vld [vmem:[#allocation8 + $0x4f0] sm:$0xff]
        %v726 = vld [vmem:[#allocation8 + $0x4f8] sm:$0xff]
        %v727 = vld [vmem:[#allocation8 + $0x500] sm:$0xff]
        %v728 = vld [vmem:[#allocation8 + $0x508] sm:$0xff]
        %v729 = vld [vmem:[#allocation8 + $0x510] sm:$0xff]
        %v730 = vld [vmem:[#allocation8 + $0x518] sm:$0xff]
        %v731 = vld [vmem:[#allocation8 + $0x520] sm:$0xff]
        %v732 = vld [vmem:[#allocation8 + $0x528] sm:$0xff]
        %v733 = vld [vmem:[#allocation8 + $0x530] sm:$0xff]
        %v734 = vld [vmem:[#allocation8 + $0x538] sm:$0xff]
        %v735 = vld [vmem:[#allocation8 + $0x540] sm:$0xff]
        %v736 = vld [vmem:[#allocation8 + $0x548] sm:$0xff]
        %v737 = vld [vmem:[#allocation8 + $0x550] sm:$0xff]
        %v738 = vld [vmem:[#allocation8 + $0x558] sm:$0xff]
        %v739 = vld [vmem:[#allocation8 + $0x560] sm:$0xff]
        %v740 = vld [vmem:[#allocation8 + $0x568] sm:$0xff]
        %v741 = vld [vmem:[#allocation8 + $0x570] sm:$0xff]
        %v742 = vld [vmem:[#allocation8 + $0x578] sm:$0xff]
        %v743 = vld [vmem:[#allocation8 + $0x580] sm:$0xff]
        %v744 = vld [vmem:[#allocation8 + $0x588] sm:$0xff]
        %v745 = vld [vmem:[#allocation8 + $0x590] sm:$0xff]
        %v746 = vld [vmem:[#allocation8 + $0x598] sm:$0xff]
        %v747 = vld [vmem:[#allocation8 + $0x5a0] sm:$0xff]
        %v748 = vld [vmem:[#allocation8 + $0x5a8] sm:$0xff]
        %v749 = vld [vmem:[#allocation8 + $0x5b0] sm:$0xff]
        %v750 = vld [vmem:[#allocation8 + $0x5b8] sm:$0xff]
        %v751 = vld [vmem:[#allocation8 + $0x5c0] sm:$0xff]
        %v752 = vld [vmem:[#allocation8 + $0x5c8] sm:$0xff]
        %v753 = vld [vmem:[#allocation8 + $0x5d0] sm:$0xff]
        %v754 = vld [vmem:[#allocation8 + $0x5d8] sm:$0xff]
        %v755 = vld [vmem:[#allocation8 + $0x5e0] sm:$0xff]
        %v756 = vld [vmem:[#allocation8 + $0x5e8] sm:$0xff]
        %v757 = vld [vmem:[#allocation8 + $0x5f0] sm:$0xff]
        %v758 = vld [vmem:[#allocation8 + $0x5f8] sm:$0xff]
        %v759 = vld [vmem:[#allocation8 + $0x600] sm:$0xff]
        %v760 = vld [vmem:[#allocation8 + $0x608] sm:$0xff]
        %v761 = vld [vmem:[#allocation8 + $0x610] sm:$0xff]
        %v762 = vld [vmem:[#allocation8 + $0x618] sm:$0xff]
        %v763 = vld [vmem:[#allocation8 + $0x620] sm:$0xff]
        %v764 = vld [vmem:[#allocation8 + $0x628] sm:$0xff]
        %v765 = vld [vmem:[#allocation8 + $0x630] sm:$0xff]
        %v766 = vld [vmem:[#allocation8 + $0x638] sm:$0xff]
        %v767 = vld [vmem:[#allocation8 + $0x640] sm:$0xff]
        %v768 = vld [vmem:[#allocation8 + $0x648] sm:$0xff]
        %v769 = vld [vmem:[#allocation8 + $0x650] sm:$0xff]
        %v770 = vld [vmem:[#allocation8 + $0x658] sm:$0xff]
        %v771 = vld [vmem:[#allocation8 + $0x660] sm:$0xff]
        %v772 = vld [vmem:[#allocation8 + $0x668] sm:$0xff]
        %v773 = vld [vmem:[#allocation8 + $0x670] sm:$0xff]
        %v774 = vld [vmem:[#allocation8 + $0x678] sm:$0xff]
        %v775 = vld [vmem:[#allocation8 + $0x680] sm:$0xff]
        %v776 = vld [vmem:[#allocation8 + $0x688] sm:$0xff]
        %v777 = vld [vmem:[#allocation8 + $0x690] sm:$0xff]
        %v778 = vld [vmem:[#allocation8 + $0x698] sm:$0xff]
        %v779 = vld [vmem:[#allocation8 + $0x6a0] sm:$0xff]
        %v780 = vld [vmem:[#allocation8 + $0x6a8] sm:$0xff]
        %v781 = vld [vmem:[#allocation8 + $0x6b0] sm:$0xff]
        %v782 = vld [vmem:[#allocation8 + $0x6b8] sm:$0xff]
        %v783 = vld [vmem:[#allocation8 + $0x6c0] sm:$0xff]
        %v784 = vld [vmem:[#allocation8 + $0x6c8] sm:$0xff]
        %v785 = vld [vmem:[#allocation8 + $0x6d0] sm:$0xff]
        %v786 = vld [vmem:[#allocation8 + $0x6d8] sm:$0xff]
        %v787 = vld [vmem:[#allocation8 + $0x6e0] sm:$0xff]
        %v788 = vld [vmem:[#allocation8 + $0x6e8] sm:$0xff]
        %v789 = vld [vmem:[#allocation8 + $0x6f0] sm:$0xff]
        %v790 = vld [vmem:[#allocation8 + $0x6f8] sm:$0xff]
        %v791 = vld [vmem:[#allocation8 + $0x700] sm:$0xff]
        %v792 = vld [vmem:[#allocation8 + $0x708] sm:$0xff]
        %v793 = vld [vmem:[#allocation8 + $0x710] sm:$0xff]
        %v794 = vld [vmem:[#allocation8 + $0x718] sm:$0xff]
        %v795 = vld [vmem:[#allocation8 + $0x720] sm:$0xff]
        %v796 = vld [vmem:[#allocation8 + $0x728] sm:$0xff]
        %v797 = vld [vmem:[#allocation8 + $0x730] sm:$0xff]
        %v798 = vld [vmem:[#allocation8 + $0x738] sm:$0xff]
        %v799 = vld [vmem:[#allocation8 + $0x740] sm:$0xff]
        %v800 = vld [vmem:[#allocation8 + $0x748] sm:$0xff]
        %v801 = vld [vmem:[#allocation8 + $0x750] sm:$0xff]
        %v802 = vld [vmem:[#allocation8 + $0x758] sm:$0xff]
        %v803 = vld [vmem:[#allocation8 + $0x760] sm:$0xff]
        %v804 = vld [vmem:[#allocation8 + $0x768] sm:$0xff]
        %v805 = vld [vmem:[#allocation8 + $0x770] sm:$0xff]
        %v806 = vld [vmem:[#allocation8 + $0x778] sm:$0xff]
        %v807 = vld [vmem:[#allocation8 + $0x780] sm:$0xff]
        %v808 = vld [vmem:[#allocation8 + $0x788] sm:$0xff]
        %v809 = vld [vmem:[#allocation8 + $0x790] sm:$0xff]
        %v810 = vld [vmem:[#allocation8 + $0x798] sm:$0xff]
        %v811 = vld [vmem:[#allocation8 + $0x7a0] sm:$0xff]
        %v812 = vld [vmem:[#allocation8 + $0x7a8] sm:$0xff]
        %v813 = vld [vmem:[#allocation8 + $0x7b0] sm:$0xff]
        %v814 = vld [vmem:[#allocation8 + $0x7b8] sm:$0xff]
        %v815 = vld [vmem:[#allocation8 + $0x7c0] sm:$0xff]
        %v816 = vld [vmem:[#allocation8 + $0x7c8] sm:$0xff]
        %v817 = vld [vmem:[#allocation8 + $0x7d0] sm:$0xff]
        %v818 = vld [vmem:[#allocation8 + $0x7d8] sm:$0xff]
        %v819 = vld [vmem:[#allocation8 + $0x7e0] sm:$0xff]
        %v820 = vld [vmem:[#allocation8 + $0x7e8] sm:$0xff]
        %v821 = vld [vmem:[#allocation8 + $0x7f0] sm:$0xff]
        %v822 = vld [vmem:[#allocation8 + $0x7f8] sm:$0xff]
        %v823 = vld [vmem:[#allocation10] sm:$0xff]
        %v824 = vld [vmem:[#allocation10 + $0x8] sm:$0xff]
        %v825 = vld [vmem:[#allocation10 + $0x10] sm:$0xff]
        %v826 = vld [vmem:[#allocation10 + $0x18] sm:$0xff]
        %v827 = vld [vmem:[#allocation10 + $0x20] sm:$0xff]
        %v828 = vld [vmem:[#allocation10 + $0x28] sm:$0xff]
        %v829 = vld [vmem:[#allocation10 + $0x30] sm:$0xff]
        %v830 = vld [vmem:[#allocation10 + $0x38] sm:$0xff]
        %v831 = vld [vmem:[#allocation10 + $0x40] sm:$0xff]
        %v832 = vld [vmem:[#allocation10 + $0x48] sm:$0xff]
        %v833 = vld [vmem:[#allocation10 + $0x50] sm:$0xff]
        %v834 = vld [vmem:[#allocation10 + $0x58] sm:$0xff]
        %v835 = vld [vmem:[#allocation10 + $0x60] sm:$0xff]
        %v836 = vld [vmem:[#allocation10 + $0x68] sm:$0xff]
        %v837 = vld [vmem:[#allocation10 + $0x70] sm:$0xff]
        %v838 = vld [vmem:[#allocation10 + $0x78] sm:$0xff]
        %v839 = vld [vmem:[#allocation10 + $0x80] sm:$0xff]
        %v840 = vld [vmem:[#allocation10 + $0x88] sm:$0xff]
        %v841 = vld [vmem:[#allocation10 + $0x90] sm:$0xff]
        %v842 = vld [vmem:[#allocation10 + $0x98] sm:$0xff]
        %v843 = vld [vmem:[#allocation10 + $0xa0] sm:$0xff]
        %v844 = vld [vmem:[#allocation10 + $0xa8] sm:$0xff]
        %v845 = vld [vmem:[#allocation10 + $0xb0] sm:$0xff]
        %v846 = vld [vmem:[#allocation10 + $0xb8] sm:$0xff]
        %v847 = vld [vmem:[#allocation10 + $0xc0] sm:$0xff]
        %v848 = vld [vmem:[#allocation10 + $0xc8] sm:$0xff]
        %v849 = vld [vmem:[#allocation10 + $0xd0] sm:$0xff]
        %v850 = vld [vmem:[#allocation10 + $0xd8] sm:$0xff]
        %v851 = vld [vmem:[#allocation10 + $0xe0] sm:$0xff]
        %v852 = vld [vmem:[#allocation10 + $0xe8] sm:$0xff]
        %v853 = vld [vmem:[#allocation10 + $0xf0] sm:$0xff]
        %v854 = vld [vmem:[#allocation10 + $0xf8] sm:$0xff]
        %v855 = vld [vmem:[#allocation10 + $0x100] sm:$0xff]
        %v856 = vld [vmem:[#allocation10 + $0x108] sm:$0xff]
        %v857 = vld [vmem:[#allocation10 + $0x110] sm:$0xff]
        %v858 = vld [vmem:[#allocation10 + $0x118] sm:$0xff]
        %v859 = vld [vmem:[#allocation10 + $0x120] sm:$0xff]
        %v860 = vld [vmem:[#allocation10 + $0x128] sm:$0xff]
        %v861 = vld [vmem:[#allocation10 + $0x130] sm:$0xff]
        %v862 = vld [vmem:[#allocation10 + $0x138] sm:$0xff]
        %v863 = vld [vmem:[#allocation10 + $0x140] sm:$0xff]
        %v864 = vld [vmem:[#allocation10 + $0x148] sm:$0xff]
        %v865 = vld [vmem:[#allocation10 + $0x150] sm:$0xff]
        %v866 = vld [vmem:[#allocation10 + $0x158] sm:$0xff]
        %v867 = vld [vmem:[#allocation10 + $0x160] sm:$0xff]
        %v868 = vld [vmem:[#allocation10 + $0x168] sm:$0xff]
        %v869 = vld [vmem:[#allocation10 + $0x170] sm:$0xff]
        %v870 = vld [vmem:[#allocation10 + $0x178] sm:$0xff]
        %v871 = vld [vmem:[#allocation10 + $0x180] sm:$0xff]
        %v872 = vld [vmem:[#allocation10 + $0x188] sm:$0xff]
        %v873 = vld [vmem:[#allocation10 + $0x190] sm:$0xff]
        %v874 = vld [vmem:[#allocation10 + $0x198] sm:$0xff]
        %v875 = vld [vmem:[#allocation10 + $0x1a0] sm:$0xff]
        %v876 = vld [vmem:[#allocation10 + $0x1a8] sm:$0xff]
        %v877 = vld [vmem:[#allocation10 + $0x1b0] sm:$0xff]
        %v878 = vld [vmem:[#allocation10 + $0x1b8] sm:$0xff]
        %v879 = vld [vmem:[#allocation10 + $0x1c0] sm:$0xff]
        %v880 = vld [vmem:[#allocation10 + $0x1c8] sm:$0xff]
        %v881 = vld [vmem:[#allocation10 + $0x1d0] sm:$0xff]
        %v882 = vld [vmem:[#allocation10 + $0x1d8] sm:$0xff]
        %v883 = vld [vmem:[#allocation10 + $0x1e0] sm:$0xff]
        %v884 = vld [vmem:[#allocation10 + $0x1e8] sm:$0xff]
        %v885 = vld [vmem:[#allocation10 + $0x1f0] sm:$0xff]
        %v886 = vld [vmem:[#allocation10 + $0x1f8] sm:$0xff]
        %v887 = vld [vmem:[#allocation10 + $0x200] sm:$0xff]
        %v888 = vld [vmem:[#allocation10 + $0x208] sm:$0xff]
        %v889 = vld [vmem:[#allocation10 + $0x210] sm:$0xff]
        %v890 = vld [vmem:[#allocation10 + $0x218] sm:$0xff]
        %v891 = vld [vmem:[#allocation10 + $0x220] sm:$0xff]
        %v892 = vld [vmem:[#allocation10 + $0x228] sm:$0xff]
        %v893 = vld [vmem:[#allocation10 + $0x230] sm:$0xff]
        %v894 = vld [vmem:[#allocation10 + $0x238] sm:$0xff]
        %v895 = vld [vmem:[#allocation10 + $0x240] sm:$0xff]
        %v896 = vld [vmem:[#allocation10 + $0x248] sm:$0xff]
        %v897 = vld [vmem:[#allocation10 + $0x250] sm:$0xff]
        %v898 = vld [vmem:[#allocation10 + $0x258] sm:$0xff]
        %v899 = vld [vmem:[#allocation10 + $0x260] sm:$0xff]
        %v900 = vld [vmem:[#allocation10 + $0x268] sm:$0xff]
        %v901 = vld [vmem:[#allocation10 + $0x270] sm:$0xff]
        %v902 = vld [vmem:[#allocation10 + $0x278] sm:$0xff]
        %v903 = vld [vmem:[#allocation10 + $0x280] sm:$0xff]
        %v904 = vld [vmem:[#allocation10 + $0x288] sm:$0xff]
        %v905 = vld [vmem:[#allocation10 + $0x290] sm:$0xff]
        %v906 = vld [vmem:[#allocation10 + $0x298] sm:$0xff]
        %v907 = vld [vmem:[#allocation10 + $0x2a0] sm:$0xff]
        %v908 = vld [vmem:[#allocation10 + $0x2a8] sm:$0xff]
        %v909 = vld [vmem:[#allocation10 + $0x2b0] sm:$0xff]
        %v910 = vld [vmem:[#allocation10 + $0x2b8] sm:$0xff]
        %v911 = vld [vmem:[#allocation10 + $0x2c0] sm:$0xff]
        %v912 = vld [vmem:[#allocation10 + $0x2c8] sm:$0xff]
        %v913 = vld [vmem:[#allocation10 + $0x2d0] sm:$0xff]
        %v914 = vld [vmem:[#allocation10 + $0x2d8] sm:$0xff]
        %v915 = vld [vmem:[#allocation10 + $0x2e0] sm:$0xff]
        %v916 = vld [vmem:[#allocation10 + $0x2e8] sm:$0xff]
        %v917 = vld [vmem:[#allocation10 + $0x2f0] sm:$0xff]
        %v918 = vld [vmem:[#allocation10 + $0x2f8] sm:$0xff]
        %v919 = vld [vmem:[#allocation10 + $0x300] sm:$0xff]
        %v920 = vld [vmem:[#allocation10 + $0x308] sm:$0xff]
        %v921 = vld [vmem:[#allocation10 + $0x310] sm:$0xff]
        %v922 = vld [vmem:[#allocation10 + $0x318] sm:$0xff]
        %v923 = vld [vmem:[#allocation10 + $0x320] sm:$0xff]
        %v924 = vld [vmem:[#allocation10 + $0x328] sm:$0xff]
        %v925 = vld [vmem:[#allocation10 + $0x330] sm:$0xff]
        %v926 = vld [vmem:[#allocation10 + $0x338] sm:$0xff]
        %v927 = vld [vmem:[#allocation10 + $0x340] sm:$0xff]
        %v928 = vld [vmem:[#allocation10 + $0x348] sm:$0xff]
        %v929 = vld [vmem:[#allocation10 + $0x350] sm:$0xff]
        %v930 = vld [vmem:[#allocation10 + $0x358] sm:$0xff]
        %v931 = vld [vmem:[#allocation10 + $0x360] sm:$0xff]
        %v932 = vld [vmem:[#allocation10 + $0x368] sm:$0xff]
        %v933 = vld [vmem:[#allocation10 + $0x370] sm:$0xff]
        %v934 = vld [vmem:[#allocation10 + $0x378] sm:$0xff]
        %v935 = vld [vmem:[#allocation10 + $0x380] sm:$0xff]
        %v936 = vld [vmem:[#allocation10 + $0x388] sm:$0xff]
        %v937 = vld [vmem:[#allocation10 + $0x390] sm:$0xff]
        %v938 = vld [vmem:[#allocation10 + $0x398] sm:$0xff]
        %v939 = vld [vmem:[#allocation10 + $0x3a0] sm:$0xff]
        %v940 = vld [vmem:[#allocation10 + $0x3a8] sm:$0xff]
        %v941 = vld [vmem:[#allocation10 + $0x3b0] sm:$0xff]
        %v942 = vld [vmem:[#allocation10 + $0x3b8] sm:$0xff]
        %v943 = vld [vmem:[#allocation10 + $0x3c0] sm:$0xff]
        %v944 = vld [vmem:[#allocation10 + $0x3c8] sm:$0xff]
        %v945 = vld [vmem:[#allocation10 + $0x3d0] sm:$0xff]
        %v946 = vld [vmem:[#allocation10 + $0x3d8] sm:$0xff]
        %v947 = vld [vmem:[#allocation10 + $0x3e0] sm:$0xff]
        %v948 = vld [vmem:[#allocation10 + $0x3e8] sm:$0xff]
        %v949 = vld [vmem:[#allocation10 + $0x3f0] sm:$0xff]
        %v950 = vld [vmem:[#allocation10 + $0x3f8] sm:$0xff]
        %v951 = vld [vmem:[#allocation10 + $0x400] sm:$0xff]
        %v952 = vld [vmem:[#allocation10 + $0x408] sm:$0xff]
        %v953 = vld [vmem:[#allocation10 + $0x410] sm:$0xff]
        %v954 = vld [vmem:[#allocation10 + $0x418] sm:$0xff]
        %v955 = vld [vmem:[#allocation10 + $0x420] sm:$0xff]
        %v956 = vld [vmem:[#allocation10 + $0x428] sm:$0xff]
        %v957 = vld [vmem:[#allocation10 + $0x430] sm:$0xff]
        %v958 = vld [vmem:[#allocation10 + $0x438] sm:$0xff]
        %v959 = vld [vmem:[#allocation10 + $0x440] sm:$0xff]
        %v960 = vld [vmem:[#allocation10 + $0x448] sm:$0xff]
        %v961 = vld [vmem:[#allocation10 + $0x450] sm:$0xff]
        %v962 = vld [vmem:[#allocation10 + $0x458] sm:$0xff]
        %v963 = vld [vmem:[#allocation10 + $0x460] sm:$0xff]
        %v964 = vld [vmem:[#allocation10 + $0x468] sm:$0xff]
        %v965 = vld [vmem:[#allocation10 + $0x470] sm:$0xff]
        %v966 = vld [vmem:[#allocation10 + $0x478] sm:$0xff]
        %v967 = vld [vmem:[#allocation10 + $0x480] sm:$0xff]
        %v968 = vld [vmem:[#allocation10 + $0x488] sm:$0xff]
        %v969 = vld [vmem:[#allocation10 + $0x490] sm:$0xff]
        %v970 = vld [vmem:[#allocation10 + $0x498] sm:$0xff]
        %v971 = vld [vmem:[#allocation10 + $0x4a0] sm:$0xff]
        %v972 = vld [vmem:[#allocation10 + $0x4a8] sm:$0xff]
        %v973 = vld [vmem:[#allocation10 + $0x4b0] sm:$0xff]
        %v974 = vld [vmem:[#allocation10 + $0x4b8] sm:$0xff]
        %v975 = vld [vmem:[#allocation10 + $0x4c0] sm:$0xff]
        %v976 = vld [vmem:[#allocation10 + $0x4c8] sm:$0xff]
        %v977 = vld [vmem:[#allocation10 + $0x4d0] sm:$0xff]
        %v978 = vld [vmem:[#allocation10 + $0x4d8] sm:$0xff]
        %v979 = vld [vmem:[#allocation10 + $0x4e0] sm:$0xff]
        %v980 = vld [vmem:[#allocation10 + $0x4e8] sm:$0xff]
        %v981 = vld [vmem:[#allocation10 + $0x4f0] sm:$0xff]
        %v982 = vld [vmem:[#allocation10 + $0x4f8] sm:$0xff]
        %v983 = vld [vmem:[#allocation10 + $0x500] sm:$0xff]
        %v984 = vld [vmem:[#allocation10 + $0x508] sm:$0xff]
        %v985 = vld [vmem:[#allocation10 + $0x510] sm:$0xff]
        %v986 = vld [vmem:[#allocation10 + $0x518] sm:$0xff]
        %v987 = vld [vmem:[#allocation10 + $0x520] sm:$0xff]
        %v988 = vld [vmem:[#allocation10 + $0x528] sm:$0xff]
        %v989 = vld [vmem:[#allocation10 + $0x530] sm:$0xff]
        %v990 = vld [vmem:[#allocation10 + $0x538] sm:$0xff]
        %v991 = vld [vmem:[#allocation10 + $0x540] sm:$0xff]
        %v992 = vld [vmem:[#allocation10 + $0x548] sm:$0xff]
        %v993 = vld [vmem:[#allocation10 + $0x550] sm:$0xff]
        %v994 = vld [vmem:[#allocation10 + $0x558] sm:$0xff]
        %v995 = vld [vmem:[#allocation10 + $0x560] sm:$0xff]
        %v996 = vld [vmem:[#allocation10 + $0x568] sm:$0xff]
        %v997 = vld [vmem:[#allocation10 + $0x570] sm:$0xff]
        %v998 = vld [vmem:[#allocation10 + $0x578] sm:$0xff]
        %v999 = vld [vmem:[#allocation10 + $0x580] sm:$0xff]
        %v1000 = vld [vmem:[#allocation10 + $0x588] sm:$0xff]
        %v1001 = vld [vmem:[#allocation10 + $0x590] sm:$0xff]
        %v1002 = vld [vmem:[#allocation10 + $0x598] sm:$0xff]
        %v1003 = vld [vmem:[#allocation10 + $0x5a0] sm:$0xff]
        %v1004 = vld [vmem:[#allocation10 + $0x5a8] sm:$0xff]
        %v1005 = vld [vmem:[#allocation10 + $0x5b0] sm:$0xff]
        %v1006 = vld [vmem:[#allocation10 + $0x5b8] sm:$0xff]
        %v1007 = vld [vmem:[#allocation10 + $0x5c0] sm:$0xff]
        %v1008 = vld [vmem:[#allocation10 + $0x5c8] sm:$0xff]
        %v1009 = vld [vmem:[#allocation10 + $0x5d0] sm:$0xff]
        %v1010 = vld [vmem:[#allocation10 + $0x5d8] sm:$0xff]
        %v1011 = vld [vmem:[#allocation10 + $0x5e0] sm:$0xff]
        %v1012 = vld [vmem:[#allocation10 + $0x5e8] sm:$0xff]
        %v1013 = vld [vmem:[#allocation10 + $0x5f0] sm:$0xff]
        %v1014 = vld [vmem:[#allocation10 + $0x5f8] sm:$0xff]
        %v1015 = vld [vmem:[#allocation10 + $0x600] sm:$0xff]
        %v1016 = vld [vmem:[#allocation10 + $0x608] sm:$0xff]
        %v1017 = vld [vmem:[#allocation10 + $0x610] sm:$0xff]
        %v1018 = vld [vmem:[#allocation10 + $0x618] sm:$0xff]
        %v1019 = vld [vmem:[#allocation10 + $0x620] sm:$0xff]
        %v1020 = vld [vmem:[#allocation10 + $0x628] sm:$0xff]
        %v1021 = vld [vmem:[#allocation10 + $0x630] sm:$0xff]
        %v1022 = vld [vmem:[#allocation10 + $0x638] sm:$0xff]
        %v1023 = vld [vmem:[#allocation10 + $0x640] sm:$0xff]
        %v1024 = vld [vmem:[#allocation10 + $0x648] sm:$0xff]
        %v1025 = vld [vmem:[#allocation10 + $0x650] sm:$0xff]
        %v1026 = vld [vmem:[#allocation10 + $0x658] sm:$0xff]
        %v1027 = vld [vmem:[#allocation10 + $0x660] sm:$0xff]
        %v1028 = vld [vmem:[#allocation10 + $0x668] sm:$0xff]
        %v1029 = vld [vmem:[#allocation10 + $0x670] sm:$0xff]
        %v1030 = vld [vmem:[#allocation10 + $0x678] sm:$0xff]
        %v1031 = vld [vmem:[#allocation10 + $0x680] sm:$0xff]
        %v1032 = vld [vmem:[#allocation10 + $0x688] sm:$0xff]
        %v1033 = vld [vmem:[#allocation10 + $0x690] sm:$0xff]
        %v1034 = vld [vmem:[#allocation10 + $0x698] sm:$0xff]
        %v1035 = vld [vmem:[#allocation10 + $0x6a0] sm:$0xff]
        %v1036 = vld [vmem:[#allocation10 + $0x6a8] sm:$0xff]
        %v1037 = vld [vmem:[#allocation10 + $0x6b0] sm:$0xff]
        %v1038 = vld [vmem:[#allocation10 + $0x6b8] sm:$0xff]
        %v1039 = vld [vmem:[#allocation10 + $0x6c0] sm:$0xff]
        %v1040 = vld [vmem:[#allocation10 + $0x6c8] sm:$0xff]
        %v1041 = vld [vmem:[#allocation10 + $0x6d0] sm:$0xff]
        %v1042 = vld [vmem:[#allocation10 + $0x6d8] sm:$0xff]
        %v1043 = vld [vmem:[#allocation10 + $0x6e0] sm:$0xff]
        %v1044 = vld [vmem:[#allocation10 + $0x6e8] sm:$0xff]
        %v1045 = vld [vmem:[#allocation10 + $0x6f0] sm:$0xff]
        %v1046 = vld [vmem:[#allocation10 + $0x6f8] sm:$0xff]
        %v1047 = vld [vmem:[#allocation10 + $0x700] sm:$0xff]
        %v1048 = vld [vmem:[#allocation10 + $0x708] sm:$0xff]
        %v1049 = vld [vmem:[#allocation10 + $0x710] sm:$0xff]
        %v1050 = vld [vmem:[#allocation10 + $0x718] sm:$0xff]
        %v1051 = vld [vmem:[#allocation10 + $0x720] sm:$0xff]
        %v1052 = vld [vmem:[#allocation10 + $0x728] sm:$0xff]
        %v1053 = vld [vmem:[#allocation10 + $0x730] sm:$0xff]
        %v1054 = vld [vmem:[#allocation10 + $0x738] sm:$0xff]
        %v1055 = vld [vmem:[#allocation10 + $0x740] sm:$0xff]
        %v1056 = vld [vmem:[#allocation10 + $0x748] sm:$0xff]
        %v1057 = vld [vmem:[#allocation10 + $0x750] sm:$0xff]
        %v1058 = vld [vmem:[#allocation10 + $0x758] sm:$0xff]
        %v1059 = vld [vmem:[#allocation10 + $0x760] sm:$0xff]
        %v1060 = vld [vmem:[#allocation10 + $0x768] sm:$0xff]
        %v1061 = vld [vmem:[#allocation10 + $0x770] sm:$0xff]
        %v1062 = vld [vmem:[#allocation10 + $0x778] sm:$0xff]
        %v1063 = vld [vmem:[#allocation10 + $0x780] sm:$0xff]
        %v1064 = vld [vmem:[#allocation10 + $0x788] sm:$0xff]
        %v1065 = vld [vmem:[#allocation10 + $0x790] sm:$0xff]
        %v1066 = vld [vmem:[#allocation10 + $0x798] sm:$0xff]
        %v1067 = vld [vmem:[#allocation10 + $0x7a0] sm:$0xff]
        %v1068 = vld [vmem:[#allocation10 + $0x7a8] sm:$0xff]
        %v1069 = vld [vmem:[#allocation10 + $0x7b0] sm:$0xff]
        %v1070 = vld [vmem:[#allocation10 + $0x7b8] sm:$0xff]
        %v1071 = vld [vmem:[#allocation10 + $0x7c0] sm:$0xff]
        %v1072 = vld [vmem:[#allocation10 + $0x7c8] sm:$0xff]
        %v1073 = vld [vmem:[#allocation10 + $0x7d0] sm:$0xff]
        %v1074 = vld [vmem:[#allocation10 + $0x7d8] sm:$0xff]
        %v1075 = vld [vmem:[#allocation10 + $0x7e0] sm:$0xff]
        %v1076 = vld [vmem:[#allocation10 + $0x7e8] sm:$0xff]
        %v1077 = vld [vmem:[#allocation10 + $0x7f0] sm:$0xff]
        %v1078 = vld [vmem:[#allocation10 + $0x7f8] sm:$0xff]
        %v1079 = vld [vmem:[%s411] sm:$0xff]
        %v1080 = vld [vmem:[%s411 + $0x8] sm:$0xff]
        %v1081 = vld [vmem:[%s411 + $0x10] sm:$0xff]
        %v1082 = vld [vmem:[%s411 + $0x18] sm:$0xff]
        %v1083 = vld [vmem:[%s411 + $0x20] sm:$0xff]
        %v1084 = vld [vmem:[%s411 + $0x28] sm:$0xff]
        %v1085 = vld [vmem:[%s411 + $0x30] sm:$0xff]
        %v1086 = vld [vmem:[%s411 + $0x38] sm:$0xff]
        %1088 = vset.pattern.permute.xlu0 0
        %1089 = vperm.xlu0 %1088, %v563
        %v1090 = vpop.permute.xlu0 %1089
        %v1092 = vmul.f32 %v1079, %v1090
        %v1093 = vmul.f32 %v1080, %v1090
        %v1094 = vmul.f32 %v1081, %v1090
        %v1095 = vmul.f32 %v1082, %v1090
        %v1096 = vmul.f32 %v1083, %v1090
        %v1097 = vmul.f32 %v1084, %v1090
        %v1098 = vmul.f32 %v1085, %v1090
        %v1099 = vmul.f32 %v1086, %v1090
        %1101 = vset.pattern.permute.xlu0 0
        %1102 = vperm.xlu0 %1101, %v564
        %v1103 = vpop.permute.xlu0 %1102
        %v1105 = vadd.f32 %v1092, %v1103
        %v1106 = vadd.f32 %v1093, %v1103
        %v1107 = vadd.f32 %v1094, %v1103
        %v1108 = vadd.f32 %v1095, %v1103
        %v1109 = vadd.f32 %v1096, %v1103
        %v1110 = vadd.f32 %v1097, %v1103
        %v1111 = vadd.f32 %v1098, %v1103
        %v1112 = vadd.f32 %v1099, %v1103
        %v1113 = vmul.f32 %v1105, 0.1
        %v1114 = vmul.f32 %v1106, 0.1
        %v1115 = vmul.f32 %v1107, 0.1
        %v1116 = vmul.f32 %v1108, 0.1
        %v1117 = vmul.f32 %v1109, 0.1
        %v1118 = vmul.f32 %v1110, 0.1
        %v1119 = vmul.f32 %v1111, 0.1
        %v1120 = vmul.f32 %v1112, 0.1
        %v1121 = vmax.f32 %v1105, %v1113
        %v1122 = vmax.f32 %v1106, %v1114
        %v1123 = vmax.f32 %v1107, %v1115
        %v1124 = vmax.f32 %v1108, %v1116
        %v1125 = vmax.f32 %v1109, %v1117
        %v1126 = vmax.f32 %v1110, %v1118
        %v1127 = vmax.f32 %v1111, %v1119
        %v1128 = vmax.f32 %v1112, %v1120
        %1129 = vrot.lane.b32.xlu0 %v1121, 17
        %v1130 = vpop.permute.xlu0 %1129
        %1131 = vrot.lane.b32.xlu0 %v1122, 17
        %v1132 = vpop.permute.xlu0 %1131
        %1133 = vrot.lane.b32.xlu0 %v1123, 17
        %v1134 = vpop.permute.xlu0 %1133
        %1135 = vrot.lane.b32.xlu0 %v1124, 17
        %v1136 = vpop.permute.xlu0 %1135
        %1137 = vrot.lane.b32.xlu0 %v1125, 17
        %v1138 = vpop.permute.xlu0 %1137
        %1139 = vrot.lane.b32.xlu0 %v1126, 17
        %v1140 = vpop.permute.xlu0 %1139
        %1141 = vrot.lane.b32.xlu0 %v1127, 17
        %v1142 = vpop.permute.xlu0 %1141
        %1143 = vrot.lane.b32.xlu0 %v1128, 17
        %v1144 = vpop.permute.xlu0 %1143
        %v1145 = vlaneseq
        %v1146 = vand.u32 %v1145, 127
        %vm1147 = vcmp.lt.s32.totalorder %v1146, 17
        %v1148 = vsel %vm1147, %v1142, %v1144
        %v1149 = vsel %vm1147, %v1140, %v1142
        %v1150 = vsel %vm1147, %v1138, %v1140
        %v1151 = vsel %vm1147, %v1136, %v1138
        %v1152 = vsel %vm1147, %v1134, %v1136
        %v1153 = vsel %vm1147, %v1132, %v1134
        %v1154 = vsel %vm1147, %v1130, %v1132
        %v1155 = vsel %vm1147, %v1144, %v1130
        %1156 = vrot.lane.b32.xlu0 %v1121, 16
        %v1157 = vpop.permute.xlu0 %1156
        %1158 = vrot.lane.b32.xlu0 %v1122, 16
        %v1159 = vpop.permute.xlu0 %1158
        %1160 = vrot.lane.b32.xlu0 %v1123, 16
        %v1161 = vpop.permute.xlu0 %1160
        %1162 = vrot.lane.b32.xlu0 %v1124, 16
        %v1163 = vpop.permute.xlu0 %1162
        %1164 = vrot.lane.b32.xlu0 %v1125, 16
        %v1165 = vpop.permute.xlu0 %1164
        %1166 = vrot.lane.b32.xlu0 %v1126, 16
        %v1167 = vpop.permute.xlu0 %1166
        %1168 = vrot.lane.b32.xlu0 %v1127, 16
        %v1169 = vpop.permute.xlu0 %1168
        %1170 = vrot.lane.b32.xlu0 %v1128, 16
        %v1171 = vpop.permute.xlu0 %1170
        %vm1172 = vcmp.lt.s32.totalorder %v1146, 16
        %v1173 = vsel %vm1172, %v1169, %v1171
        %v1174 = vsel %vm1172, %v1167, %v1169
        %v1175 = vsel %vm1172, %v1165, %v1167
        %v1176 = vsel %vm1172, %v1163, %v1165
        %v1177 = vsel %vm1172, %v1161, %v1163
        %v1178 = vsel %vm1172, %v1159, %v1161
        %v1179 = vsel %vm1172, %v1157, %v1159
        %v1180 = vsel %vm1172, %v1171, %v1157
        %1181 = vrot.lane.b32.xlu0 %v1121, 15
        %v1182 = vpop.permute.xlu0 %1181
        %1183 = vrot.lane.b32.xlu0 %v1122, 15
        %v1184 = vpop.permute.xlu0 %1183
        %1185 = vrot.lane.b32.xlu0 %v1123, 15
        %v1186 = vpop.permute.xlu0 %1185
        %1187 = vrot.lane.b32.xlu0 %v1124, 15
        %v1188 = vpop.permute.xlu0 %1187
        %1189 = vrot.lane.b32.xlu0 %v1125, 15
        %v1190 = vpop.permute.xlu0 %1189
        %1191 = vrot.lane.b32.xlu0 %v1126, 15
        %v1192 = vpop.permute.xlu0 %1191
        %1193 = vrot.lane.b32.xlu0 %v1127, 15
        %v1194 = vpop.permute.xlu0 %1193
        %1195 = vrot.lane.b32.xlu0 %v1128, 15
        %v1196 = vpop.permute.xlu0 %1195
        %vm1197 = vcmp.lt.s32.totalorder %v1146, 15
        %v1198 = vsel %vm1197, %v1194, %v1196
        %v1199 = vsel %vm1197, %v1192, %v1194
        %v1200 = vsel %vm1197, %v1190, %v1192
        %v1201 = vsel %vm1197, %v1188, %v1190
        %v1202 = vsel %vm1197, %v1186, %v1188
        %v1203 = vsel %vm1197, %v1184, %v1186
        %v1204 = vsel %vm1197, %v1182, %v1184
        %v1205 = vsel %vm1197, %v1196, %v1182
        %1206 = vrot.lane.b32.xlu0 %v1121, 1
        %v1207 = vpop.permute.xlu0 %1206
        %1208 = vrot.lane.b32.xlu0 %v1122, 1
        %v1209 = vpop.permute.xlu0 %1208
        %1210 = vrot.lane.b32.xlu0 %v1123, 1
        %v1211 = vpop.permute.xlu0 %1210
        %1212 = vrot.lane.b32.xlu0 %v1124, 1
        %v1213 = vpop.permute.xlu0 %1212
        %1214 = vrot.lane.b32.xlu0 %v1125, 1
        %v1215 = vpop.permute.xlu0 %1214
        %1216 = vrot.lane.b32.xlu0 %v1126, 1
        %v1217 = vpop.permute.xlu0 %1216
        %1218 = vrot.lane.b32.xlu0 %v1127, 1
        %v1219 = vpop.permute.xlu0 %1218
        %1220 = vrot.lane.b32.xlu0 %v1128, 1
        %v1221 = vpop.permute.xlu0 %1220
        %vm1222 = vcmp.lt.s32.totalorder %v1146, 1
        %v1223 = vsel %vm1222, %v1219, %v1221
        %v1224 = vsel %vm1222, %v1217, %v1219
        %v1225 = vsel %vm1222, %v1215, %v1217
        %v1226 = vsel %vm1222, %v1213, %v1215
        %v1227 = vsel %vm1222, %v1211, %v1213
        %v1228 = vsel %vm1222, %v1209, %v1211
        %v1229 = vsel %vm1222, %v1207, %v1209
        %v1230 = vsel %vm1222, %v1221, %v1207
        %1231 = vrot.lane.b32.xlu0 %v1121, 127
        %v1232 = vpop.permute.xlu0 %1231
        %1233 = vrot.lane.b32.xlu0 %v1122, 127
        %v1234 = vpop.permute.xlu0 %1233
        %1235 = vrot.lane.b32.xlu0 %v1123, 127
        %v1236 = vpop.permute.xlu0 %1235
        %1237 = vrot.lane.b32.xlu0 %v1124, 127
        %v1238 = vpop.permute.xlu0 %1237
        %1239 = vrot.lane.b32.xlu0 %v1125, 127
        %v1240 = vpop.permute.xlu0 %1239
        %1241 = vrot.lane.b32.xlu0 %v1126, 127
        %v1242 = vpop.permute.xlu0 %1241
        %1243 = vrot.lane.b32.xlu0 %v1127, 127
        %v1244 = vpop.permute.xlu0 %1243
        %1245 = vrot.lane.b32.xlu0 %v1128, 127
        %v1246 = vpop.permute.xlu0 %1245
        %vm1247 = vcmp.lt.s32.totalorder %v1146, 127
        %v1248 = vsel %vm1247, %v1244, %v1246
        %v1249 = vsel %vm1247, %v1242, %v1244
        %v1250 = vsel %vm1247, %v1240, %v1242
        %v1251 = vsel %vm1247, %v1238, %v1240
        %v1252 = vsel %vm1247, %v1236, %v1238
        %v1253 = vsel %vm1247, %v1234, %v1236
        %v1254 = vsel %vm1247, %v1232, %v1234
        %v1255 = vsel %vm1247, %v1246, %v1232
        %1256 = vrot.lane.b32.xlu0 %v1121, 113
        %v1257 = vpop.permute.xlu0 %1256
        %1258 = vrot.lane.b32.xlu0 %v1122, 113
        %v1259 = vpop.permute.xlu0 %1258
        %1260 = vrot.lane.b32.xlu0 %v1123, 113
        %v1261 = vpop.permute.xlu0 %1260
        %1262 = vrot.lane.b32.xlu0 %v1124, 113
        %v1263 = vpop.permute.xlu0 %1262
        %1264 = vrot.lane.b32.xlu0 %v1125, 113
        %v1265 = vpop.permute.xlu0 %1264
        %1266 = vrot.lane.b32.xlu0 %v1126, 113
        %v1267 = vpop.permute.xlu0 %1266
        %1268 = vrot.lane.b32.xlu0 %v1127, 113
        %v1269 = vpop.permute.xlu0 %1268
        %1270 = vrot.lane.b32.xlu0 %v1128, 113
        %v1271 = vpop.permute.xlu0 %1270
        %vm1272 = vcmp.lt.s32.totalorder %v1146, 113
        %v1273 = vsel %vm1272, %v1269, %v1271
        %v1274 = vsel %vm1272, %v1267, %v1269
        %v1275 = vsel %vm1272, %v1265, %v1267
        %v1276 = vsel %vm1272, %v1263, %v1265
        %v1277 = vsel %vm1272, %v1261, %v1263
        %v1278 = vsel %vm1272, %v1259, %v1261
        %v1279 = vsel %vm1272, %v1257, %v1259
        %v1280 = vsel %vm1272, %v1271, %v1257
        %1281 = vrot.lane.b32.xlu0 %v1121, 112
        %v1282 = vpop.permute.xlu0 %1281
        %1283 = vrot.lane.b32.xlu0 %v1122, 112
        %v1284 = vpop.permute.xlu0 %1283
        %1285 = vrot.lane.b32.xlu0 %v1123, 112
        %v1286 = vpop.permute.xlu0 %1285
        %1287 = vrot.lane.b32.xlu0 %v1124, 112
        %v1288 = vpop.permute.xlu0 %1287
        %1289 = vrot.lane.b32.xlu0 %v1125, 112
        %v1290 = vpop.permute.xlu0 %1289
        %1291 = vrot.lane.b32.xlu0 %v1126, 112
        %v1292 = vpop.permute.xlu0 %1291
        %1293 = vrot.lane.b32.xlu0 %v1127, 112
        %v1294 = vpop.permute.xlu0 %1293
        %1295 = vrot.lane.b32.xlu0 %v1128, 112
        %v1296 = vpop.permute.xlu0 %1295
        %vm1297 = vcmp.lt.s32.totalorder %v1146, 112
        %v1298 = vsel %vm1297, %v1294, %v1296
        %v1299 = vsel %vm1297, %v1292, %v1294
        %v1300 = vsel %vm1297, %v1290, %v1292
        %v1301 = vsel %vm1297, %v1288, %v1290
        %v1302 = vsel %vm1297, %v1286, %v1288
        %v1303 = vsel %vm1297, %v1284, %v1286
        %v1304 = vsel %vm1297, %v1282, %v1284
        %v1305 = vsel %vm1297, %v1296, %v1282
        %1306 = vrot.lane.b32.xlu0 %v1121, 111
        %v1307 = vpop.permute.xlu0 %1306
        %1308 = vrot.lane.b32.xlu0 %v1122, 111
        %v1309 = vpop.permute.xlu0 %1308
        %1310 = vrot.lane.b32.xlu0 %v1123, 111
        %v1311 = vpop.permute.xlu0 %1310
        %1312 = vrot.lane.b32.xlu0 %v1124, 111
        %v1313 = vpop.permute.xlu0 %1312
        %1314 = vrot.lane.b32.xlu0 %v1125, 111
        %v1315 = vpop.permute.xlu0 %1314
        %1316 = vrot.lane.b32.xlu0 %v1126, 111
        %v1317 = vpop.permute.xlu0 %1316
        %1318 = vrot.lane.b32.xlu0 %v1127, 111
        %v1319 = vpop.permute.xlu0 %1318
        %1320 = vrot.lane.b32.xlu0 %v1128, 111
        %v1321 = vpop.permute.xlu0 %1320
        %vm1322 = vcmp.lt.s32.totalorder %v1146, 111
        %v1323 = vsel %vm1322, %v1319, %v1321
        %v1324 = vsel %vm1322, %v1317, %v1319
        %v1325 = vsel %vm1322, %v1315, %v1317
        %v1326 = vsel %vm1322, %v1313, %v1315
        %v1327 = vsel %vm1322, %v1311, %v1313
        %v1328 = vsel %vm1322, %v1309, %v1311
        %v1329 = vsel %vm1322, %v1307, %v1309
        %v1330 = vsel %vm1322, %v1321, %v1307
        %v1331 = vmul.f32 %v1155, %v473
        %v1332 = vmul.f32 %v1154, %v474
        %v1333 = vmul.f32 %v1153, %v475
        %v1334 = vmul.f32 %v1152, %v476
        %v1335 = vmul.f32 %v1151, %v477
        %v1336 = vmul.f32 %v1150, %v478
        %v1337 = vmul.f32 %v1149, %v479
        %v1338 = vmul.f32 %v1148, %v480
        %v1339 = vmul.f32 %v1180, %v481
        %v1340 = vmul.f32 %v1179, %v482
        %v1341 = vmul.f32 %v1178, %v483
        %v1342 = vmul.f32 %v1177, %v484
        %v1343 = vmul.f32 %v1176, %v485
        %v1344 = vmul.f32 %v1175, %v486
        %v1345 = vmul.f32 %v1174, %v487
        %v1346 = vmul.f32 %v1173, %v488
        %v1347 = vmul.f32 %v1205, %v489
        %v1348 = vmul.f32 %v1204, %v490
        %v1349 = vmul.f32 %v1203, %v491
        %v1350 = vmul.f32 %v1202, %v492
        %v1351 = vmul.f32 %v1201, %v493
        %v1352 = vmul.f32 %v1200, %v494
        %v1353 = vmul.f32 %v1199, %v495
        %v1354 = vmul.f32 %v1198, %v496
        %v1355 = vmul.f32 %v1230, %v497
        %v1356 = vmul.f32 %v1229, %v498
        %v1357 = vmul.f32 %v1228, %v499
        %v1358 = vmul.f32 %v1227, %v500
        %v1359 = vmul.f32 %v1226, %v501
        %v1360 = vmul.f32 %v1225, %v502
        %v1361 = vmul.f32 %v1224, %v503
        %v1362 = vmul.f32 %v1223, %v504
        %v1363 = vmul.f32 %v1121, %v505
        %v1364 = vmul.f32 %v1122, %v506
        %v1365 = vmul.f32 %v1123, %v507
        %v1366 = vmul.f32 %v1124, %v508
        %v1367 = vmul.f32 %v1125, %v509
        %v1368 = vmul.f32 %v1126, %v510
        %v1369 = vmul.f32 %v1127, %v511
        %v1370 = vmul.f32 %v1128, %v512
        %v1371 = vmul.f32 %v1254, %v513
        %v1372 = vmul.f32 %v1253, %v514
        %v1373 = vmul.f32 %v1252, %v515
        %v1374 = vmul.f32 %v1251, %v516
        %v1375 = vmul.f32 %v1250, %v517
        %v1376 = vmul.f32 %v1249, %v518
        %v1377 = vmul.f32 %v1248, %v519
        %v1378 = vmul.f32 %v1255, %v520
        %v1379 = vmul.f32 %v1279, %v521
        %v1380 = vmul.f32 %v1278, %v522
        %v1381 = vmul.f32 %v1277, %v523
        %v1382 = vmul.f32 %v1276, %v524
        %v1383 = vmul.f32 %v1275, %v525
        %v1384 = vmul.f32 %v1274, %v526
        %v1385 = vmul.f32 %v1273, %v527
        %v1386 = vmul.f32 %v1280, %v528
        %v1387 = vmul.f32 %v1304, %v529
        %v1388 = vmul.f32 %v1303, %v530
        %v1389 = vmul.f32 %v1302, %v531
        %v1390 = vmul.f32 %v1301, %v532
        %v1391 = vmul.f32 %v1300, %v533
        %v1392 = vmul.f32 %v1299, %v534
        %v1393 = vmul.f32 %v1298, %v535
        %v1394 = vmul.f32 %v1305, %v536
        %v1395 = vmul.f32 %v1329, %v537
        %v1396 = vmul.f32 %v1328, %v538
        %v1397 = vmul.f32 %v1327, %v539
        %v1398 = vmul.f32 %v1326, %v540
        %v1399 = vmul.f32 %v1325, %v541
        %v1400 = vmul.f32 %v1324, %v542
        %v1401 = vmul.f32 %v1323, %v543
        %v1402 = vmul.f32 %v1330, %v544
        %vm1403 = vcmask 588800
        %v1405 = vsel %vm1403, %v471, 0
        %1407 = vmatpush.msra.mxu0 0.0
        %1408 = vmatpush.msra.mxu0 0.0
        %1409 = vmatpush.msra.mxu0 0.0
        %1410 = vmatpush.msra.mxu0 0.0
        %1411 = vmatpush.msra.mxu0 0.0
        %1412 = vmatpush.msra.mxu0 0.0
        %1413 = vmatpush.msra.mxu0 0.0
        %1414 = vmatpush.msra.mxu0 %v1395
        %1415 = vmatpush.msra.mxu0 %v1387
        %1416 = vmatpush.msra.mxu0 %v1379
        %1417 = vmatpush.msra.mxu0 %v1371
        %1418 = vmatpush.msra.mxu0 %v1363
        %1419 = vmatpush.msra.mxu0 %v1355
        %1420 = vmatpush.msra.mxu0 %v1347
        %1421 = vmatpush.msra.mxu0 %v1339
        %1422 = vmatpush.msra.mxu0 %v1331
        %1423 = vmatmul.f32.gmra.mxu0 %v1405
        %v1424 = vpop.f32.mrf.mxu0
        %v1425 = vadd.f32 0.0, %v1424
        %1426 = vdwg.mxu0
        %1427 = vmatpush.msra.mxu0 0.0
        %1428 = vmatpush.msra.mxu0 0.0
        %1429 = vmatpush.msra.mxu0 0.0
        %1430 = vmatpush.msra.mxu0 0.0
        %1431 = vmatpush.msra.mxu0 0.0
        %1432 = vmatpush.msra.mxu0 0.0
        %1433 = vmatpush.msra.mxu0 0.0
        %1434 = vmatpush.msra.mxu0 %v1396
        %1435 = vmatpush.msra.mxu0 %v1388
        %1436 = vmatpush.msra.mxu0 %v1380
        %1437 = vmatpush.msra.mxu0 %v1372
        %1438 = vmatpush.msra.mxu0 %v1364
        %1439 = vmatpush.msra.mxu0 %v1356
        %1440 = vmatpush.msra.mxu0 %v1348
        %1441 = vmatpush.msra.mxu0 %v1340
        %1442 = vmatpush.msra.mxu0 %v1332
        %1443 = vmatmul.f32.gmra.mxu0 %v1405
        %v1444 = vpop.f32.mrf.mxu0
        %v1445 = vadd.f32 0.0, %v1444
        %1446 = vdwg.mxu0
        %1447 = vmatpush.msra.mxu0 0.0
        %1448 = vmatpush.msra.mxu0 0.0
        %1449 = vmatpush.msra.mxu0 0.0
        %1450 = vmatpush.msra.mxu0 0.0
        %1451 = vmatpush.msra.mxu0 0.0
        %1452 = vmatpush.msra.mxu0 0.0
        %1453 = vmatpush.msra.mxu0 0.0
        %1454 = vmatpush.msra.mxu0 %v1397
        %1455 = vmatpush.msra.mxu0 %v1389
        %1456 = vmatpush.msra.mxu0 %v1381
        %1457 = vmatpush.msra.mxu0 %v1373
        %1458 = vmatpush.msra.mxu0 %v1365
        %1459 = vmatpush.msra.mxu0 %v1357
        %1460 = vmatpush.msra.mxu0 %v1349
        %1461 = vmatpush.msra.mxu0 %v1341
        %1462 = vmatpush.msra.mxu0 %v1333
        %1463 = vmatmul.f32.gmra.mxu0 %v1405
        %v1464 = vpop.f32.mrf.mxu0
        %v1465 = vadd.f32 0.0, %v1464
        %1466 = vdwg.mxu0
        %1467 = vmatpush.msra.mxu0 0.0
        %1468 = vmatpush.msra.mxu0 0.0
        %1469 = vmatpush.msra.mxu0 0.0
        %1470 = vmatpush.msra.mxu0 0.0
        %1471 = vmatpush.msra.mxu0 0.0
        %1472 = vmatpush.msra.mxu0 0.0
        %1473 = vmatpush.msra.mxu0 0.0
        %1474 = vmatpush.msra.mxu0 %v1398
        %1475 = vmatpush.msra.mxu0 %v1390
        %1476 = vmatpush.msra.mxu0 %v1382
        %1477 = vmatpush.msra.mxu0 %v1374
        %1478 = vmatpush.msra.mxu0 %v1366
        %1479 = vmatpush.msra.mxu0 %v1358
        %1480 = vmatpush.msra.mxu0 %v1350
        %1481 = vmatpush.msra.mxu0 %v1342
        %1482 = vmatpush.msra.mxu0 %v1334
        %1483 = vmatmul.f32.gmra.mxu0 %v1405
        %v1484 = vpop.f32.mrf.mxu0
        %v1485 = vadd.f32 0.0, %v1484
        %1486 = vdwg.mxu0
        %1487 = vmatpush.msra.mxu0 0.0
        %1488 = vmatpush.msra.mxu0 0.0
        %1489 = vmatpush.msra.mxu0 0.0
        %1490 = vmatpush.msra.mxu0 0.0
        %1491 = vmatpush.msra.mxu0 0.0
        %1492 = vmatpush.msra.mxu0 0.0
        %1493 = vmatpush.msra.mxu0 0.0
        %1494 = vmatpush.msra.mxu0 %v1399
        %1495 = vmatpush.msra.mxu0 %v1391
        %1496 = vmatpush.msra.mxu0 %v1383
        %1497 = vmatpush.msra.mxu0 %v1375
        %1498 = vmatpush.msra.mxu0 %v1367
        %1499 = vmatpush.msra.mxu0 %v1359
        %1500 = vmatpush.msra.mxu0 %v1351
        %1501 = vmatpush.msra.mxu0 %v1343
        %1502 = vmatpush.msra.mxu0 %v1335
        %1503 = vmatmul.f32.gmra.mxu0 %v1405
        %v1504 = vpop.f32.mrf.mxu0
        %v1505 = vadd.f32 0.0, %v1504
        %1506 = vdwg.mxu0
        %1507 = vmatpush.msra.mxu0 0.0
        %1508 = vmatpush.msra.mxu0 0.0
        %1509 = vmatpush.msra.mxu0 0.0
        %1510 = vmatpush.msra.mxu0 0.0
        %1511 = vmatpush.msra.mxu0 0.0
        %1512 = vmatpush.msra.mxu0 0.0
        %1513 = vmatpush.msra.mxu0 0.0
        %1514 = vmatpush.msra.mxu0 %v1400
        %1515 = vmatpush.msra.mxu0 %v1392
        %1516 = vmatpush.msra.mxu0 %v1384
        %1517 = vmatpush.msra.mxu0 %v1376
        %1518 = vmatpush.msra.mxu0 %v1368
        %1519 = vmatpush.msra.mxu0 %v1360
        %1520 = vmatpush.msra.mxu0 %v1352
        %1521 = vmatpush.msra.mxu0 %v1344
        %1522 = vmatpush.msra.mxu0 %v1336
        %1523 = vmatmul.f32.gmra.mxu0 %v1405
        %v1524 = vpop.f32.mrf.mxu0
        %v1525 = vadd.f32 0.0, %v1524
        %1526 = vdwg.mxu0
        %1527 = vmatpush.msra.mxu0 0.0
        %1528 = vmatpush.msra.mxu0 0.0
        %1529 = vmatpush.msra.mxu0 0.0
        %1530 = vmatpush.msra.mxu0 0.0
        %1531 = vmatpush.msra.mxu0 0.0
        %1532 = vmatpush.msra.mxu0 0.0
        %1533 = vmatpush.msra.mxu0 0.0
        %1534 = vmatpush.msra.mxu0 %v1401
        %1535 = vmatpush.msra.mxu0 %v1393
        %1536 = vmatpush.msra.mxu0 %v1385
        %1537 = vmatpush.msra.mxu0 %v1377
        %1538 = vmatpush.msra.mxu0 %v1369
        %1539 = vmatpush.msra.mxu0 %v1361
        %1540 = vmatpush.msra.mxu0 %v1353
        %1541 = vmatpush.msra.mxu0 %v1345
        %1542 = vmatpush.msra.mxu0 %v1337
        %1543 = vmatmul.f32.gmra.mxu0 %v1405
        %v1544 = vpop.f32.mrf.mxu0
        %v1545 = vadd.f32 0.0, %v1544
        %1546 = vdwg.mxu0
        %1547 = vmatpush.msra.mxu0 0.0
        %1548 = vmatpush.msra.mxu0 0.0
        %1549 = vmatpush.msra.mxu0 0.0
        %1550 = vmatpush.msra.mxu0 0.0
        %1551 = vmatpush.msra.mxu0 0.0
        %1552 = vmatpush.msra.mxu0 0.0
        %1553 = vmatpush.msra.mxu0 0.0
        %1554 = vmatpush.msra.mxu0 %v1402
        %1555 = vmatpush.msra.mxu0 %v1394
        %1556 = vmatpush.msra.mxu0 %v1386
        %1557 = vmatpush.msra.mxu0 %v1378
        %1558 = vmatpush.msra.mxu0 %v1370
        %1559 = vmatpush.msra.mxu0 %v1362
        %1560 = vmatpush.msra.mxu0 %v1354
        %1561 = vmatpush.msra.mxu0 %v1346
        %1562 = vmatpush.msra.mxu0 %v1338
        %1563 = vmatmul.f32.gmra.mxu0 %v1405
        %v1564 = vpop.f32.mrf.mxu0
        %v1565 = vadd.f32 0.0, %v1564
        %1566 = vdwg.mxu0
        %1567 = vmatpush.msra.mxu0 %v597
        %1568 = vmatpush.msra.mxu0 %v595
        %1569 = vmatpush.msra.mxu0 %v593
        %1570 = vmatpush.msra.mxu0 %v591
        %1571 = vmatpush.msra.mxu0 %v589
        %1572 = vmatpush.msra.mxu0 %v587
        %1573 = vmatpush.msra.mxu0 %v585
        %1574 = vmatpush.msra.mxu0 %v583
        %1575 = vmatpush.msra.mxu0 %v581
        %1576 = vmatpush.msra.mxu0 %v579
        %1577 = vmatpush.msra.mxu0 %v577
        %1578 = vmatpush.msra.mxu0 %v575
        %1579 = vmatpush.msra.mxu0 %v573
        %1580 = vmatpush.msra.mxu0 %v571
        %1581 = vmatpush.msra.mxu0 %v569
        %1582 = vmatpush.msra.mxu0 %v567
        %1583 = vmatmul.f32.gmra.mxu0 %v1425
        %v1584 = vpop.f32.mrf.mxu0
        %v1585 = vadd.f32 0.0, %v1584
        %1586 = vdwg.mxu0
        %1587 = vmatpush.msra.mxu0 %v629
        %1588 = vmatpush.msra.mxu0 %v627
        %1589 = vmatpush.msra.mxu0 %v625
        %1590 = vmatpush.msra.mxu0 %v623
        %1591 = vmatpush.msra.mxu0 %v621
        %1592 = vmatpush.msra.mxu0 %v619
        %1593 = vmatpush.msra.mxu0 %v617
        %1594 = vmatpush.msra.mxu0 %v615
        %1595 = vmatpush.msra.mxu0 %v613
        %1596 = vmatpush.msra.mxu0 %v611
        %1597 = vmatpush.msra.mxu0 %v609
        %1598 = vmatpush.msra.mxu0 %v607
        %1599 = vmatpush.msra.mxu0 %v605
        %1600 = vmatpush.msra.mxu0 %v603
        %1601 = vmatpush.msra.mxu0 %v601
        %1602 = vmatpush.msra.mxu0 %v599
        %1603 = vmatmul.f32.gmra.mxu0 %v1445
        %v1604 = vpop.f32.mrf.mxu0
        %v1605 = vadd.f32 %v1585, %v1604
        %1606 = vdwg.mxu0
        %1607 = vmatpush.msra.mxu0 %v661
        %1608 = vmatpush.msra.mxu0 %v659
        %1609 = vmatpush.msra.mxu0 %v657
        %1610 = vmatpush.msra.mxu0 %v655
        %1611 = vmatpush.msra.mxu0 %v653
        %1612 = vmatpush.msra.mxu0 %v651
        %1613 = vmatpush.msra.mxu0 %v649
        %1614 = vmatpush.msra.mxu0 %v647
        %1615 = vmatpush.msra.mxu0 %v645
        %1616 = vmatpush.msra.mxu0 %v643
        %1617 = vmatpush.msra.mxu0 %v641
        %1618 = vmatpush.msra.mxu0 %v639
        %1619 = vmatpush.msra.mxu0 %v637
        %1620 = vmatpush.msra.mxu0 %v635
        %1621 = vmatpush.msra.mxu0 %v633
        %1622 = vmatpush.msra.mxu0 %v631
        %1623 = vmatmul.f32.gmra.mxu0 %v1465
        %v1624 = vpop.f32.mrf.mxu0
        %v1625 = vadd.f32 %v1605, %v1624
        %1626 = vdwg.mxu0
        %1627 = vmatpush.msra.mxu0 %v693
        %1628 = vmatpush.msra.mxu0 %v691
        %1629 = vmatpush.msra.mxu0 %v689
        %1630 = vmatpush.msra.mxu0 %v687
        %1631 = vmatpush.msra.mxu0 %v685
        %1632 = vmatpush.msra.mxu0 %v683
        %1633 = vmatpush.msra.mxu0 %v681
        %1634 = vmatpush.msra.mxu0 %v679
        %1635 = vmatpush.msra.mxu0 %v677
        %1636 = vmatpush.msra.mxu0 %v675
        %1637 = vmatpush.msra.mxu0 %v673
        %1638 = vmatpush.msra.mxu0 %v671
        %1639 = vmatpush.msra.mxu0 %v669
        %1640 = vmatpush.msra.mxu0 %v667
        %1641 = vmatpush.msra.mxu0 %v665
        %1642 = vmatpush.msra.mxu0 %v663
        %1643 = vmatmul.f32.gmra.mxu0 %v1485
        %v1644 = vpop.f32.mrf.mxu0
        %v1645 = vadd.f32 %v1625, %v1644
        %1646 = vdwg.mxu0
        %1647 = vmatpush.msra.mxu0 %v725
        %1648 = vmatpush.msra.mxu0 %v723
        %1649 = vmatpush.msra.mxu0 %v721
        %1650 = vmatpush.msra.mxu0 %v719
        %1651 = vmatpush.msra.mxu0 %v717
        %1652 = vmatpush.msra.mxu0 %v715
        %1653 = vmatpush.msra.mxu0 %v713
        %1654 = vmatpush.msra.mxu0 %v711
        %1655 = vmatpush.msra.mxu0 %v709
        %1656 = vmatpush.msra.mxu0 %v707
        %1657 = vmatpush.msra.mxu0 %v705
        %1658 = vmatpush.msra.mxu0 %v703
        %1659 = vmatpush.msra.mxu0 %v701
        %1660 = vmatpush.msra.mxu0 %v699
        %1661 = vmatpush.msra.mxu0 %v697
        %1662 = vmatpush.msra.mxu0 %v695
        %1663 = vmatmul.f32.gmra.mxu0 %v1505
        %v1664 = vpop.f32.mrf.mxu0
        %v1665 = vadd.f32 %v1645, %v1664
        %1666 = vdwg.mxu0
        %1667 = vmatpush.msra.mxu0 %v757
        %1668 = vmatpush.msra.mxu0 %v755
        %1669 = vmatpush.msra.mxu0 %v753
        %1670 = vmatpush.msra.mxu0 %v751
        %1671 = vmatpush.msra.mxu0 %v749
        %1672 = vmatpush.msra.mxu0 %v747
        %1673 = vmatpush.msra.mxu0 %v745
        %1674 = vmatpush.msra.mxu0 %v743
        %1675 = vmatpush.msra.mxu0 %v741
        %1676 = vmatpush.msra.mxu0 %v739
        %1677 = vmatpush.msra.mxu0 %v737
        %1678 = vmatpush.msra.mxu0 %v735
        %1679 = vmatpush.msra.mxu0 %v733
        %1680 = vmatpush.msra.mxu0 %v731
        %1681 = vmatpush.msra.mxu0 %v729
        %1682 = vmatpush.msra.mxu0 %v727
        %1683 = vmatmul.f32.gmra.mxu0 %v1525
        %v1684 = vpop.f32.mrf.mxu0
        %v1685 = vadd.f32 %v1665, %v1684
        %1686 = vdwg.mxu0
        %1687 = vmatpush.msra.mxu0 %v789
        %1688 = vmatpush.msra.mxu0 %v787
        %1689 = vmatpush.msra.mxu0 %v785
        %1690 = vmatpush.msra.mxu0 %v783
        %1691 = vmatpush.msra.mxu0 %v781
        %1692 = vmatpush.msra.mxu0 %v779
        %1693 = vmatpush.msra.mxu0 %v777
        %1694 = vmatpush.msra.mxu0 %v775
        %1695 = vmatpush.msra.mxu0 %v773
        %1696 = vmatpush.msra.mxu0 %v771
        %1697 = vmatpush.msra.mxu0 %v769
        %1698 = vmatpush.msra.mxu0 %v767
        %1699 = vmatpush.msra.mxu0 %v765
        %1700 = vmatpush.msra.mxu0 %v763
        %1701 = vmatpush.msra.mxu0 %v761
        %1702 = vmatpush.msra.mxu0 %v759
        %1703 = vmatmul.f32.gmra.mxu0 %v1545
        %v1704 = vpop.f32.mrf.mxu0
        %v1705 = vadd.f32 %v1685, %v1704
        %1706 = vdwg.mxu0
        %1707 = vmatpush.msra.mxu0 %v821
        %1708 = vmatpush.msra.mxu0 %v819
        %1709 = vmatpush.msra.mxu0 %v817
        %1710 = vmatpush.msra.mxu0 %v815
        %1711 = vmatpush.msra.mxu0 %v813
        %1712 = vmatpush.msra.mxu0 %v811
        %1713 = vmatpush.msra.mxu0 %v809
        %1714 = vmatpush.msra.mxu0 %v807
        %1715 = vmatpush.msra.mxu0 %v805
        %1716 = vmatpush.msra.mxu0 %v803
        %1717 = vmatpush.msra.mxu0 %v801
        %1718 = vmatpush.msra.mxu0 %v799
        %1719 = vmatpush.msra.mxu0 %v797
        %1720 = vmatpush.msra.mxu0 %v795
        %1721 = vmatpush.msra.mxu0 %v793
        %1722 = vmatpush.msra.mxu0 %v791
        %1723 = vmatmul.f32.gmra.mxu0 %v1565
        %v1724 = vpop.f32.mrf.mxu0
        %v1725 = vadd.f32 %v1705, %v1724
        %1726 = vdwg.mxu0
        %1727 = vmatpush.msra.mxu0 %v598
        %1728 = vmatpush.msra.mxu0 %v596
        %1729 = vmatpush.msra.mxu0 %v594
        %1730 = vmatpush.msra.mxu0 %v592
        %1731 = vmatpush.msra.mxu0 %v590
        %1732 = vmatpush.msra.mxu0 %v588
        %1733 = vmatpush.msra.mxu0 %v586
        %1734 = vmatpush.msra.mxu0 %v584
        %1735 = vmatpush.msra.mxu0 %v582
        %1736 = vmatpush.msra.mxu0 %v580
        %1737 = vmatpush.msra.mxu0 %v578
        %1738 = vmatpush.msra.mxu0 %v576
        %1739 = vmatpush.msra.mxu0 %v574
        %1740 = vmatpush.msra.mxu0 %v572
        %1741 = vmatpush.msra.mxu0 %v570
        %1742 = vmatpush.msra.mxu0 %v568
        %1743 = vmatmul.f32.gmra.mxu0 %v1425
        %v1744 = vpop.f32.mrf.mxu0
        %v1745 = vadd.f32 0.0, %v1744
        %1746 = vdwg.mxu0
        %1747 = vmatpush.msra.mxu0 %v630
        %1748 = vmatpush.msra.mxu0 %v628
        %1749 = vmatpush.msra.mxu0 %v626
        %1750 = vmatpush.msra.mxu0 %v624
        %1751 = vmatpush.msra.mxu0 %v622
        %1752 = vmatpush.msra.mxu0 %v620
        %1753 = vmatpush.msra.mxu0 %v618
        %1754 = vmatpush.msra.mxu0 %v616
        %1755 = vmatpush.msra.mxu0 %v614
        %1756 = vmatpush.msra.mxu0 %v612
        %1757 = vmatpush.msra.mxu0 %v610
        %1758 = vmatpush.msra.mxu0 %v608
        %1759 = vmatpush.msra.mxu0 %v606
        %1760 = vmatpush.msra.mxu0 %v604
        %1761 = vmatpush.msra.mxu0 %v602
        %1762 = vmatpush.msra.mxu0 %v600
        %1763 = vmatmul.f32.gmra.mxu0 %v1445
        %v1764 = vpop.f32.mrf.mxu0
        %v1765 = vadd.f32 %v1745, %v1764
        %1766 = vdwg.mxu0
        %1767 = vmatpush.msra.mxu0 %v662
        %1768 = vmatpush.msra.mxu0 %v660
        %1769 = vmatpush.msra.mxu0 %v658
        %1770 = vmatpush.msra.mxu0 %v656
        %1771 = vmatpush.msra.mxu0 %v654
        %1772 = vmatpush.msra.mxu0 %v652
        %1773 = vmatpush.msra.mxu0 %v650
        %1774 = vmatpush.msra.mxu0 %v648
        %1775 = vmatpush.msra.mxu0 %v646
        %1776 = vmatpush.msra.mxu0 %v644
        %1777 = vmatpush.msra.mxu0 %v642
        %1778 = vmatpush.msra.mxu0 %v640
        %1779 = vmatpush.msra.mxu0 %v638
        %1780 = vmatpush.msra.mxu0 %v636
        %1781 = vmatpush.msra.mxu0 %v634
        %1782 = vmatpush.msra.mxu0 %v632
        %1783 = vmatmul.f32.gmra.mxu0 %v1465
        %v1784 = vpop.f32.mrf.mxu0
        %v1785 = vadd.f32 %v1765, %v1784
        %1786 = vdwg.mxu0
        %1787 = vmatpush.msra.mxu0 %v694
        %1788 = vmatpush.msra.mxu0 %v692
        %1789 = vmatpush.msra.mxu0 %v690
        %1790 = vmatpush.msra.mxu0 %v688
        %1791 = vmatpush.msra.mxu0 %v686
        %1792 = vmatpush.msra.mxu0 %v684
        %1793 = vmatpush.msra.mxu0 %v682
        %1794 = vmatpush.msra.mxu0 %v680
        %1795 = vmatpush.msra.mxu0 %v678
        %1796 = vmatpush.msra.mxu0 %v676
        %1797 = vmatpush.msra.mxu0 %v674
        %1798 = vmatpush.msra.mxu0 %v672
        %1799 = vmatpush.msra.mxu0 %v670
        %1800 = vmatpush.msra.mxu0 %v668
        %1801 = vmatpush.msra.mxu0 %v666
        %1802 = vmatpush.msra.mxu0 %v664
        %1803 = vmatmul.f32.gmra.mxu0 %v1485
        %v1804 = vpop.f32.mrf.mxu0
        %v1805 = vadd.f32 %v1785, %v1804
        %1806 = vdwg.mxu0
        %1807 = vmatpush.msra.mxu0 %v726
        %1808 = vmatpush.msra.mxu0 %v724
        %1809 = vmatpush.msra.mxu0 %v722
        %1810 = vmatpush.msra.mxu0 %v720
        %1811 = vmatpush.msra.mxu0 %v718
        %1812 = vmatpush.msra.mxu0 %v716
        %1813 = vmatpush.msra.mxu0 %v714
        %1814 = vmatpush.msra.mxu0 %v712
        %1815 = vmatpush.msra.mxu0 %v710
        %1816 = vmatpush.msra.mxu0 %v708
        %1817 = vmatpush.msra.mxu0 %v706
        %1818 = vmatpush.msra.mxu0 %v704
        %1819 = vmatpush.msra.mxu0 %v702
        %1820 = vmatpush.msra.mxu0 %v700
        %1821 = vmatpush.msra.mxu0 %v698
        %1822 = vmatpush.msra.mxu0 %v696
        %1823 = vmatmul.f32.gmra.mxu0 %v1505
        %v1824 = vpop.f32.mrf.mxu0
        %v1825 = vadd.f32 %v1805, %v1824
        %1826 = vdwg.mxu0
        %1827 = vmatpush.msra.mxu0 %v758
        %1828 = vmatpush.msra.mxu0 %v756
        %1829 = vmatpush.msra.mxu0 %v754
        %1830 = vmatpush.msra.mxu0 %v752
        %1831 = vmatpush.msra.mxu0 %v750
        %1832 = vmatpush.msra.mxu0 %v748
        %1833 = vmatpush.msra.mxu0 %v746
        %1834 = vmatpush.msra.mxu0 %v744
        %1835 = vmatpush.msra.mxu0 %v742
        %1836 = vmatpush.msra.mxu0 %v740
        %1837 = vmatpush.msra.mxu0 %v738
        %1838 = vmatpush.msra.mxu0 %v736
        %1839 = vmatpush.msra.mxu0 %v734
        %1840 = vmatpush.msra.mxu0 %v732
        %1841 = vmatpush.msra.mxu0 %v730
        %1842 = vmatpush.msra.mxu0 %v728
        %1843 = vmatmul.f32.gmra.mxu0 %v1525
        %v1844 = vpop.f32.mrf.mxu0
        %v1845 = vadd.f32 %v1825, %v1844
        %1846 = vdwg.mxu0
        %1847 = vmatpush.msra.mxu0 %v790
        %1848 = vmatpush.msra.mxu0 %v788
        %1849 = vmatpush.msra.mxu0 %v786
        %1850 = vmatpush.msra.mxu0 %v784
        %1851 = vmatpush.msra.mxu0 %v782
        %1852 = vmatpush.msra.mxu0 %v780
        %1853 = vmatpush.msra.mxu0 %v778
        %1854 = vmatpush.msra.mxu0 %v776
        %1855 = vmatpush.msra.mxu0 %v774
        %1856 = vmatpush.msra.mxu0 %v772
        %1857 = vmatpush.msra.mxu0 %v770
        %1858 = vmatpush.msra.mxu0 %v768
        %1859 = vmatpush.msra.mxu0 %v766
        %1860 = vmatpush.msra.mxu0 %v764
        %1861 = vmatpush.msra.mxu0 %v762
        %1862 = vmatpush.msra.mxu0 %v760
        %1863 = vmatmul.f32.gmra.mxu0 %v1545
        %v1864 = vpop.f32.mrf.mxu0
        %v1865 = vadd.f32 %v1845, %v1864
        %1866 = vdwg.mxu0
        %1867 = vmatpush.msra.mxu0 %v822
        %1868 = vmatpush.msra.mxu0 %v820
        %1869 = vmatpush.msra.mxu0 %v818
        %1870 = vmatpush.msra.mxu0 %v816
        %1871 = vmatpush.msra.mxu0 %v814
        %1872 = vmatpush.msra.mxu0 %v812
        %1873 = vmatpush.msra.mxu0 %v810
        %1874 = vmatpush.msra.mxu0 %v808
        %1875 = vmatpush.msra.mxu0 %v806
        %1876 = vmatpush.msra.mxu0 %v804
        %1877 = vmatpush.msra.mxu0 %v802
        %1878 = vmatpush.msra.mxu0 %v800
        %1879 = vmatpush.msra.mxu0 %v798
        %1880 = vmatpush.msra.mxu0 %v796
        %1881 = vmatpush.msra.mxu0 %v794
        %1882 = vmatpush.msra.mxu0 %v792
        %1883 = vmatmul.f32.gmra.mxu0 %v1565
        %v1884 = vpop.f32.mrf.mxu0
        %v1885 = vadd.f32 %v1865, %v1884
        %1886 = vdwg.mxu0
        %1888 = vset.pattern.permute.xlu0 0
        %1889 = vperm.xlu0 %1888, %v565
        %v1890 = vpop.permute.xlu0 %1889
        %v1892 = vmul.f32 %v1725, %v1890
        %v1893 = vmul.f32 %v1885, %v1890
        %1895 = vset.pattern.permute.xlu0 0
        %1896 = vperm.xlu0 %1895, %v566
        %v1897 = vpop.permute.xlu0 %1896
        %v1899 = vadd.f32 %v1892, %v1897
        %v1900 = vadd.f32 %v1893, %v1897
        %v1901 = vmul.f32 %v1899, 0.1
        %v1902 = vmul.f32 %v1900, 0.1
        %v1903 = vmax.f32 %v1899, %v1901
        %v1904 = vmax.f32 %v1900, %v1902
        %1905 = vrot.lane.b32.xlu0 %v1903, 9
        %v1906 = vpop.permute.xlu0 %1905
        %1907 = vrot.lane.b32.xlu0 %v1904, 9
        %v1908 = vpop.permute.xlu0 %1907
        %vm1909 = vcmp.lt.s32.totalorder %v1146, 9
        %v1910 = vsel %vm1909, %v1906, %v1908
        %v1911 = vsel %vm1909, %v1908, %v1906
        %1912 = vrot.lane.b32.xlu0 %v1903, 8
        %v1913 = vpop.permute.xlu0 %1912
        %1914 = vrot.lane.b32.xlu0 %v1904, 8
        %v1915 = vpop.permute.xlu0 %1914
        %vm1916 = vcmp.lt.s32.totalorder %v1146, 8
        %v1917 = vsel %vm1916, %v1913, %v1915
        %v1918 = vsel %vm1916, %v1915, %v1913
        %1919 = vrot.lane.b32.xlu0 %v1903, 7
        %v1920 = vpop.permute.xlu0 %1919
        %1921 = vrot.lane.b32.xlu0 %v1904, 7
        %v1922 = vpop.permute.xlu0 %1921
        %vm1923 = vcmp.lt.s32.totalorder %v1146, 7
        %v1924 = vsel %vm1923, %v1920, %v1922
        %v1925 = vsel %vm1923, %v1922, %v1920
        %1926 = vrot.lane.b32.xlu0 %v1903, 1
        %v1927 = vpop.permute.xlu0 %1926
        %1928 = vrot.lane.b32.xlu0 %v1904, 1
        %v1929 = vpop.permute.xlu0 %1928
        %v1930 = vsel %vm1222, %v1927, %v1929
        %v1931 = vsel %vm1222, %v1929, %v1927
        %1932 = vrot.lane.b32.xlu0 %v1903, 127
        %v1933 = vpop.permute.xlu0 %1932
        %1934 = vrot.lane.b32.xlu0 %v1904, 127
        %v1935 = vpop.permute.xlu0 %1934
        %v1936 = vsel %vm1247, %v1933, %v1935
        %v1937 = vsel %vm1247, %v1935, %v1933
        %1938 = vrot.lane.b32.xlu0 %v1903, 121
        %v1939 = vpop.permute.xlu0 %1938
        %1940 = vrot.lane.b32.xlu0 %v1904, 121
        %v1941 = vpop.permute.xlu0 %1940
        %vm1942 = vcmp.lt.s32.totalorder %v1146, 121
        %v1943 = vsel %vm1942, %v1939, %v1941
        %v1944 = vsel %vm1942, %v1941, %v1939
        %1945 = vrot.lane.b32.xlu0 %v1903, 120
        %v1946 = vpop.permute.xlu0 %1945
        %1947 = vrot.lane.b32.xlu0 %v1904, 120
        %v1948 = vpop.permute.xlu0 %1947
        %vm1949 = vcmp.lt.s32.totalorder %v1146, 120
        %v1950 = vsel %vm1949, %v1946, %v1948
        %v1951 = vsel %vm1949, %v1948, %v1946
        %1952 = vrot.lane.b32.xlu0 %v1903, 119
        %v1953 = vpop.permute.xlu0 %1952
        %1954 = vrot.lane.b32.xlu0 %v1904, 119
        %v1955 = vpop.permute.xlu0 %1954
        %vm1956 = vcmp.lt.s32.totalorder %v1146, 119
        %v1957 = vsel %vm1956, %v1953, %v1955
        %v1958 = vsel %vm1956, %v1955, %v1953
        %v1959 = vmul.f32 %v1911, %v545
        %v1960 = vmul.f32 %v1910, %v546
        %v1961 = vmul.f32 %v1918, %v547
        %v1962 = vmul.f32 %v1917, %v548
        %v1963 = vmul.f32 %v1925, %v549
        %v1964 = vmul.f32 %v1924, %v550
        %v1965 = vmul.f32 %v1931, %v551
        %v1966 = vmul.f32 %v1930, %v552
        %v1967 = vmul.f32 %v1903, %v553
        %v1968 = vmul.f32 %v1904, %v554
        %v1969 = vmul.f32 %v1936, %v555
        %v1970 = vmul.f32 %v1937, %v556
        %v1971 = vmul.f32 %v1943, %v557
        %v1972 = vmul.f32 %v1944, %v558
        %v1973 = vmul.f32 %v1950, %v559
        %v1974 = vmul.f32 %v1951, %v560
        %v1975 = vmul.f32 %v1957, %v561
        %v1976 = vmul.f32 %v1958, %v562
        %1977 = vmatpush.msra.mxu0 %v853
        %1978 = vmatpush.msra.mxu0 %v851
        %1979 = vmatpush.msra.mxu0 %v849
        %1980 = vmatpush.msra.mxu0 %v847
        %1981 = vmatpush.msra.mxu0 %v845
        %1982 = vmatpush.msra.mxu0 %v843
        %1983 = vmatpush.msra.mxu0 %v841
        %1984 = vmatpush.msra.mxu0 %v839
        %1985 = vmatpush.msra.mxu0 %v837
        %1986 = vmatpush.msra.mxu0 %v835
        %1987 = vmatpush.msra.mxu0 %v833
        %1988 = vmatpush.msra.mxu0 %v831
        %1989 = vmatpush.msra.mxu0 %v829
        %1990 = vmatpush.msra.mxu0 %v827
        %1991 = vmatpush.msra.mxu0 %v825
        %1992 = vmatpush.msra.mxu0 %v823
        %1993 = vmatmul.f32.gmra.mxu0 %v1079
        %v1994 = vpop.f32.mrf.mxu0
        %v1995 = vadd.f32 0.0, %v1994
        %1996 = vdwg.mxu0
        %1997 = vmatpush.msra.mxu0 %v885
        %1998 = vmatpush.msra.mxu0 %v883
        %1999 = vmatpush.msra.mxu0 %v881
        %2000 = vmatpush.msra.mxu0 %v879
        %2001 = vmatpush.msra.mxu0 %v877
        %2002 = vmatpush.msra.mxu0 %v875
        %2003 = vmatpush.msra.mxu0 %v873
        %2004 = vmatpush.msra.mxu0 %v871
        %2005 = vmatpush.msra.mxu0 %v869
        %2006 = vmatpush.msra.mxu0 %v867
        %2007 = vmatpush.msra.mxu0 %v865
        %2008 = vmatpush.msra.mxu0 %v863
        %2009 = vmatpush.msra.mxu0 %v861
        %2010 = vmatpush.msra.mxu0 %v859
        %2011 = vmatpush.msra.mxu0 %v857
        %2012 = vmatpush.msra.mxu0 %v855
        %2013 = vmatmul.f32.gmra.mxu0 %v1080
        %v2014 = vpop.f32.mrf.mxu0
        %v2015 = vadd.f32 %v1995, %v2014
        %2016 = vdwg.mxu0
        %2017 = vmatpush.msra.mxu0 %v917
        %2018 = vmatpush.msra.mxu0 %v915
        %2019 = vmatpush.msra.mxu0 %v913
        %2020 = vmatpush.msra.mxu0 %v911
        %2021 = vmatpush.msra.mxu0 %v909
        %2022 = vmatpush.msra.mxu0 %v907
        %2023 = vmatpush.msra.mxu0 %v905
        %2024 = vmatpush.msra.mxu0 %v903
        %2025 = vmatpush.msra.mxu0 %v901
        %2026 = vmatpush.msra.mxu0 %v899
        %2027 = vmatpush.msra.mxu0 %v897
        %2028 = vmatpush.msra.mxu0 %v895
        %2029 = vmatpush.msra.mxu0 %v893
        %2030 = vmatpush.msra.mxu0 %v891
        %2031 = vmatpush.msra.mxu0 %v889
        %2032 = vmatpush.msra.mxu0 %v887
        %2033 = vmatmul.f32.gmra.mxu0 %v1081
        %v2034 = vpop.f32.mrf.mxu0
        %v2035 = vadd.f32 %v2015, %v2034
        %2036 = vdwg.mxu0
        %2037 = vmatpush.msra.mxu0 %v949
        %2038 = vmatpush.msra.mxu0 %v947
        %2039 = vmatpush.msra.mxu0 %v945
        %2040 = vmatpush.msra.mxu0 %v943
        %2041 = vmatpush.msra.mxu0 %v941
        %2042 = vmatpush.msra.mxu0 %v939
        %2043 = vmatpush.msra.mxu0 %v937
        %2044 = vmatpush.msra.mxu0 %v935
        %2045 = vmatpush.msra.mxu0 %v933
        %2046 = vmatpush.msra.mxu0 %v931
        %2047 = vmatpush.msra.mxu0 %v929
        %2048 = vmatpush.msra.mxu0 %v927
        %2049 = vmatpush.msra.mxu0 %v925
        %2050 = vmatpush.msra.mxu0 %v923
        %2051 = vmatpush.msra.mxu0 %v921
        %2052 = vmatpush.msra.mxu0 %v919
        %2053 = vmatmul.f32.gmra.mxu0 %v1082
        %v2054 = vpop.f32.mrf.mxu0
        %v2055 = vadd.f32 %v2035, %v2054
        %2056 = vdwg.mxu0
        %2057 = vmatpush.msra.mxu0 %v981
        %2058 = vmatpush.msra.mxu0 %v979
        %2059 = vmatpush.msra.mxu0 %v977
        %2060 = vmatpush.msra.mxu0 %v975
        %2061 = vmatpush.msra.mxu0 %v973
        %2062 = vmatpush.msra.mxu0 %v971
        %2063 = vmatpush.msra.mxu0 %v969
        %2064 = vmatpush.msra.mxu0 %v967
        %2065 = vmatpush.msra.mxu0 %v965
        %2066 = vmatpush.msra.mxu0 %v963
        %2067 = vmatpush.msra.mxu0 %v961
        %2068 = vmatpush.msra.mxu0 %v959
        %2069 = vmatpush.msra.mxu0 %v957
        %2070 = vmatpush.msra.mxu0 %v955
        %2071 = vmatpush.msra.mxu0 %v953
        %2072 = vmatpush.msra.mxu0 %v951
        %2073 = vmatmul.f32.gmra.mxu0 %v1083
        %v2074 = vpop.f32.mrf.mxu0
        %v2075 = vadd.f32 %v2055, %v2074
        %2076 = vdwg.mxu0
        %2077 = vmatpush.msra.mxu0 %v1013
        %2078 = vmatpush.msra.mxu0 %v1011
        %2079 = vmatpush.msra.mxu0 %v1009
        %2080 = vmatpush.msra.mxu0 %v1007
        %2081 = vmatpush.msra.mxu0 %v1005
        %2082 = vmatpush.msra.mxu0 %v1003
        %2083 = vmatpush.msra.mxu0 %v1001
        %2084 = vmatpush.msra.mxu0 %v999
        %2085 = vmatpush.msra.mxu0 %v997
        %2086 = vmatpush.msra.mxu0 %v995
        %2087 = vmatpush.msra.mxu0 %v993
        %2088 = vmatpush.msra.mxu0 %v991
        %2089 = vmatpush.msra.mxu0 %v989
        %2090 = vmatpush.msra.mxu0 %v987
        %2091 = vmatpush.msra.mxu0 %v985
        %2092 = vmatpush.msra.mxu0 %v983
        %2093 = vmatmul.f32.gmra.mxu0 %v1084
        %v2094 = vpop.f32.mrf.mxu0
        %v2095 = vadd.f32 %v2075, %v2094
        %2096 = vdwg.mxu0
        %2097 = vmatpush.msra.mxu0 %v1045
        %2098 = vmatpush.msra.mxu0 %v1043
        %2099 = vmatpush.msra.mxu0 %v1041
        %2100 = vmatpush.msra.mxu0 %v1039
        %2101 = vmatpush.msra.mxu0 %v1037
        %2102 = vmatpush.msra.mxu0 %v1035
        %2103 = vmatpush.msra.mxu0 %v1033
        %2104 = vmatpush.msra.mxu0 %v1031
        %2105 = vmatpush.msra.mxu0 %v1029
        %2106 = vmatpush.msra.mxu0 %v1027
        %2107 = vmatpush.msra.mxu0 %v1025
        %2108 = vmatpush.msra.mxu0 %v1023
        %2109 = vmatpush.msra.mxu0 %v1021
        %2110 = vmatpush.msra.mxu0 %v1019
        %2111 = vmatpush.msra.mxu0 %v1017
        %2112 = vmatpush.msra.mxu0 %v1015
        %2113 = vmatmul.f32.gmra.mxu0 %v1085
        %v2114 = vpop.f32.mrf.mxu0
        %v2115 = vadd.f32 %v2095, %v2114
        %2116 = vdwg.mxu0
        %2117 = vmatpush.msra.mxu0 %v1077
        %2118 = vmatpush.msra.mxu0 %v1075
        %2119 = vmatpush.msra.mxu0 %v1073
        %2120 = vmatpush.msra.mxu0 %v1071
        %2121 = vmatpush.msra.mxu0 %v1069
        %2122 = vmatpush.msra.mxu0 %v1067
        %2123 = vmatpush.msra.mxu0 %v1065
        %2124 = vmatpush.msra.mxu0 %v1063
        %2125 = vmatpush.msra.mxu0 %v1061
        %2126 = vmatpush.msra.mxu0 %v1059
        %2127 = vmatpush.msra.mxu0 %v1057
        %2128 = vmatpush.msra.mxu0 %v1055
        %2129 = vmatpush.msra.mxu0 %v1053
        %2130 = vmatpush.msra.mxu0 %v1051
        %2131 = vmatpush.msra.mxu0 %v1049
        %2132 = vmatpush.msra.mxu0 %v1047
        %2133 = vmatmul.f32.gmra.mxu0 %v1086
        %v2134 = vpop.f32.mrf.mxu0
        %v2135 = vadd.f32 %v2115, %v2134
        %2136 = vdwg.mxu0
        %2137 = vmatpush.msra.mxu0 %v854
        %2138 = vmatpush.msra.mxu0 %v852
        %2139 = vmatpush.msra.mxu0 %v850
        %2140 = vmatpush.msra.mxu0 %v848
        %2141 = vmatpush.msra.mxu0 %v846
        %2142 = vmatpush.msra.mxu0 %v844
        %2143 = vmatpush.msra.mxu0 %v842
        %2144 = vmatpush.msra.mxu0 %v840
        %2145 = vmatpush.msra.mxu0 %v838
        %2146 = vmatpush.msra.mxu0 %v836
        %2147 = vmatpush.msra.mxu0 %v834
        %2148 = vmatpush.msra.mxu0 %v832
        %2149 = vmatpush.msra.mxu0 %v830
        %2150 = vmatpush.msra.mxu0 %v828
        %2151 = vmatpush.msra.mxu0 %v826
        %2152 = vmatpush.msra.mxu0 %v824
        %2153 = vmatmul.f32.gmra.mxu0 %v1079
        %v2154 = vpop.f32.mrf.mxu0
        %v2155 = vadd.f32 0.0, %v2154
        %2156 = vdwg.mxu0
        %2157 = vmatpush.msra.mxu0 %v886
        %2158 = vmatpush.msra.mxu0 %v884
        %2159 = vmatpush.msra.mxu0 %v882
        %2160 = vmatpush.msra.mxu0 %v880
        %2161 = vmatpush.msra.mxu0 %v878
        %2162 = vmatpush.msra.mxu0 %v876
        %2163 = vmatpush.msra.mxu0 %v874
        %2164 = vmatpush.msra.mxu0 %v872
        %2165 = vmatpush.msra.mxu0 %v870
        %2166 = vmatpush.msra.mxu0 %v868
        %2167 = vmatpush.msra.mxu0 %v866
        %2168 = vmatpush.msra.mxu0 %v864
        %2169 = vmatpush.msra.mxu0 %v862
        %2170 = vmatpush.msra.mxu0 %v860
        %2171 = vmatpush.msra.mxu0 %v858
        %2172 = vmatpush.msra.mxu0 %v856
        %2173 = vmatmul.f32.gmra.mxu0 %v1080
        %v2174 = vpop.f32.mrf.mxu0
        %v2175 = vadd.f32 %v2155, %v2174
        %2176 = vdwg.mxu0
        %2177 = vmatpush.msra.mxu0 %v918
        %2178 = vmatpush.msra.mxu0 %v916
        %2179 = vmatpush.msra.mxu0 %v914
        %2180 = vmatpush.msra.mxu0 %v912
        %2181 = vmatpush.msra.mxu0 %v910
        %2182 = vmatpush.msra.mxu0 %v908
        %2183 = vmatpush.msra.mxu0 %v906
        %2184 = vmatpush.msra.mxu0 %v904
        %2185 = vmatpush.msra.mxu0 %v902
        %2186 = vmatpush.msra.mxu0 %v900
        %2187 = vmatpush.msra.mxu0 %v898
        %2188 = vmatpush.msra.mxu0 %v896
        %2189 = vmatpush.msra.mxu0 %v894
        %2190 = vmatpush.msra.mxu0 %v892
        %2191 = vmatpush.msra.mxu0 %v890
        %2192 = vmatpush.msra.mxu0 %v888
        %2193 = vmatmul.f32.gmra.mxu0 %v1081
        %v2194 = vpop.f32.mrf.mxu0
        %v2195 = vadd.f32 %v2175, %v2194
        %2196 = vdwg.mxu0
        %2197 = vmatpush.msra.mxu0 %v950
        %2198 = vmatpush.msra.mxu0 %v948
        %2199 = vmatpush.msra.mxu0 %v946
        %2200 = vmatpush.msra.mxu0 %v944
        %2201 = vmatpush.msra.mxu0 %v942
        %2202 = vmatpush.msra.mxu0 %v940
        %2203 = vmatpush.msra.mxu0 %v938
        %2204 = vmatpush.msra.mxu0 %v936
        %2205 = vmatpush.msra.mxu0 %v934
        %2206 = vmatpush.msra.mxu0 %v932
        %2207 = vmatpush.msra.mxu0 %v930
        %2208 = vmatpush.msra.mxu0 %v928
        %2209 = vmatpush.msra.mxu0 %v926
        %2210 = vmatpush.msra.mxu0 %v924
        %2211 = vmatpush.msra.mxu0 %v922
        %2212 = vmatpush.msra.mxu0 %v920
        %2213 = vmatmul.f32.gmra.mxu0 %v1082
        %v2214 = vpop.f32.mrf.mxu0
        %v2215 = vadd.f32 %v2195, %v2214
        %2216 = vdwg.mxu0
        %2217 = vmatpush.msra.mxu0 %v982
        %2218 = vmatpush.msra.mxu0 %v980
        %2219 = vmatpush.msra.mxu0 %v978
        %2220 = vmatpush.msra.mxu0 %v976
        %2221 = vmatpush.msra.mxu0 %v974
        %2222 = vmatpush.msra.mxu0 %v972
        %2223 = vmatpush.msra.mxu0 %v970
        %2224 = vmatpush.msra.mxu0 %v968
        %2225 = vmatpush.msra.mxu0 %v966
        %2226 = vmatpush.msra.mxu0 %v964
        %2227 = vmatpush.msra.mxu0 %v962
        %2228 = vmatpush.msra.mxu0 %v960
        %2229 = vmatpush.msra.mxu0 %v958
        %2230 = vmatpush.msra.mxu0 %v956
        %2231 = vmatpush.msra.mxu0 %v954
        %2232 = vmatpush.msra.mxu0 %v952
        %2233 = vmatmul.f32.gmra.mxu0 %v1083
        %v2234 = vpop.f32.mrf.mxu0
        %v2235 = vadd.f32 %v2215, %v2234
        %2236 = vdwg.mxu0
        %2237 = vmatpush.msra.mxu0 %v1014
        %2238 = vmatpush.msra.mxu0 %v1012
        %2239 = vmatpush.msra.mxu0 %v1010
        %2240 = vmatpush.msra.mxu0 %v1008
        %2241 = vmatpush.msra.mxu0 %v1006
        %2242 = vmatpush.msra.mxu0 %v1004
        %2243 = vmatpush.msra.mxu0 %v1002
        %2244 = vmatpush.msra.mxu0 %v1000
        %2245 = vmatpush.msra.mxu0 %v998
        %2246 = vmatpush.msra.mxu0 %v996
        %2247 = vmatpush.msra.mxu0 %v994
        %2248 = vmatpush.msra.mxu0 %v992
        %2249 = vmatpush.msra.mxu0 %v990
        %2250 = vmatpush.msra.mxu0 %v988
        %2251 = vmatpush.msra.mxu0 %v986
        %2252 = vmatpush.msra.mxu0 %v984
        %2253 = vmatmul.f32.gmra.mxu0 %v1084
        %v2254 = vpop.f32.mrf.mxu0
        %v2255 = vadd.f32 %v2235, %v2254
        %2256 = vdwg.mxu0
        %2257 = vmatpush.msra.mxu0 %v1046
        %2258 = vmatpush.msra.mxu0 %v1044
        %2259 = vmatpush.msra.mxu0 %v1042
        %2260 = vmatpush.msra.mxu0 %v1040
        %2261 = vmatpush.msra.mxu0 %v1038
        %2262 = vmatpush.msra.mxu0 %v1036
        %2263 = vmatpush.msra.mxu0 %v1034
        %2264 = vmatpush.msra.mxu0 %v1032
        %2265 = vmatpush.msra.mxu0 %v1030
        %2266 = vmatpush.msra.mxu0 %v1028
        %2267 = vmatpush.msra.mxu0 %v1026
        %2268 = vmatpush.msra.mxu0 %v1024
        %2269 = vmatpush.msra.mxu0 %v1022
        %2270 = vmatpush.msra.mxu0 %v1020
        %2271 = vmatpush.msra.mxu0 %v1018
        %2272 = vmatpush.msra.mxu0 %v1016
        %2273 = vmatmul.f32.gmra.mxu0 %v1085
        %v2274 = vpop.f32.mrf.mxu0
        %v2275 = vadd.f32 %v2255, %v2274
        %2276 = vdwg.mxu0
        %2277 = vmatpush.msra.mxu0 %v1078
        %2278 = vmatpush.msra.mxu0 %v1076
        %2279 = vmatpush.msra.mxu0 %v1074
        %2280 = vmatpush.msra.mxu0 %v1072
        %2281 = vmatpush.msra.mxu0 %v1070
        %2282 = vmatpush.msra.mxu0 %v1068
        %2283 = vmatpush.msra.mxu0 %v1066
        %2284 = vmatpush.msra.mxu0 %v1064
        %2285 = vmatpush.msra.mxu0 %v1062
        %2286 = vmatpush.msra.mxu0 %v1060
        %2287 = vmatpush.msra.mxu0 %v1058
        %2288 = vmatpush.msra.mxu0 %v1056
        %2289 = vmatpush.msra.mxu0 %v1054
        %2290 = vmatpush.msra.mxu0 %v1052
        %2291 = vmatpush.msra.mxu0 %v1050
        %2292 = vmatpush.msra.mxu0 %v1048
        %2293 = vmatmul.f32.gmra.mxu0 %v1086
        %v2294 = vpop.f32.mrf.mxu0
        %v2295 = vadd.f32 %v2275, %v2294
        %2296 = vdwg.mxu0
        %v2298 = vsel %vm1403, %v472, 0
        %2300 = vmatpush.msra.mxu0 0.0
        %2301 = vmatpush.msra.mxu0 0.0
        %2302 = vmatpush.msra.mxu0 0.0
        %2303 = vmatpush.msra.mxu0 0.0
        %2304 = vmatpush.msra.mxu0 0.0
        %2305 = vmatpush.msra.mxu0 0.0
        %2306 = vmatpush.msra.mxu0 0.0
        %2307 = vmatpush.msra.mxu0 %v1975
        %2308 = vmatpush.msra.mxu0 %v1973
        %2309 = vmatpush.msra.mxu0 %v1971
        %2310 = vmatpush.msra.mxu0 %v1969
        %2311 = vmatpush.msra.mxu0 %v1967
        %2312 = vmatpush.msra.mxu0 %v1965
        %2313 = vmatpush.msra.mxu0 %v1963
        %2314 = vmatpush.msra.mxu0 %v1961
        %2315 = vmatpush.msra.mxu0 %v1959
        %2316 = vmatmul.f32.gmra.mxu0 %v2298
        %v2317 = vpop.f32.mrf.mxu0
        %v2318 = vadd.f32 %v2135, %v2317
        %2319 = vdwg.mxu0
        %2320 = vmatpush.msra.mxu0 0.0
        %2321 = vmatpush.msra.mxu0 0.0
        %2322 = vmatpush.msra.mxu0 0.0
        %2323 = vmatpush.msra.mxu0 0.0
        %2324 = vmatpush.msra.mxu0 0.0
        %2325 = vmatpush.msra.mxu0 0.0
        %2326 = vmatpush.msra.mxu0 0.0
        %2327 = vmatpush.msra.mxu0 %v1976
        %2328 = vmatpush.msra.mxu0 %v1974
        %2329 = vmatpush.msra.mxu0 %v1972
        %2330 = vmatpush.msra.mxu0 %v1970
        %2331 = vmatpush.msra.mxu0 %v1968
        %2332 = vmatpush.msra.mxu0 %v1966
        %2333 = vmatpush.msra.mxu0 %v1964
        %2334 = vmatpush.msra.mxu0 %v1962
        %2335 = vmatpush.msra.mxu0 %v1960
        %2336 = vmatmul.f32.gmra.mxu0 %v2298
        %v2337 = vpop.f32.mrf.mxu0
        %v2338 = vadd.f32 %v2295, %v2337
        %2339 = vdwg.mxu0
        %2340 = vst [vmem:[%s470] sm:$0xff] %v2318
        %2341 = vst [vmem:[%s470 + $0x8] sm:$0xff] %v2338
        %s2342 = sand.u32 %s274, 1
        %s2343 = scalar_lea.sflag [#allocation4], %s2342
        %s2344 = sand.u32 %s274, 1
        %s2345 = smul.addr %s2344, 16
        %s2346 = scalar_lea.vmem [#allocation11], %s2345
        // Predicated region
        $region85: #{tpu_custom_call.1} parent=63 // pred_check
          %p2347 = pneg %p284
        $region86: #{tpu_custom_call.1} parent=63 // pred_check_branch
          %2349 = sbr.rel (%p2347) target = $region88
        $region87: #{tpu_custom_call.1} parent=63 // pred_region
          %2351 = vsyncadd %s2343, 0
          %s2352 = smul.addr %s30, 2
          %s2353 = smul.addr %s2352, 8
          %s2354 = scalar_lea.hbm %s11, %s2353
          %s2356 = sshll.u32 %s2346, 4
          %s2357 = int_to_ptr.vmem [resolvable:$true] %s2356
          %s2358 = sshll.u32 %s2354, 4
          %s2359 = int_to_ptr.hbm [resolvable:$true] %s2358
          %2361 = dma.vmem_to_hbm [thread:$0]  %s2357, 256, %s2359, %s2343
        $region88: #{tpu_custom_call.1} parent=63 // pred_fallthru
          _
      $region64: #{tpu_custom_call.1} parent=5 // pred_fallthru
        _
      %p2362 = scmp.le.s32.totalorder 2, %s25
      // Predicated region
      $region89: #{tpu_custom_call.1} parent=5 // pred_check
        %p2363 = pneg %p2362
      $region90: #{tpu_custom_call.1} parent=5 // pred_check_branch
        %2365 = sbr.rel (%p2363) target = $region92
      $region91: #{tpu_custom_call.1} parent=5 // pred_region
        %s2366 = ssub.s32 %s25, 2
        // Predicated region
        $region93: #{tpu_custom_call.1} parent=91 // pred_check
          %p2367 = pneg %p290
        $region94: #{tpu_custom_call.1} parent=91 // pred_check_branch
          %2369 = sbr.rel (%p2367) target = $region96
        $region95: #{tpu_custom_call.1} parent=91 // pred_region
          %s2370 = sand.u32 %s275, 1
          %s2371 = scalar_lea.sflag [#allocation4], %s2370
          %s2372 = sand.u32 %s275, 1
          %s2373 = smul.addr %s2372, 16
          %s2374 = scalar_lea.vmem [#allocation11], %s2373
          %2376 = dma.done %s2371, 256
        $region96: #{tpu_custom_call.1} parent=91 // pred_fallthru
          _
      $region92: #{tpu_custom_call.1} parent=5 // pred_fallthru
        _
    $region6: #{tpu_custom_call.1} parent=1 // loop_footer
      %s29 = sadd.s32 1, %s25
    $region7: #{tpu_custom_call.1} parent=1 // loop_footer_branch
      %24 = sbr.rel target = $region3
    $region8: #{tpu_custom_call.1} parent=1 // loop_exit
      _
    %2377 = vsyncpa [#allocation3], 1
    %s2378 = scalar_lea.sflag [#allocation3], 1
    %2379 = vsyncpa %s2378, 1
    %2380 = vsyncpa [#allocation6], 1
    %2381 = vsyncpa [#allocation9], 1
    %2382 = vsyncpa [#allocation4], 1
    %s2383 = scalar_lea.sflag [#allocation4], 1
    %2384 = vsyncpa %s2383, 1

</llo_original>
